<compile_context>
chip_gen: v7x
topology: tpu7x:2x2x1
jax: 0.10.0
libtpu: 0.0.40
codegen_flags: <defaults>
</compile_context>

<pallas_src>
import functools

import jax
import jax.numpy as jnp
from jax.experimental import pallas as pl
from jax.experimental.pallas import tpu as pltpu

LANE = 128
_ROW_TILE = 1024     # matmul row tile; ~2 MB working set, fine on v5e/v6e/v7x scoped VMEM defaults


def _rup(x, m):
    return ((x + m - 1) // m) * m


def _mxu_tile(dim):
    # 256-wide N/K tiles fill the 2x256x256 MXU on v6e/v7x and halve the K-step count; on v5e
    # (4x128x128 MXU) a 256 tile just lowers to multiple 128-wide passes — no downside.
    return 256 if dim % 256 == 0 else 128


def _row_tile(m):
    # Block rows must be a multiple of 8 or equal to the full dim; ragged last tiles are masked
    # by Pallas (safe here: no cross-row reduction in these matmul kernels).
    return m if m <= _ROW_TILE else _ROW_TILE


# ----------------------------------------------------------------------------
# Kernel 1: tiled matmul + folded BN + activation   (stem / 1x1 expand)
# ----------------------------------------------------------------------------

def _matmul_bn_act_kernel(x_ref, w_ref, scale_ref, bias_ref, o_ref, acc_ref, *, act):
    k = pl.program_id(2)

    @pl.when(k == 0)
    def _():
        acc_ref[...] = jnp.zeros_like(acc_ref)

    acc_ref[...] += jnp.dot(x_ref[...], w_ref[...], preferred_element_type=jnp.float32)

    @pl.when(k == pl.num_programs(2) - 1)
    def _():
        y = acc_ref[...] * scale_ref[...] + bias_ref[...]     # f32 epilogue
        if act == "silu":
            y = y * jax.nn.sigmoid(y)
        elif act == "sigmoid":
            y = jax.nn.sigmoid(y)
        o_ref[...] = y.astype(o_ref.dtype)


def matmul_bn_act(x, w, scale, bias, act="none", out_dtype=jnp.bfloat16):
    m, k = x.shape
    k2, n = w.shape
    assert k == k2 and k % LANE == 0 and n % LANE == 0, (x.shape, w.shape)
    assert scale.shape == (1, n) and bias.shape == (1, n)
    tk, tn = _mxu_tile(k), _mxu_tile(n)
    tm = _row_tile(m)
    grid = (pl.cdiv(m, tm), n // tn, k // tk)
    return pl.pallas_call(
        functools.partial(_matmul_bn_act_kernel, act=act),
        grid=grid,
        in_specs=[
            pl.BlockSpec((tm, tk), lambda i, j, kk: (i, kk)),
            pl.BlockSpec((tk, tn), lambda i, j, kk: (kk, j)),
            pl.BlockSpec((1, tn), lambda i, j, kk: (0, j)),
            pl.BlockSpec((1, tn), lambda i, j, kk: (0, j)),
        ],
        out_specs=pl.BlockSpec((tm, tn), lambda i, j, kk: (i, j)),
        out_shape=jax.ShapeDtypeStruct((m, n), out_dtype),
        scratch_shapes=[pltpu.VMEM((tm, tn), jnp.float32)],
        compiler_params=pltpu.CompilerParams(
            dimension_semantics=("parallel", "parallel", "arbitrary")),
    )(x.astype(jnp.bfloat16), w.astype(jnp.bfloat16), scale, bias)


# ----------------------------------------------------------------------------
# Kernel 2: depthwise 3x3 (stride 1, pad 1) + folded BN + SiLU + fused SE-GAP
#   - no HBM halo pad: halo lives in an f32 VMEM scratch, border re-zeroed in-kernel
#   - single bf16->f32 cast (hoisted out of the 9-tap loop)
#   - second output: per-(sample, channel) mean of the activation (consumed by the SE gate)
# ----------------------------------------------------------------------------

def _depthwise_kernel(x_ref, w_ref, scale_ref, bias_ref, o_ref, pool_ref, pad_ref,
                      *, h, w, tc, inv_hw):
    f32 = jnp.float32
    # Re-zero the 1-px halo border every step (cheap; keeps the grid axes truly parallel —
    # no cross-step scratch dependence, so megacore sharding on v7x stays correct).
    pad_ref[pl.ds(0, 1)] = jnp.zeros((1, w + 2, tc), f32)
    pad_ref[pl.ds(h + 1, 1)] = jnp.zeros((1, w + 2, tc), f32)
    pad_ref[pl.ds(1, h), pl.ds(0, 1), :] = jnp.zeros((h, 1, tc), f32)
    pad_ref[pl.ds(1, h), pl.ds(w + 1, 1), :] = jnp.zeros((h, 1, tc), f32)
    # Single conversion pass into the halo scratch.
    pad_ref[pl.ds(1, h), pl.ds(1, w), :] = x_ref[...].astype(f32)

    taps = w_ref[...]                                        # (9, TC) f32
    acc = pad_ref[pl.ds(0, h), pl.ds(0, w), :] * taps[0]
    for ki in range(3):
        for kj in range(3):
            if ki == 0 and kj == 0:
                continue
            acc = acc + pad_ref[pl.ds(ki, h), pl.ds(kj, w), :] * taps[ki * 3 + kj]
    y = acc * scale_ref[0] + bias_ref[0]
    ys = y * jax.nn.sigmoid(y)                               # SiLU, f32
    o_ref[...] = ys.astype(o_ref.dtype)
    col = jnp.sum(ys, axis=0)                                # (W, TC)
    pool_ref[...] = jnp.sum(col, axis=0, keepdims=True) * inv_hw   # (1, TC) mean


def depthwise_bn_silu(x, w, scale, bias):
    """x: [N, H, W, Cp] bf16 (Cp % 128 == 0) -> (activation [N,H,W,Cp] bf16, pooled [N,1,Cp] f32)."""
    n, h, wd, cp = x.shape
    assert cp % LANE == 0
    tc = LANE
    # TODO(synk): add H-strip tiling (strip + 2-row halo) for large resolutions; the full spatial
    #             block per (sample, 128-ch group) does not fit v7x/v5e scoped VMEM at B4 sizes.
    return pl.pallas_call(
        functools.partial(_depthwise_kernel, h=h, w=wd, tc=tc, inv_hw=1.0 / (h * wd)),
        grid=(n, cp // tc),
        in_specs=[
            pl.BlockSpec((None, h, wd, tc), lambda b, c: (b, 0, 0, c)),
            pl.BlockSpec((9, tc), lambda b, c: (0, c)),
            pl.BlockSpec((1, tc), lambda b, c: (0, c)),
            pl.BlockSpec((1, tc), lambda b, c: (0, c)),
        ],
        out_specs=(
            pl.BlockSpec((None, h, wd, tc), lambda b, c: (b, 0, 0, c)),
            pl.BlockSpec((None, 1, tc), lambda b, c: (b, 0, c)),
        ),
        out_shape=(
            jax.ShapeDtypeStruct((n, h, wd, cp), jnp.bfloat16),
            jax.ShapeDtypeStruct((n, 1, cp), jnp.float32),
        ),
        scratch_shapes=[pltpu.VMEM((h + 2, wd + 2, tc), jnp.float32)],
        compiler_params=pltpu.CompilerParams(
            dimension_semantics=("parallel", "parallel")),
    )(x, w, scale, bias)


# ----------------------------------------------------------------------------
# Kernel 3: squeeze-excite gate from the pre-pooled vector  (FC+SiLU -> FC+sigmoid)
# ----------------------------------------------------------------------------

def _se_gate_kernel(p_ref, w1_ref, b1_ref, w2_ref, b2_ref, o_ref):
    pooled = p_ref[...].astype(jnp.bfloat16)                  # (1, Cm)
    hv = jnp.dot(pooled, w1_ref[...], preferred_element_type=jnp.float32) + b1_ref[...]
    hv = hv * jax.nn.sigmoid(hv)                              # SiLU
    g = jnp.dot(hv.astype(jnp.bfloat16), w2_ref[...],
                preferred_element_type=jnp.float32) + b2_ref[...]
    o_ref[...] = jax.nn.sigmoid(g).astype(o_ref.dtype)


def se_gate(pooled, w1, b1, w2, b2):
    """pooled: [N, 1, Cm] f32 (from the depthwise kernel) -> gate [N, 1, Cm] bf16."""
    n, _, cm = pooled.shape
    crd = w1.shape[1]
    return pl.pallas_call(
        _se_gate_kernel,
        grid=(n,),
        in_specs=[
            pl.BlockSpec((None, 1, cm), lambda b: (b, 0, 0)),
            pl.BlockSpec((cm, crd), lambda b: (0, 0)),
            pl.BlockSpec((1, crd), lambda b: (0, 0)),
            pl.BlockSpec((crd, cm), lambda b: (0, 0)),
            pl.BlockSpec((1, cm), lambda b: (0, 0)),
        ],
        out_specs=pl.BlockSpec((None, 1, cm), lambda b: (b, 0, 0)),
        out_shape=jax.ShapeDtypeStruct((n, 1, cm), jnp.bfloat16),
        compiler_params=pltpu.CompilerParams(dimension_semantics=("parallel",)),
    )(pooled, w1, b1, w2, b2)


# ----------------------------------------------------------------------------
# Kernel 4: fused  SE-gate-apply -> 1x1 project matmul -> folded BN -> (+ residual)
# ----------------------------------------------------------------------------

def _se_proj_kernel(x_ref, s_ref, w_ref, scale_ref, bias_ref, *refs, has_residual):
    if has_residual:
        res_ref, o_ref, acc_ref = refs
    else:
        o_ref, acc_ref = refs
    k = pl.program_id(3)

    @pl.when(k == 0)
    def _():
        acc_ref[...] = jnp.zeros_like(acc_ref)

    # bf16 gate multiply (feeds a bf16 MXU matmul, so precision is unchanged).
    # TODO(synk): when cout//tn > 1, hoist xg into a persistent VMEM scratch computed at j==0.
    xg = x_ref[...] * s_ref[...]
    acc_ref[...] += jnp.dot(xg, w_ref[...], preferred_element_type=jnp.float32)

    @pl.when(k == pl.num_programs(3) - 1)
    def _():
        y = acc_ref[...] * scale_ref[...] + bias_ref[...]
        if has_residual:
            y = y + refs[0][...].astype(jnp.float32)          # residual (drop_path = identity)
        o_ref[...] = y.astype(o_ref.dtype)


def se_proj_residual(x, s, w, scale, bias, res=None):
    """x: [N, HW, Cm] bf16, s: [N, 1, Cm] bf16, w: [Cm, Cout] bf16, res: [N, HW, Cout] bf16|None."""
    n, hw, cm = x.shape
    cout = w.shape[1]
    assert cm % LANE == 0 and cout % LANE == 0
    tk, tn = _mxu_tile(cm), _mxu_tile(cout)
    thw = _row_tile(hw)       # ragged last row tile is masked by Pallas (rows are independent here)
    grid = (n, pl.cdiv(hw, thw), cout // tn, cm // tk)
    has_res = res is not None

    in_specs = [
        pl.BlockSpec((None, thw, tk), lambda b, i, j, k: (b, i, k)),
        pl.BlockSpec((None, 1, tk), lambda b, i, j, k: (b, 0, k)),
        pl.BlockSpec((tk, tn), lambda b, i, j, k: (k, j)),
        pl.BlockSpec((1, tn), lambda b, i, j, k: (0, j)),
        pl.BlockSpec((1, tn), lambda b, i, j, k: (0, j)),
    ]
    args = [x, s, w, scale, bias]
    if has_res:
        in_specs.append(pl.BlockSpec((None, thw, tn), lambda b, i, j, k: (b, i, j)))
        args.append(res)

    return pl.pallas_call(
        functools.partial(_se_proj_kernel, has_residual=has_res),
        grid=grid,
        in_specs=in_specs,
        out_specs=pl.BlockSpec((None, thw, tn), lambda b, i, j, k: (b, i, j)),
        out_shape=jax.ShapeDtypeStruct((n, hw, cout), jnp.bfloat16),
        scratch_shapes=[pltpu.VMEM((thw, tn), jnp.float32)],
        compiler_params=pltpu.CompilerParams(
            dimension_semantics=("parallel", "parallel", "parallel", "arbitrary")),
    )(*args)


# ----------------------------------------------------------------------------
# Kernel 5: fused conv_head 1x1 matmul + folded BN + SiLU + global-average-pool
#   The full head activation never touches HBM; only [N, 1, Chead] pooled means come out.
#   Grid order (b, j, i, k): the pooled output block (b, 0, j) stays resident across the
#   row-tile axis i and the reduction axis k (both "arbitrary").
# ----------------------------------------------------------------------------

def _head_gap_kernel(x_ref, w_ref, scale_ref, bias_ref, o_ref, acc_ref, *, hw, inv_hw):
    i = pl.program_id(2)
    k = pl.program_id(3)

    @pl.when(k == 0)
    def _():
        acc_ref[...] = jnp.zeros_like(acc_ref)

    acc_ref[...] += jnp.dot(x_ref[...], w_ref[...], preferred_element_type=jnp.float32)

    @pl.when(k == pl.num_programs(3) - 1)
    def _():
        y = acc_ref[...] * scale_ref[...] + bias_ref[...]
        y = y * jax.nn.sigmoid(y)                             # SiLU, f32
        thw = y.shape[0]
        # Mask ragged row tiles: this is a cross-row reduction, garbage rows must not be summed.
        rows = jax.lax.broadcasted_iota(jnp.int32, (thw, 1), 0) + i * thw
        y = jnp.where(rows < hw, y, 0.0)
        part = jnp.sum(y, axis=0, keepdims=True) * inv_hw     # (1, tn)

        @pl.when(i == 0)
        def _():
            o_ref[...] = part

        @pl.when(i > 0)
        def _():
            o_ref[...] = o_ref[...] + part


def head_gap(x3, w, scale, bias):
    """x3: [N, HW, Cinp] bf16, w: [Cinp, Cheadp] bf16 -> pooled silu(head) means [N, 1, Cheadp] f32."""
    n, hw, cin = x3.shape
    cout = w.shape[1]
    assert cin % LANE == 0 and cout % LANE == 0
    tk, tn = _mxu_tile(cin), _mxu_tile(cout)
    thw = _row_tile(hw)
    grid = (n, cout // tn, pl.cdiv(hw, thw), cin // tk)
    return pl.pallas_call(
        functools.partial(_head_gap_kernel, hw=hw, inv_hw=1.0 / hw),
        grid=grid,
        in_specs=[
            pl.BlockSpec((None, thw, tk), lambda b, j, i, k: (b, i, k)),
            pl.BlockSpec((tk, tn), lambda b, j, i, k: (k, j)),
            pl.BlockSpec((1, tn), lambda b, j, i, k: (0, j)),
            pl.BlockSpec((1, tn), lambda b, j, i, k: (0, j)),
        ],
        out_specs=pl.BlockSpec((None, 1, tn), lambda b, j, i, k: (b, 0, j)),
        out_shape=jax.ShapeDtypeStruct((n, 1, cout), jnp.float32),
        scratch_shapes=[pltpu.VMEM((thw, tn), jnp.float32)],
        compiler_params=pltpu.CompilerParams(
            dimension_semantics=("parallel", "parallel", "arbitrary", "arbitrary")),
    )(x3, w, scale, bias)


# ----------------------------------------------------------------------------
# Kernel 6: classifier Linear(in_features, 1) on the pooled vector
# ----------------------------------------------------------------------------

def _classifier_kernel(p_ref, w_ref, b_ref, o_ref):
    p = p_ref[...].astype(jnp.bfloat16)
    o_ref[...] = jnp.dot(p, w_ref[...], preferred_element_type=jnp.float32) + b_ref[...]


def classifier_head(pooled, w, b):
    """pooled: [N, 1, Ch] f32, w: [Ch, 128] bf16 (col 0 real), b: [1, 128] f32 -> [N, 1, 128] f32."""
    n, _, ch = pooled.shape
    no = w.shape[1]
    return pl.pallas_call(
        _classifier_kernel,
        grid=(n,),
        in_specs=[
            pl.BlockSpec((None, 1, ch), lambda bi: (bi, 0, 0)),
            pl.BlockSpec((ch, no), lambda bi: (0, 0)),
            pl.BlockSpec((1, no), lambda bi: (0, 0)),
        ],
        out_specs=pl.BlockSpec((None, 1, no), lambda bi: (bi, 0, 0)),
        out_shape=jax.ShapeDtypeStruct((n, 1, no), jnp.float32),
        compiler_params=pltpu.CompilerParams(dimension_semantics=("parallel",)),
    )(pooled, w, b)


# ----------------------------------------------------------------------------
# JAX glue: stem patches (built directly into the K-padded layout), MBConv block, forward
# ----------------------------------------------------------------------------

def stem_patches(x, kp):
    """x: [N, H, W, C] bf16 -> ([N*Ho*Wo, kp] bf16, Ho, Wo) for the 3x3/stride-2/pad-1 stem.
    The 9 patch slices and the K zero-padding (9*C -> kp) are concatenated in a single op so the
    K-padded layout is written to HBM exactly once."""
    n, h, w, c = x.shape
    xp = jnp.pad(x, ((0, 0), (1, 1), (1, 1), (0, 0)))
    ho = (h + 2 - 3) // 2 + 1
    wo = (w + 2 - 3) // 2 + 1
    pieces = []
    for i in range(3):
        for j in range(3):
            pieces.append(xp[:, i:i + 2 * ho:2, j:j + 2 * wo:2, :])
    pieces.append(jnp.zeros((n, ho, wo, kp - 9 * c), x.dtype))
    pm = jnp.concatenate(pieces, axis=-1).reshape(n * ho * wo, kp)
    return pm, ho, wo


def mbconv(blk, x):
    """MBConv: 1x1 expand -> 3x3 depthwise (+ fused GAP) -> SE -> 1x1 project (+ residual)."""
    n, h, w, cp = x.shape
    xm = x.reshape(n * h * w, cp)

    y = matmul_bn_act(xm, blk["exp_w"], blk["exp_scale"], blk["exp_bias"], act="silu")
    cm = y.shape[-1]
    ye = y.reshape(n, h, w, cm)

    yd, pooled = depthwise_bn_silu(ye, blk["dw_w"], blk["dw_scale"], blk["dw_bias"])
    yd3 = yd.reshape(n, h * w, cm)

    s = se_gate(pooled, blk["se_w1"], blk["se_b1"], blk["se_w2"], blk["se_b2"])

    res = x.reshape(n, h * w, cp) if blk["residual"] else None
    out3 = se_proj_residual(yd3, s, blk["proj_w"], blk["proj_scale"], blk["proj_bias"], res)
    return out3.reshape(n, h, w, -1)


def efficientnet_forward(params, x_nchw):
    """Input: NCHW float32 (PyTorch convention). Output: logits [N, 1] float32."""
    x = jnp.transpose(x_nchw, (0, 2, 3, 1)).astype(jnp.bfloat16)   # NHWC bf16 stream
    n = x.shape[0]

    # conv_stem: 3x3 / stride 2 / pad 1 + bn1 + SiLU.
    kp = params["stem"]["w"].shape[0]
    pm, ho, wo = stem_patches(x, kp)
    y = matmul_bn_act(pm, params["stem"]["w"], params["stem"]["scale"],
                      params["stem"]["bias"], act="silu")
    x = y.reshape(n, ho, wo, -1)

    # Inverted-residual (MBConv) blocks.
    for blk in params["blocks"]:
        x = mbconv(blk, x)

    # conv_head (1x1) + bn2 + SiLU + global average pool, fused (head activation never hits HBM).
    nb, hb, wb, c = x.shape
    pooled = head_gap(x.reshape(nb, hb * wb, c), params["head"]["w"],
                      params["head"]["scale"], params["head"]["bias"])

    # classifier = Sequential(Dropout [identity at eval], Linear(in_features, 1)).
    logits = classifier_head(pooled, params["classifier"]["w"], params["classifier"]["b"])
    return logits[:, 0, :1]                                          # [N, 1] f32


# ----------------------------------------------------------------------------
# Deterministic synthetic parameters (raw, torch-like) and one-time prep/padding
# ----------------------------------------------------------------------------

def init_params(key):
    keys = iter(jax.random.split(key, 64))

    def nrm(shape, scale=0.1):
        return scale * jax.random.normal(next(keys), shape, dtype=jnp.float32)

    cin, cstem, chead = 3, 16, 128
    params = {
        "stem": {
            "w": nrm((cstem, cin, 3, 3)),                    # torch layout [Cout, Cin, 3, 3]
            "bn_scale": 1.0 + nrm((cstem,), 0.05),           # folded BN: gamma / sqrt(var+eps)
            "bn_bias": nrm((cstem,), 0.05),                  # folded BN: beta - mean*scale
        }
    }

    block_cfg = [(cstem, 24, 4, False), (24, 24, 4, True)]  # (cin, cout, expand, residual)
    blocks = []
    for cb, co, exp, residual in block_cfg:
        cmid = cb * exp
        crd = max(1, cb // 4)
        blocks.append({
            "exp_w": nrm((cb, cmid)),
            "exp_bn_scale": 1.0 + nrm((cmid,), 0.05),
            "exp_bn_bias": nrm((cmid,), 0.05),
            "dw_w": nrm((9, cmid)),
            "dw_bn_scale": 1.0 + nrm((cmid,), 0.05),
            "dw_bn_bias": nrm((cmid,), 0.05),
            "se_reduce_w": nrm((cmid, crd)),
            "se_reduce_b": nrm((crd,), 0.05),
            "se_expand_w": nrm((crd, cmid)),
            "se_expand_b": nrm((cmid,), 0.05),
            "proj_w": nrm((cmid, co)),
            "proj_bn_scale": 1.0 + nrm((co,), 0.05),
            "proj_bn_bias": nrm((co,), 0.05),
            "residual": residual,
        })
    params["blocks"] = blocks

    last_c = block_cfg[-1][1]
    params["head"] = {
        "w": nrm((last_c, chead)),
        "bn_scale": 1.0 + nrm((chead,), 0.05),
        "bn_bias": nrm((chead,), 0.05),
    }
    params["classifier"] = {"w": nrm((chead, 1)), "b": nrm((1,), 0.05)}
    return params


def prep_params(raw):
    """One-time layout prep: pad all channel dims to multiples of 128 (zero padding), fold
    layouts, cast matmul weights to bf16, reshape BN scale/bias to (1, C).  The hot path never
    re-pads, and zero-padded weight rows/columns keep padded activation lanes exactly 0."""
    def pad2(a, r, c):
        return jnp.pad(a, ((0, r - a.shape[0]), (0, c - a.shape[1])))

    def vec(a, c):
        a = a.reshape(1, -1)
        return jnp.pad(a, ((0, 0), (0, c - a.shape[1]))).astype(jnp.float32)

    p = {}
    w = raw["stem"]["w"]
    cout, cin = w.shape[0], w.shape[1]
    k = 9 * cin
    kp, np_ = _rup(k, LANE), _rup(cout, LANE)
    wm = jnp.transpose(w, (2, 3, 1, 0)).reshape(k, cout)     # K ordered (kh, kw, cin)
    p["stem"] = {"w": pad2(wm, kp, np_).astype(jnp.bfloat16),
                 "scale": vec(raw["stem"]["bn_scale"], np_),
                 "bias": vec(raw["stem"]["bn_bias"], np_)}

    blocks = []
    for blk in raw["blocks"]:
        cb, cmid = blk["exp_w"].shape
        crd = blk["se_reduce_w"].shape[1]
        co = blk["proj_w"].shape[1]
        cbp, cmp_, crdp, cop = _rup(cb, LANE), _rup(cmid, LANE), _rup(crd, LANE), _rup(co, LANE)
        blocks.append({
            "exp_w": pad2(blk["exp_w"], cbp, cmp_).astype(jnp.bfloat16),
            "exp_scale": vec(blk["exp_bn_scale"], cmp_),
            "exp_bias": vec(blk["exp_bn_bias"], cmp_),
            "dw_w": jnp.pad(blk["dw_w"], ((0, 0), (0, cmp_ - cmid))).astype(jnp.float32),
            "dw_scale": vec(blk["dw_bn_scale"], cmp_),
            "dw_bias": vec(blk["dw_bn_bias"], cmp_),
            "se_w1": pad2(blk["se_reduce_w"], cmp_, crdp).astype(jnp.bfloat16),
            "se_b1": vec(blk["se_reduce_b"], crdp),
            "se_w2": pad2(blk["se_expand_w"], crdp, cmp_).astype(jnp.bfloat16),
            "se_b2": vec(blk["se_expand_b"], cmp_),
            "proj_w": pad2(blk["proj_w"], cmp_, cop).astype(jnp.bfloat16),
            "proj_scale": vec(blk["proj_bn_scale"], cop),
            "proj_bias": vec(blk["proj_bn_bias"], cop),
            "residual": blk["residual"],
        })
    p["blocks"] = blocks

    lc, chead = raw["head"]["w"].shape
    lcp, cheadp = _rup(lc, LANE), _rup(chead, LANE)
    p["head"] = {"w": pad2(raw["head"]["w"], lcp, cheadp).astype(jnp.bfloat16),
                 "scale": vec(raw["head"]["bn_scale"], cheadp),
                 "bias": vec(raw["head"]["bn_bias"], cheadp)}

    p["classifier"] = {"w": pad2(raw["classifier"]["w"], cheadp, LANE).astype(jnp.bfloat16),
                       "b": vec(raw["classifier"]["b"], LANE)}
    return p


# ----------------------------------------------------------------------------
# Main
# ----------------------------------------------------------------------------

if __name__ == "__main__":
    key = jax.random.PRNGKey(0)
    pkey, xkey = jax.random.split(key)
    params = prep_params(init_params(pkey))

    # Small NCHW input consistent with an image classifier (3 channels).
    x = jax.random.normal(xkey, (2, 3, 16, 16), dtype=jnp.float32)

    fwd = jax.jit(lambda inp: efficientnet_forward(params, inp))
    logits = jax.block_until_ready(fwd(x))
    assert logits.shape == (2, 1) and logits.dtype == jnp.float32
    print("KERNEL_OK")
</pallas_src>

<mosaic_0001>
module attributes {stable_mosaic.version = 11 : i64} {
  func.func @_matmul_bn_act_kernel(%arg0: i32, %arg1: i32, %arg2: i32, %arg3: memref<128x128xbf16, #tpu.memory_space<vmem>>, %arg4: memref<128x128xbf16, #tpu.memory_space<vmem>>, %arg5: memref<1x128xf32, #tpu.memory_space<vmem>>, %arg6: memref<1x128xf32, #tpu.memory_space<vmem>>, %arg7: memref<128x128xbf16, #tpu.memory_space<vmem>>, %arg8: memref<128x128xf32, #tpu.memory_space<vmem>>) attributes {dimension_semantics = [#tpu.dimension_semantics<parallel>, #tpu.dimension_semantics<parallel>, #tpu.dimension_semantics<arbitrary>], iteration_bounds = array<i64: 1, 1, 1>, scalar_prefetch = 0 : i64, scratch_operands = 1 : i64, tpu.core_type = #tpu.core_type<tc>, window_params = [{transform_indices = @transform_0, window_bounds = array<i64: 128, 128>}, {transform_indices = @transform_1, window_bounds = array<i64: 128, 128>}, {transform_indices = @transform_2, window_bounds = array<i64: 1, 128>}, {transform_indices = @transform_3, window_bounds = array<i64: 1, 128>}, {transform_indices = @transform_4, window_bounds = array<i64: 128, 128>}]} {
    %c0_i32 = arith.constant 0 : i32
    %0 = arith.cmpi eq, %arg2, %c0_i32 : i32
    %1 = arith.extui %0 : i1 to i32
    %c0_i32_0 = arith.constant 0 : i32
    %2 = arith.cmpi ne, %1, %c0_i32_0 : i32
    scf.if %2 {
      %cst_10 = arith.constant 0.000000e+00 : f32
      %12 = vector.broadcast %cst_10 : f32 to vector<128x128xf32>
      %c0_11 = arith.constant 0 : index
      %c0_12 = arith.constant 0 : index
      %13 = vector.load %arg8[%c0_11, %c0_12] : memref<128x128xf32, #tpu.memory_space<vmem>>, vector<128x128xf32>
      tpu.vector_store %arg8[%c0_11, %c0_12], %12 {strides = array<i32>} : memref<128x128xf32, #tpu.memory_space<vmem>>, vector<128x128xf32>,
    } else {
    }
    %c0 = arith.constant 0 : index
    %c0_1 = arith.constant 0 : index
    %3 = vector.load %arg8[%c0, %c0_1] : memref<128x128xf32, #tpu.memory_space<vmem>>, vector<128x128xf32>
    %c0_2 = arith.constant 0 : index
    %c0_3 = arith.constant 0 : index
    %4 = vector.load %arg3[%c0_2, %c0_3] : memref<128x128xbf16, #tpu.memory_space<vmem>>, vector<128x128xbf16>
    %c0_4 = arith.constant 0 : index
    %c0_5 = arith.constant 0 : index
    %5 = vector.load %arg4[%c0_4, %c0_5] : memref<128x128xbf16, #tpu.memory_space<vmem>>, vector<128x128xbf16>
    %cst = arith.constant dense<0.000000e+00> : vector<128x128xf32>
    %6 = tpu.matmul %4, %5, %cst {dimension_numbers = #tpu.dot_dimension_numbers<[1], [0], [0], [1], [0, 0, 1, 1], [], []>} : vector<128x128xbf16>, vector<128x128xbf16>, vector<128x128xf32> -> vector<128x128xf32>
    %7 = arith.addf %3, %6 : vector<128x128xf32>
    %c0_6 = arith.constant 0 : index
    %c0_7 = arith.constant 0 : index
    %8 = vector.load %arg8[%c0_6, %c0_7] : memref<128x128xf32, #tpu.memory_space<vmem>>, vector<128x128xf32>
    tpu.vector_store %arg8[%c0_6, %c0_7], %7 {strides = array<i32>} : memref<128x128xf32, #tpu.memory_space<vmem>>, vector<128x128xf32>,
    %c0_i32_8 = arith.constant 0 : i32
    %9 = arith.cmpi eq, %arg2, %c0_i32_8 : i32
    %10 = arith.extui %9 : i1 to i32
    %c0_i32_9 = arith.constant 0 : i32
    %11 = arith.cmpi ne, %10, %c0_i32_9 : i32
    scf.if %11 {
      %c0_10 = arith.constant 0 : index
      %c0_11 = arith.constant 0 : index
      %12 = vector.load %arg8[%c0_10, %c0_11] : memref<128x128xf32, #tpu.memory_space<vmem>>, vector<128x128xf32>
      %c0_12 = arith.constant 0 : index
      %c0_13 = arith.constant 0 : index
      %13 = vector.load %arg5[%c0_12, %c0_13] : memref<1x128xf32, #tpu.memory_space<vmem>>, vector<1x128xf32>
      %14 = vector.broadcast %13 : vector<1x128xf32> to vector<128x128xf32>
      %15 = arith.mulf %12, %14 : vector<128x128xf32>
      %c0_14 = arith.constant 0 : index
      %c0_15 = arith.constant 0 : index
      %16 = vector.load %arg6[%c0_14, %c0_15] : memref<1x128xf32, #tpu.memory_space<vmem>>, vector<1x128xf32>
      %17 = vector.broadcast %16 : vector<1x128xf32> to vector<128x128xf32>
      %18 = arith.addf %15, %17 : vector<128x128xf32>
      %19 = arith.negf %18 : vector<128x128xf32>
      %20 = math.exp %19 : vector<128x128xf32>
      %cst_16 = arith.constant 1.000000e+00 : f32
      %21 = vector.broadcast %cst_16 : f32 to vector<128x128xf32>
      %22 = arith.addf %21, %20 : vector<128x128xf32>
      %23 = arith.divf %21, %22 : vector<128x128xf32>
      %24 = arith.mulf %18, %23 : vector<128x128xf32>
      %25 = arith.truncf %24 : vector<128x128xf32> to vector<128x128xbf16>
      %c0_17 = arith.constant 0 : index
      %c0_18 = arith.constant 0 : index
      %26 = vector.load %arg7[%c0_17, %c0_18] : memref<128x128xbf16, #tpu.memory_space<vmem>>, vector<128x128xbf16>
      tpu.vector_store %arg7[%c0_17, %c0_18], %25 {strides = array<i32>} : memref<128x128xbf16, #tpu.memory_space<vmem>>, vector<128x128xbf16>,
    } else {
    }
    return
  }
  func.func @transform_0(%arg0: i32, %arg1: i32, %arg2: i32) -> (i32, i32) {
    %c0_i32 = arith.constant 0 : i32
    return %arg0, %arg2 : i32, i32
  }
  func.func @transform_1(%arg0: i32, %arg1: i32, %arg2: i32) -> (i32, i32) {
    %c0_i32 = arith.constant 0 : i32
    return %arg2, %arg1 : i32, i32
  }
  func.func @transform_2(%arg0: i32, %arg1: i32, %arg2: i32) -> (i32, i32) {
    %c0_i32 = arith.constant 0 : i32
    %c0_i32_0 = arith.constant 0 : i32
    return %c0_i32, %arg1 : i32, i32
  }
  func.func @transform_3(%arg0: i32, %arg1: i32, %arg2: i32) -> (i32, i32) {
    %c0_i32 = arith.constant 0 : i32
    %c0_i32_0 = arith.constant 0 : i32
    return %c0_i32, %arg1 : i32, i32
  }
  func.func @transform_4(%arg0: i32, %arg1: i32, %arg2: i32) -> (i32, i32) {
    %c0_i32 = arith.constant 0 : i32
    return %arg0, %arg1 : i32, i32
  }
}

module attributes {stable_mosaic.version = 11 : i64} {
  func.func @_depthwise_kernel(%arg0: i32, %arg1: i32, %arg2: memref<1x8x8x128xbf16, #tpu.memory_space<vmem>>, %arg3: memref<9x128xf32, #tpu.memory_space<vmem>>, %arg4: memref<1x128xf32, #tpu.memory_space<vmem>>, %arg5: memref<1x128xf32, #tpu.memory_space<vmem>>, %arg6: memref<1x8x8x128xbf16, #tpu.memory_space<vmem>>, %arg7: memref<1x1x128xf32, #tpu.memory_space<vmem>>, %arg8: memref<10x10x128xf32, #tpu.memory_space<vmem>>) attributes {dimension_semantics = [#tpu.dimension_semantics<parallel>, #tpu.dimension_semantics<parallel>], iteration_bounds = array<i64: 2, 1>, scalar_prefetch = 0 : i64, scratch_operands = 1 : i64, tpu.core_type = #tpu.core_type<tc>, window_params = [{transform_indices = @transform_0, window_bounds = array<i64: 1, 8, 8, 128>}, {transform_indices = @transform_1, window_bounds = array<i64: 9, 128>}, {transform_indices = @transform_2, window_bounds = array<i64: 1, 128>}, {transform_indices = @transform_3, window_bounds = array<i64: 1, 128>}, {transform_indices = @transform_4, window_bounds = array<i64: 1, 8, 8, 128>}, {transform_indices = @transform_5, window_bounds = array<i64: 1, 1, 128>}]} {
    %cst = arith.constant 0.000000e+00 : f32
    %0 = vector.broadcast %cst : f32 to vector<1x10x128xf32>
    %c0 = arith.constant 0 : index
    %c0_0 = arith.constant 0 : index
    %c0_1 = arith.constant 0 : index
    %1 = vector.load %arg8[%c0, %c0_0, %c0_1] : memref<10x10x128xf32, #tpu.memory_space<vmem>>, vector<1x10x128xf32>
    tpu.vector_store %arg8[%c0, %c0_0, %c0_1], %0 {strides = array<i32>} : memref<10x10x128xf32, #tpu.memory_space<vmem>>, vector<1x10x128xf32>,
    %cst_2 = arith.constant 0.000000e+00 : f32
    %2 = vector.broadcast %cst_2 : f32 to vector<1x10x128xf32>
    %c9 = arith.constant 9 : index
    %c0_3 = arith.constant 0 : index
    %c0_4 = arith.constant 0 : index
    %3 = vector.load %arg8[%c9, %c0_3, %c0_4] : memref<10x10x128xf32, #tpu.memory_space<vmem>>, vector<1x10x128xf32>
    tpu.vector_store %arg8[%c9, %c0_3, %c0_4], %2 {strides = array<i32>} : memref<10x10x128xf32, #tpu.memory_space<vmem>>, vector<1x10x128xf32>,
    %cst_5 = arith.constant 0.000000e+00 : f32
    %4 = vector.broadcast %cst_5 : f32 to vector<8x1x128xf32>
    %c1 = arith.constant 1 : index
    %c0_6 = arith.constant 0 : index
    %c0_7 = arith.constant 0 : index
    %5 = vector.load %arg8[%c1, %c0_6, %c0_7] : memref<10x10x128xf32, #tpu.memory_space<vmem>>, vector<8x1x128xf32>
    tpu.vector_store %arg8[%c1, %c0_6, %c0_7], %4 {strides = array<i32>} : memref<10x10x128xf32, #tpu.memory_space<vmem>>, vector<8x1x128xf32>,
    %cst_8 = arith.constant 0.000000e+00 : f32
    %6 = vector.broadcast %cst_8 : f32 to vector<8x1x128xf32>
    %c1_9 = arith.constant 1 : index
    %c9_10 = arith.constant 9 : index
    %c0_11 = arith.constant 0 : index
    %7 = vector.load %arg8[%c1_9, %c9_10, %c0_11] : memref<10x10x128xf32, #tpu.memory_space<vmem>>, vector<8x1x128xf32>
    tpu.vector_store %arg8[%c1_9, %c9_10, %c0_11], %6 {strides = array<i32>} : memref<10x10x128xf32, #tpu.memory_space<vmem>>, vector<8x1x128xf32>,
    %c0_12 = arith.constant 0 : index
    %c0_13 = arith.constant 0 : index
    %c0_14 = arith.constant 0 : index
    %c0_15 = arith.constant 0 : index
    %8 = vector.load %arg2[%c0_12, %c0_13, %c0_14, %c0_15] : memref<1x8x8x128xbf16, #tpu.memory_space<vmem>>, vector<1x8x8x128xbf16>
    %9 = vector.shape_cast %8 : vector<1x8x8x128xbf16> to vector<8x8x128xbf16>
    %10 = arith.extf %9 : vector<8x8x128xbf16> to vector<8x8x128xf32>
    %c1_16 = arith.constant 1 : index
    %c1_17 = arith.constant 1 : index
    %c0_18 = arith.constant 0 : index
    %11 = vector.load %arg8[%c1_16, %c1_17, %c0_18] : memref<10x10x128xf32, #tpu.memory_space<vmem>>, vector<8x8x128xf32>
    tpu.vector_store %arg8[%c1_16, %c1_17, %c0_18], %10 {strides = array<i32>} : memref<10x10x128xf32, #tpu.memory_space<vmem>>, vector<8x8x128xf32>,
    %c0_19 = arith.constant 0 : index
    %c0_20 = arith.constant 0 : index
    %12 = vector.load %arg3[%c0_19, %c0_20] : memref<9x128xf32, #tpu.memory_space<vmem>>, vector<9x128xf32>
    %c0_21 = arith.constant 0 : index
    %c0_22 = arith.constant 0 : index
    %c0_23 = arith.constant 0 : index
    %13 = vector.load %arg8[%c0_21, %c0_22, %c0_23] : memref<10x10x128xf32, #tpu.memory_space<vmem>>, vector<8x8x128xf32>
    %14 = vector.extract_strided_slice %12 {offsets = [0, 0], sizes = [1, 128], strides = [1, 1]} : vector<9x128xf32> to vector<1x128xf32>
    %15 = vector.shape_cast %14 : vector<1x128xf32> to vector<128xf32>
    %16 = vector.shape_cast %15 : vector<128xf32> to vector<1x1x128xf32>
    %17 = vector.broadcast %16 : vector<1x1x128xf32> to vector<8x8x128xf32>
    %18 = arith.mulf %13, %17 : vector<8x8x128xf32>
    %c0_24 = arith.constant 0 : index
    %c1_25 = arith.constant 1 : index
    %c0_26 = arith.constant 0 : index
    %19 = vector.load %arg8[%c0_24, %c1_25, %c0_26] : memref<10x10x128xf32, #tpu.memory_space<vmem>>, vector<8x8x128xf32>
    %20 = vector.extract_strided_slice %12 {offsets = [1, 0], sizes = [1, 128], strides = [1, 1]} : vector<9x128xf32> to vector<1x128xf32>
    %21 = vector.shape_cast %20 : vector<1x128xf32> to vector<128xf32>
    %22 = vector.shape_cast %21 : vector<128xf32> to vector<1x1x128xf32>
    %23 = vector.broadcast %22 : vector<1x1x128xf32> to vector<8x8x128xf32>
    %24 = arith.mulf %19, %23 : vector<8x8x128xf32>
    %25 = arith.addf %18, %24 : vector<8x8x128xf32>
    %c0_27 = arith.constant 0 : index
    %c2 = arith.constant 2 : index
    %c0_28 = arith.constant 0 : index
    %26 = vector.load %arg8[%c0_27, %c2, %c0_28] : memref<10x10x128xf32, #tpu.memory_space<vmem>>, vector<8x8x128xf32>
    %27 = vector.extract_strided_slice %12 {offsets = [2, 0], sizes = [1, 128], strides = [1, 1]} : vector<9x128xf32> to vector<1x128xf32>
    %28 = vector.shape_cast %27 : vector<1x128xf32> to vector<128xf32>
    %29 = vector.shape_cast %28 : vector<128xf32> to vector<1x1x128xf32>
    %30 = vector.broadcast %29 : vector<1x1x128xf32> to vector<8x8x128xf32>
    %31 = arith.mulf %26, %30 : vector<8x8x128xf32>
    %32 = arith.addf %25, %31 : vector<8x8x128xf32>
    %c1_29 = arith.constant 1 : index
    %c0_30 = arith.constant 0 : index
    %c0_31 = arith.constant 0 : index
    %33 = vector.load %arg8[%c1_29, %c0_30, %c0_31] : memref<10x10x128xf32, #tpu.memory_space<vmem>>, vector<8x8x128xf32>
    %34 = vector.extract_strided_slice %12 {offsets = [3, 0], sizes = [1, 128], strides = [1, 1]} : vector<9x128xf32> to vector<1x128xf32>
    %35 = vector.shape_cast %34 : vector<1x128xf32> to vector<128xf32>
    %36 = vector.shape_cast %35 : vector<128xf32> to vector<1x1x128xf32>
    %37 = vector.broadcast %36 : vector<1x1x128xf32> to vector<8x8x128xf32>
    %38 = arith.mulf %33, %37 : vector<8x8x128xf32>
    %39 = arith.addf %32, %38 : vector<8x8x128xf32>
    %c1_32 = arith.constant 1 : index
    %c1_33 = arith.constant 1 : index
    %c0_34 = arith.constant 0 : index
    %40 = vector.load %arg8[%c1_32, %c1_33, %c0_34] : memref<10x10x128xf32, #tpu.memory_space<vmem>>, vector<8x8x128xf32>
    %41 = vector.extract_strided_slice %12 {offsets = [4, 0], sizes = [1, 128], strides = [1, 1]} : vector<9x128xf32> to vector<1x128xf32>
    %42 = vector.shape_cast %41 : vector<1x128xf32> to vector<128xf32>
    %43 = vector.shape_cast %42 : vector<128xf32> to vector<1x1x128xf32>
    %44 = vector.broadcast %43 : vector<1x1x128xf32> to vector<8x8x128xf32>
    %45 = arith.mulf %40, %44 : vector<8x8x128xf32>
    %46 = arith.addf %39, %45 : vector<8x8x128xf32>
    %c1_35 = arith.constant 1 : index
    %c2_36 = arith.constant 2 : index
    %c0_37 = arith.constant 0 : index
    %47 = vector.load %arg8[%c1_35, %c2_36, %c0_37] : memref<10x10x128xf32, #tpu.memory_space<vmem>>, vector<8x8x128xf32>
    %48 = vector.extract_strided_slice %12 {offsets = [5, 0], sizes = [1, 128], strides = [1, 1]} : vector<9x128xf32> to vector<1x128xf32>
    %49 = vector.shape_cast %48 : vector<1x128xf32> to vector<128xf32>
    %50 = vector.shape_cast %49 : vector<128xf32> to vector<1x1x128xf32>
    %51 = vector.broadcast %50 : vector<1x1x128xf32> to vector<8x8x128xf32>
    %52 = arith.mulf %47, %51 : vector<8x8x128xf32>
    %53 = arith.addf %46, %52 : vector<8x8x128xf32>
    %c2_38 = arith.constant 2 : index
    %c0_39 = arith.constant 0 : index
    %c0_40 = arith.constant 0 : index
    %54 = vector.load %arg8[%c2_38, %c0_39, %c0_40] : memref<10x10x128xf32, #tpu.memory_space<vmem>>, vector<8x8x128xf32>
    %55 = vector.extract_strided_slice %12 {offsets = [6, 0], sizes = [1, 128], strides = [1, 1]} : vector<9x128xf32> to vector<1x128xf32>
    %56 = vector.shape_cast %55 : vector<1x128xf32> to vector<128xf32>
    %57 = vector.shape_cast %56 : vector<128xf32> to vector<1x1x128xf32>
    %58 = vector.broadcast %57 : vector<1x1x128xf32> to vector<8x8x128xf32>
    %59 = arith.mulf %54, %58 : vector<8x8x128xf32>
    %60 = arith.addf %53, %59 : vector<8x8x128xf32>
    %c2_41 = arith.constant 2 : index
    %c1_42 = arith.constant 1 : index
    %c0_43 = arith.constant 0 : index
    %61 = vector.load %arg8[%c2_41, %c1_42, %c0_43] : memref<10x10x128xf32, #tpu.memory_space<vmem>>, vector<8x8x128xf32>
    %62 = vector.extract_strided_slice %12 {offsets = [7, 0], sizes = [1, 128], strides = [1, 1]} : vector<9x128xf32> to vector<1x128xf32>
    %63 = vector.shape_cast %62 : vector<1x128xf32> to vector<128xf32>
    %64 = vector.shape_cast %63 : vector<128xf32> to vector<1x1x128xf32>
    %65 = vector.broadcast %64 : vector<1x1x128xf32> to vector<8x8x128xf32>
    %66 = arith.mulf %61, %65 : vector<8x8x128xf32>
    %67 = arith.addf %60, %66 : vector<8x8x128xf32>
    %c2_44 = arith.constant 2 : index
    %c2_45 = arith.constant 2 : index
    %c0_46 = arith.constant 0 : index
    %68 = vector.load %arg8[%c2_44, %c2_45, %c0_46] : memref<10x10x128xf32, #tpu.memory_space<vmem>>, vector<8x8x128xf32>
    %69 = vector.extract_strided_slice %12 {offsets = [8, 0], sizes = [1, 128], strides = [1, 1]} : vector<9x128xf32> to vector<1x128xf32>
    %70 = vector.shape_cast %69 : vector<1x128xf32> to vector<128xf32>
    %71 = vector.shape_cast %70 : vector<128xf32> to vector<1x1x128xf32>
    %72 = vector.broadcast %71 : vector<1x1x128xf32> to vector<8x8x128xf32>
    %73 = arith.mulf %68, %72 : vector<8x8x128xf32>
    %74 = arith.addf %67, %73 : vector<8x8x128xf32>
    %c0_47 = arith.constant 0 : index
    %c0_48 = arith.constant 0 : index
    %75 = vector.load %arg4[%c0_47, %c0_48] : memref<1x128xf32, #tpu.memory_space<vmem>>, vector<1x128xf32>
    %76 = vector.shape_cast %75 : vector<1x128xf32> to vector<128xf32>
    %77 = vector.shape_cast %76 : vector<128xf32> to vector<1x1x128xf32>
    %78 = vector.broadcast %77 : vector<1x1x128xf32> to vector<8x8x128xf32>
    %79 = arith.mulf %74, %78 : vector<8x8x128xf32>
    %c0_49 = arith.constant 0 : index
    %c0_50 = arith.constant 0 : index
    %80 = vector.load %arg5[%c0_49, %c0_50] : memref<1x128xf32, #tpu.memory_space<vmem>>, vector<1x128xf32>
    %81 = vector.shape_cast %80 : vector<1x128xf32> to vector<128xf32>
    %82 = vector.shape_cast %81 : vector<128xf32> to vector<1x1x128xf32>
    %83 = vector.broadcast %82 : vector<1x1x128xf32> to vector<8x8x128xf32>
    %84 = arith.addf %79, %83 : vector<8x8x128xf32>
    %85 = arith.negf %84 : vector<8x8x128xf32>
    %86 = math.exp %85 : vector<8x8x128xf32>
    %cst_51 = arith.constant 1.000000e+00 : f32
    %87 = vector.broadcast %cst_51 : f32 to vector<8x8x128xf32>
    %88 = arith.addf %87, %86 : vector<8x8x128xf32>
    %89 = arith.divf %87, %88 : vector<8x8x128xf32>
    %90 = arith.mulf %84, %89 : vector<8x8x128xf32>
    %91 = arith.truncf %90 : vector<8x8x128xf32> to vector<8x8x128xbf16>
    %c0_52 = arith.constant 0 : index
    %c0_53 = arith.constant 0 : index
    %c0_54 = arith.constant 0 : index
    %c0_55 = arith.constant 0 : index
    %92 = vector.load %arg6[%c0_52, %c0_53, %c0_54, %c0_55] : memref<1x8x8x128xbf16, #tpu.memory_space<vmem>>, vector<1x8x8x128xbf16>
    %93 = vector.shape_cast %92 : vector<1x8x8x128xbf16> to vector<8x8x128xbf16>
    %94 = vector.shape_cast %91 : vector<8x8x128xbf16> to vector<1x8x8x128xbf16>
    tpu.vector_store %arg6[%c0_52, %c0_53, %c0_54, %c0_55], %94 {strides = array<i32>} : memref<1x8x8x128xbf16, #tpu.memory_space<vmem>>, vector<1x8x8x128xbf16>,
    %cst_56 = arith.constant dense<0.000000e+00> : vector<8x128xf32>
    %95 = vector.multi_reduction <add>, %90, %cst_56 [0] : vector<8x8x128xf32> to vector<8x128xf32>
    %cst_57 = arith.constant dense<0.000000e+00> : vector<128xf32>
    %96 = vector.multi_reduction <add>, %95, %cst_57 [0] : vector<8x128xf32> to vector<128xf32>
    %97 = vector.shape_cast %96 : vector<128xf32> to vector<1x128xf32>
    %cst_58 = arith.constant 1.562500e-02 : f32
    %98 = vector.broadcast %cst_58 : f32 to vector<1x128xf32>
    %99 = arith.mulf %97, %98 : vector<1x128xf32>
    %c0_59 = arith.constant 0 : index
    %c0_60 = arith.constant 0 : index
    %c0_61 = arith.constant 0 : index
    %100 = vector.load %arg7[%c0_59, %c0_60, %c0_61] : memref<1x1x128xf32, #tpu.memory_space<vmem>>, vector<1x1x128xf32>
    %101 = vector.shape_cast %100 : vector<1x1x128xf32> to vector<1x128xf32>
    %102 = vector.shape_cast %99 : vector<1x128xf32> to vector<1x1x128xf32>
    tpu.vector_store %arg7[%c0_59, %c0_60, %c0_61], %102 {strides = array<i32>} : memref<1x1x128xf32, #tpu.memory_space<vmem>>, vector<1x1x128xf32>,
    return
  }
  func.func @transform_0(%arg0: i32, %arg1: i32) -> (i32, i32, i32, i32) {
    %c0_i32 = arith.constant 0 : i32
    %c0_i32_0 = arith.constant 0 : i32
    %c0_i32_1 = arith.constant 0 : i32
    return %arg0, %c0_i32, %c0_i32_0, %arg1 : i32, i32, i32, i32
  }
  func.func @transform_1(%arg0: i32, %arg1: i32) -> (i32, i32) {
    %c0_i32 = arith.constant 0 : i32
    %c0_i32_0 = arith.constant 0 : i32
    return %c0_i32, %arg1 : i32, i32
  }
  func.func @transform_2(%arg0: i32, %arg1: i32) -> (i32, i32) {
    %c0_i32 = arith.constant 0 : i32
    %c0_i32_0 = arith.constant 0 : i32
    return %c0_i32, %arg1 : i32, i32
  }
  func.func @transform_3(%arg0: i32, %arg1: i32) -> (i32, i32) {
    %c0_i32 = arith.constant 0 : i32
    %c0_i32_0 = arith.constant 0 : i32
    return %c0_i32, %arg1 : i32, i32
  }
  func.func @transform_4(%arg0: i32, %arg1: i32) -> (i32, i32, i32, i32) {
    %c0_i32 = arith.constant 0 : i32
    %c0_i32_0 = arith.constant 0 : i32
    %c0_i32_1 = arith.constant 0 : i32
    return %arg0, %c0_i32, %c0_i32_0, %arg1 : i32, i32, i32, i32
  }
  func.func @transform_5(%arg0: i32, %arg1: i32) -> (i32, i32, i32) {
    %c0_i32 = arith.constant 0 : i32
    %c0_i32_0 = arith.constant 0 : i32
    return %arg0, %c0_i32, %arg1 : i32, i32, i32
  }
}

module attributes {stable_mosaic.version = 11 : i64} {
  func.func @_se_gate_kernel(%arg0: i32, %arg1: memref<1x1x128xf32, #tpu.memory_space<vmem>>, %arg2: memref<128x128xbf16, #tpu.memory_space<vmem>>, %arg3: memref<1x128xf32, #tpu.memory_space<vmem>>, %arg4: memref<128x128xbf16, #tpu.memory_space<vmem>>, %arg5: memref<1x128xf32, #tpu.memory_space<vmem>>, %arg6: memref<1x1x128xbf16, #tpu.memory_space<vmem>>) attributes {dimension_semantics = [#tpu.dimension_semantics<parallel>], iteration_bounds = array<i64: 2>, scalar_prefetch = 0 : i64, scratch_operands = 0 : i64, tpu.core_type = #tpu.core_type<tc>, window_params = [{transform_indices = @transform_0, window_bounds = array<i64: 1, 1, 128>}, {pipeline_mode = #tpu.pipeline_mode<synchronous>, transform_indices = @transform_1, window_bounds = array<i64: 128, 128>}, {pipeline_mode = #tpu.pipeline_mode<synchronous>, transform_indices = @transform_2, window_bounds = array<i64: 1, 128>}, {pipeline_mode = #tpu.pipeline_mode<synchronous>, transform_indices = @transform_3, window_bounds = array<i64: 128, 128>}, {pipeline_mode = #tpu.pipeline_mode<synchronous>, transform_indices = @transform_4, window_bounds = array<i64: 1, 128>}, {transform_indices = @transform_5, window_bounds = array<i64: 1, 1, 128>}]} {
    %c0 = arith.constant 0 : index
    %c0_0 = arith.constant 0 : index
    %c0_1 = arith.constant 0 : index
    %0 = vector.load %arg1[%c0, %c0_0, %c0_1] : memref<1x1x128xf32, #tpu.memory_space<vmem>>, vector<1x1x128xf32>
    %1 = vector.shape_cast %0 : vector<1x1x128xf32> to vector<1x128xf32>
    %2 = arith.truncf %1 : vector<1x128xf32> to vector<1x128xbf16>
    %c0_2 = arith.constant 0 : index
    %c0_3 = arith.constant 0 : index
    %3 = vector.load %arg2[%c0_2, %c0_3] : memref<128x128xbf16, #tpu.memory_space<vmem>>, vector<128x128xbf16>
    %cst = arith.constant dense<0.000000e+00> : vector<1x128xf32>
    %4 = tpu.matmul %2, %3, %cst {dimension_numbers = #tpu.dot_dimension_numbers<[1], [0], [0], [1], [0, 0, 1, 1], [], []>} : vector<1x128xbf16>, vector<128x128xbf16>, vector<1x128xf32> -> vector<1x128xf32>
    %c0_4 = arith.constant 0 : index
    %c0_5 = arith.constant 0 : index
    %5 = vector.load %arg3[%c0_4, %c0_5] : memref<1x128xf32, #tpu.memory_space<vmem>>, vector<1x128xf32>
    %6 = arith.addf %4, %5 : vector<1x128xf32>
    %7 = arith.negf %6 : vector<1x128xf32>
    %8 = math.exp %7 : vector<1x128xf32>
    %cst_6 = arith.constant 1.000000e+00 : f32
    %9 = vector.broadcast %cst_6 : f32 to vector<1x128xf32>
    %10 = arith.addf %9, %8 : vector<1x128xf32>
    %11 = arith.divf %9, %10 : vector<1x128xf32>
    %12 = arith.mulf %6, %11 : vector<1x128xf32>
    %13 = arith.truncf %12 : vector<1x128xf32> to vector<1x128xbf16>
    %c0_7 = arith.constant 0 : index
    %c0_8 = arith.constant 0 : index
    %14 = vector.load %arg4[%c0_7, %c0_8] : memref<128x128xbf16, #tpu.memory_space<vmem>>, vector<128x128xbf16>
    %cst_9 = arith.constant dense<0.000000e+00> : vector<1x128xf32>
    %15 = tpu.matmul %13, %14, %cst_9 {dimension_numbers = #tpu.dot_dimension_numbers<[1], [0], [0], [1], [0, 0, 1, 1], [], []>} : vector<1x128xbf16>, vector<128x128xbf16>, vector<1x128xf32> -> vector<1x128xf32>
    %c0_10 = arith.constant 0 : index
    %c0_11 = arith.constant 0 : index
    %16 = vector.load %arg5[%c0_10, %c0_11] : memref<1x128xf32, #tpu.memory_space<vmem>>, vector<1x128xf32>
    %17 = arith.addf %15, %16 : vector<1x128xf32>
    %18 = arith.negf %17 : vector<1x128xf32>
    %19 = math.exp %18 : vector<1x128xf32>
    %cst_12 = arith.constant 1.000000e+00 : f32
    %20 = vector.broadcast %cst_12 : f32 to vector<1x128xf32>
    %21 = arith.addf %20, %19 : vector<1x128xf32>
    %22 = arith.divf %20, %21 : vector<1x128xf32>
    %23 = arith.truncf %22 : vector<1x128xf32> to vector<1x128xbf16>
    %c0_13 = arith.constant 0 : index
    %c0_14 = arith.constant 0 : index
    %c0_15 = arith.constant 0 : index
    %24 = vector.load %arg6[%c0_13, %c0_14, %c0_15] : memref<1x1x128xbf16, #tpu.memory_space<vmem>>, vector<1x1x128xbf16>
    %25 = vector.shape_cast %24 : vector<1x1x128xbf16> to vector<1x128xbf16>
    %26 = vector.shape_cast %23 : vector<1x128xbf16> to vector<1x1x128xbf16>
    tpu.vector_store %arg6[%c0_13, %c0_14, %c0_15], %26 {strides = array<i32>} : memref<1x1x128xbf16, #tpu.memory_space<vmem>>, vector<1x1x128xbf16>,
    return
  }
  func.func @transform_0(%arg0: i32) -> (i32, i32, i32) {
    %c0_i32 = arith.constant 0 : i32
    %c0_i32_0 = arith.constant 0 : i32
    %c0_i32_1 = arith.constant 0 : i32
    return %arg0, %c0_i32, %c0_i32_0 : i32, i32, i32
  }
  func.func @transform_1(%arg0: i32) -> (i32, i32) {
    %c0_i32 = arith.constant 0 : i32
    %c0_i32_0 = arith.constant 0 : i32
    %c0_i32_1 = arith.constant 0 : i32
    return %c0_i32, %c0_i32_0 : i32, i32
  }
  func.func @transform_2(%arg0: i32) -> (i32, i32) {
    %c0_i32 = arith.constant 0 : i32
    %c0_i32_0 = arith.constant 0 : i32
    %c0_i32_1 = arith.constant 0 : i32
    return %c0_i32, %c0_i32_0 : i32, i32
  }
  func.func @transform_3(%arg0: i32) -> (i32, i32) {
    %c0_i32 = arith.constant 0 : i32
    %c0_i32_0 = arith.constant 0 : i32
    %c0_i32_1 = arith.constant 0 : i32
    return %c0_i32, %c0_i32_0 : i32, i32
  }
  func.func @transform_4(%arg0: i32) -> (i32, i32) {
    %c0_i32 = arith.constant 0 : i32
    %c0_i32_0 = arith.constant 0 : i32
    %c0_i32_1 = arith.constant 0 : i32
    return %c0_i32, %c0_i32_0 : i32, i32
  }
  func.func @transform_5(%arg0: i32) -> (i32, i32, i32) {
    %c0_i32 = arith.constant 0 : i32
    %c0_i32_0 = arith.constant 0 : i32
    %c0_i32_1 = arith.constant 0 : i32
    return %arg0, %c0_i32, %c0_i32_0 : i32, i32, i32
  }
}

module attributes {stable_mosaic.version = 11 : i64} {
  func.func @_se_proj_kernel(%arg0: i32, %arg1: i32, %arg2: i32, %arg3: i32, %arg4: memref<1x64x128xbf16, #tpu.memory_space<vmem>>, %arg5: memref<1x1x128xbf16, #tpu.memory_space<vmem>>, %arg6: memref<128x128xbf16, #tpu.memory_space<vmem>>, %arg7: memref<1x128xf32, #tpu.memory_space<vmem>>, %arg8: memref<1x128xf32, #tpu.memory_space<vmem>>, %arg9: memref<1x64x128xbf16, #tpu.memory_space<vmem>>, %arg10: memref<64x128xf32, #tpu.memory_space<vmem>>) attributes {dimension_semantics = [#tpu.dimension_semantics<parallel>, #tpu.dimension_semantics<parallel>, #tpu.dimension_semantics<parallel>, #tpu.dimension_semantics<arbitrary>], iteration_bounds = array<i64: 2, 1, 1, 1>, scalar_prefetch = 0 : i64, scratch_operands = 1 : i64, tpu.core_type = #tpu.core_type<tc>, window_params = [{transform_indices = @transform_0, window_bounds = array<i64: 1, 64, 128>}, {transform_indices = @transform_1, window_bounds = array<i64: 1, 1, 128>}, {transform_indices = @transform_2, window_bounds = array<i64: 128, 128>}, {transform_indices = @transform_3, window_bounds = array<i64: 1, 128>}, {transform_indices = @transform_4, window_bounds = array<i64: 1, 128>}, {transform_indices = @transform_5, window_bounds = array<i64: 1, 64, 128>}]} {
    %c0_i32 = arith.constant 0 : i32
    %0 = arith.cmpi eq, %arg3, %c0_i32 : i32
    %1 = arith.extui %0 : i1 to i32
    %c0_i32_0 = arith.constant 0 : i32
    %2 = arith.cmpi ne, %1, %c0_i32_0 : i32
    scf.if %2 {
      %cst_14 = arith.constant 0.000000e+00 : f32
      %17 = vector.broadcast %cst_14 : f32 to vector<64x128xf32>
      %c0_15 = arith.constant 0 : index
      %c0_16 = arith.constant 0 : index
      %18 = vector.load %arg10[%c0_15, %c0_16] : memref<64x128xf32, #tpu.memory_space<vmem>>, vector<64x128xf32>
      tpu.vector_store %arg10[%c0_15, %c0_16], %17 {strides = array<i32>} : memref<64x128xf32, #tpu.memory_space<vmem>>, vector<64x128xf32>,
    } else {
    }
    %c0 = arith.constant 0 : index
    %c0_1 = arith.constant 0 : index
    %c0_2 = arith.constant 0 : index
    %3 = vector.load %arg4[%c0, %c0_1, %c0_2] : memref<1x64x128xbf16, #tpu.memory_space<vmem>>, vector<1x64x128xbf16>
    %4 = vector.shape_cast %3 : vector<1x64x128xbf16> to vector<64x128xbf16>
    %c0_3 = arith.constant 0 : index
    %c0_4 = arith.constant 0 : index
    %c0_5 = arith.constant 0 : index
    %5 = vector.load %arg5[%c0_3, %c0_4, %c0_5] : memref<1x1x128xbf16, #tpu.memory_space<vmem>>, vector<1x1x128xbf16>
    %6 = vector.shape_cast %5 : vector<1x1x128xbf16> to vector<1x128xbf16>
    %7 = vector.broadcast %6 : vector<1x128xbf16> to vector<64x128xbf16>
    %8 = arith.mulf %4, %7 : vector<64x128xbf16>
    %c0_6 = arith.constant 0 : index
    %c0_7 = arith.constant 0 : index
    %9 = vector.load %arg10[%c0_6, %c0_7] : memref<64x128xf32, #tpu.memory_space<vmem>>, vector<64x128xf32>
    %c0_8 = arith.constant 0 : index
    %c0_9 = arith.constant 0 : index
    %10 = vector.load %arg6[%c0_8, %c0_9] : memref<128x128xbf16, #tpu.memory_space<vmem>>, vector<128x128xbf16>
    %cst = arith.constant dense<0.000000e+00> : vector<64x128xf32>
    %11 = tpu.matmul %8, %10, %cst {dimension_numbers = #tpu.dot_dimension_numbers<[1], [0], [0], [1], [0, 0, 1, 1], [], []>} : vector<64x128xbf16>, vector<128x128xbf16>, vector<64x128xf32> -> vector<64x128xf32>
    %12 = arith.addf %9, %11 : vector<64x128xf32>
    %c0_10 = arith.constant 0 : index
    %c0_11 = arith.constant 0 : index
    %13 = vector.load %arg10[%c0_10, %c0_11] : memref<64x128xf32, #tpu.memory_space<vmem>>, vector<64x128xf32>
    tpu.vector_store %arg10[%c0_10, %c0_11], %12 {strides = array<i32>} : memref<64x128xf32, #tpu.memory_space<vmem>>, vector<64x128xf32>,
    %c0_i32_12 = arith.constant 0 : i32
    %14 = arith.cmpi eq, %arg3, %c0_i32_12 : i32
    %15 = arith.extui %14 : i1 to i32
    %c0_i32_13 = arith.constant 0 : i32
    %16 = arith.cmpi ne, %15, %c0_i32_13 : i32
    scf.if %16 {
      %c0_14 = arith.constant 0 : index
      %c0_15 = arith.constant 0 : index
      %17 = vector.load %arg10[%c0_14, %c0_15] : memref<64x128xf32, #tpu.memory_space<vmem>>, vector<64x128xf32>
      %c0_16 = arith.constant 0 : index
      %c0_17 = arith.constant 0 : index
      %18 = vector.load %arg7[%c0_16, %c0_17] : memref<1x128xf32, #tpu.memory_space<vmem>>, vector<1x128xf32>
      %19 = vector.broadcast %18 : vector<1x128xf32> to vector<64x128xf32>
      %20 = arith.mulf %17, %19 : vector<64x128xf32>
      %c0_18 = arith.constant 0 : index
      %c0_19 = arith.constant 0 : index
      %21 = vector.load %arg8[%c0_18, %c0_19] : memref<1x128xf32, #tpu.memory_space<vmem>>, vector<1x128xf32>
      %22 = vector.broadcast %21 : vector<1x128xf32> to vector<64x128xf32>
      %23 = arith.addf %20, %22 : vector<64x128xf32>
      %24 = arith.truncf %23 : vector<64x128xf32> to vector<64x128xbf16>
      %c0_20 = arith.constant 0 : index
      %c0_21 = arith.constant 0 : index
      %c0_22 = arith.constant 0 : index
      %25 = vector.load %arg9[%c0_20, %c0_21, %c0_22] : memref<1x64x128xbf16, #tpu.memory_space<vmem>>, vector<1x64x128xbf16>
      %26 = vector.shape_cast %25 : vector<1x64x128xbf16> to vector<64x128xbf16>
      %27 = vector.shape_cast %24 : vector<64x128xbf16> to vector<1x64x128xbf16>
      tpu.vector_store %arg9[%c0_20, %c0_21, %c0_22], %27 {strides = array<i32>} : memref<1x64x128xbf16, #tpu.memory_space<vmem>>, vector<1x64x128xbf16>,
    } else {
    }
    return
  }
  func.func @transform_0(%arg0: i32, %arg1: i32, %arg2: i32, %arg3: i32) -> (i32, i32, i32) {
    %c0_i32 = arith.constant 0 : i32
    return %arg0, %arg1, %arg3 : i32, i32, i32
  }
  func.func @transform_1(%arg0: i32, %arg1: i32, %arg2: i32, %arg3: i32) -> (i32, i32, i32) {
    %c0_i32 = arith.constant 0 : i32
    %c0_i32_0 = arith.constant 0 : i32
    return %arg0, %c0_i32, %arg3 : i32, i32, i32
  }
  func.func @transform_2(%arg0: i32, %arg1: i32, %arg2: i32, %arg3: i32) -> (i32, i32) {
    %c0_i32 = arith.constant 0 : i32
    return %arg3, %arg2 : i32, i32
  }
  func.func @transform_3(%arg0: i32, %arg1: i32, %arg2: i32, %arg3: i32) -> (i32, i32) {
    %c0_i32 = arith.constant 0 : i32
    %c0_i32_0 = arith.constant 0 : i32
    return %c0_i32, %arg2 : i32, i32
  }
  func.func @transform_4(%arg0: i32, %arg1: i32, %arg2: i32, %arg3: i32) -> (i32, i32) {
    %c0_i32 = arith.constant 0 : i32
    %c0_i32_0 = arith.constant 0 : i32
    return %c0_i32, %arg2 : i32, i32
  }
  func.func @transform_5(%arg0: i32, %arg1: i32, %arg2: i32, %arg3: i32) -> (i32, i32, i32) {
    %c0_i32 = arith.constant 0 : i32
    return %arg0, %arg1, %arg2 : i32, i32, i32
  }
}

module attributes {stable_mosaic.version = 11 : i64} {
  func.func @_classifier_kernel(%arg0: i32, %arg1: memref<1x1x128xf32, #tpu.memory_space<vmem>>, %arg2: memref<128x128xbf16, #tpu.memory_space<vmem>>, %arg3: memref<1x128xf32, #tpu.memory_space<vmem>>, %arg4: memref<1x1x128xf32, #tpu.memory_space<vmem>>) attributes {dimension_semantics = [#tpu.dimension_semantics<parallel>], iteration_bounds = array<i64: 2>, scalar_prefetch = 0 : i64, scratch_operands = 0 : i64, tpu.core_type = #tpu.core_type<tc>, window_params = [{transform_indices = @transform_0, window_bounds = array<i64: 1, 1, 128>}, {pipeline_mode = #tpu.pipeline_mode<synchronous>, transform_indices = @transform_1, window_bounds = array<i64: 128, 128>}, {pipeline_mode = #tpu.pipeline_mode<synchronous>, transform_indices = @transform_2, window_bounds = array<i64: 1, 128>}, {transform_indices = @transform_3, window_bounds = array<i64: 1, 1, 128>}]} {
    %c0 = arith.constant 0 : index
    %c0_0 = arith.constant 0 : index
    %c0_1 = arith.constant 0 : index
    %0 = vector.load %arg1[%c0, %c0_0, %c0_1] : memref<1x1x128xf32, #tpu.memory_space<vmem>>, vector<1x1x128xf32>
    %1 = vector.shape_cast %0 : vector<1x1x128xf32> to vector<1x128xf32>
    %2 = arith.truncf %1 : vector<1x128xf32> to vector<1x128xbf16>
    %c0_2 = arith.constant 0 : index
    %c0_3 = arith.constant 0 : index
    %3 = vector.load %arg2[%c0_2, %c0_3] : memref<128x128xbf16, #tpu.memory_space<vmem>>, vector<128x128xbf16>
    %cst = arith.constant dense<0.000000e+00> : vector<1x128xf32>
    %4 = tpu.matmul %2, %3, %cst {dimension_numbers = #tpu.dot_dimension_numbers<[1], [0], [0], [1], [0, 0, 1, 1], [], []>} : vector<1x128xbf16>, vector<128x128xbf16>, vector<1x128xf32> -> vector<1x128xf32>
    %c0_4 = arith.constant 0 : index
    %c0_5 = arith.constant 0 : index
    %5 = vector.load %arg3[%c0_4, %c0_5] : memref<1x128xf32, #tpu.memory_space<vmem>>, vector<1x128xf32>
    %6 = arith.addf %4, %5 : vector<1x128xf32>
    %c0_6 = arith.constant 0 : index
    %c0_7 = arith.constant 0 : index
    %c0_8 = arith.constant 0 : index
    %7 = vector.load %arg4[%c0_6, %c0_7, %c0_8] : memref<1x1x128xf32, #tpu.memory_space<vmem>>, vector<1x1x128xf32>
    %8 = vector.shape_cast %7 : vector<1x1x128xf32> to vector<1x128xf32>
    %9 = vector.shape_cast %6 : vector<1x128xf32> to vector<1x1x128xf32>
    tpu.vector_store %arg4[%c0_6, %c0_7, %c0_8], %9 {strides = array<i32>} : memref<1x1x128xf32, #tpu.memory_space<vmem>>, vector<1x1x128xf32>,
    return
  }
  func.func @transform_0(%arg0: i32) -> (i32, i32, i32) {
    %c0_i32 = arith.constant 0 : i32
    %c0_i32_0 = arith.constant 0 : i32
    %c0_i32_1 = arith.constant 0 : i32
    return %arg0, %c0_i32, %c0_i32_0 : i32, i32, i32
  }
  func.func @transform_1(%arg0: i32) -> (i32, i32) {
    %c0_i32 = arith.constant 0 : i32
    %c0_i32_0 = arith.constant 0 : i32
    %c0_i32_1 = arith.constant 0 : i32
    return %c0_i32, %c0_i32_0 : i32, i32
  }
  func.func @transform_2(%arg0: i32) -> (i32, i32) {
    %c0_i32 = arith.constant 0 : i32
    %c0_i32_0 = arith.constant 0 : i32
    %c0_i32_1 = arith.constant 0 : i32
    return %c0_i32, %c0_i32_0 : i32, i32
  }
  func.func @transform_3(%arg0: i32) -> (i32, i32, i32) {
    %c0_i32 = arith.constant 0 : i32
    %c0_i32_0 = arith.constant 0 : i32
    %c0_i32_1 = arith.constant 0 : i32
    return %arg0, %c0_i32, %c0_i32_0 : i32, i32, i32
  }
}

module attributes {stable_mosaic.version = 11 : i64} {
  func.func @_se_proj_kernel(%arg0: i32, %arg1: i32, %arg2: i32, %arg3: i32, %arg4: memref<1x64x128xbf16, #tpu.memory_space<vmem>>, %arg5: memref<1x1x128xbf16, #tpu.memory_space<vmem>>, %arg6: memref<128x128xbf16, #tpu.memory_space<vmem>>, %arg7: memref<1x128xf32, #tpu.memory_space<vmem>>, %arg8: memref<1x128xf32, #tpu.memory_space<vmem>>, %arg9: memref<1x64x128xbf16, #tpu.memory_space<vmem>>, %arg10: memref<1x64x128xbf16, #tpu.memory_space<vmem>>, %arg11: memref<64x128xf32, #tpu.memory_space<vmem>>) attributes {dimension_semantics = [#tpu.dimension_semantics<parallel>, #tpu.dimension_semantics<parallel>, #tpu.dimension_semantics<parallel>, #tpu.dimension_semantics<arbitrary>], iteration_bounds = array<i64: 2, 1, 1, 1>, scalar_prefetch = 0 : i64, scratch_operands = 1 : i64, tpu.core_type = #tpu.core_type<tc>, window_params = [{transform_indices = @transform_0, window_bounds = array<i64: 1, 64, 128>}, {transform_indices = @transform_1, window_bounds = array<i64: 1, 1, 128>}, {transform_indices = @transform_2, window_bounds = array<i64: 128, 128>}, {transform_indices = @transform_3, window_bounds = array<i64: 1, 128>}, {transform_indices = @transform_4, window_bounds = array<i64: 1, 128>}, {transform_indices = @transform_5, window_bounds = array<i64: 1, 64, 128>}, {transform_indices = @transform_6, window_bounds = array<i64: 1, 64, 128>}]} {
    %c0_i32 = arith.constant 0 : i32
    %0 = arith.cmpi eq, %arg3, %c0_i32 : i32
    %1 = arith.extui %0 : i1 to i32
    %c0_i32_0 = arith.constant 0 : i32
    %2 = arith.cmpi ne, %1, %c0_i32_0 : i32
    scf.if %2 {
      %cst_14 = arith.constant 0.000000e+00 : f32
      %17 = vector.broadcast %cst_14 : f32 to vector<64x128xf32>
      %c0_15 = arith.constant 0 : index
      %c0_16 = arith.constant 0 : index
      %18 = vector.load %arg11[%c0_15, %c0_16] : memref<64x128xf32, #tpu.memory_space<vmem>>, vector<64x128xf32>
      tpu.vector_store %arg11[%c0_15, %c0_16], %17 {strides = array<i32>} : memref<64x128xf32, #tpu.memory_space<vmem>>, vector<64x128xf32>,
    } else {
    }
    %c0 = arith.constant 0 : index
    %c0_1 = arith.constant 0 : index
    %c0_2 = arith.constant 0 : index
    %3 = vector.load %arg4[%c0, %c0_1, %c0_2] : memref<1x64x128xbf16, #tpu.memory_space<vmem>>, vector<1x64x128xbf16>
    %4 = vector.shape_cast %3 : vector<1x64x128xbf16> to vector<64x128xbf16>
    %c0_3 = arith.constant 0 : index
    %c0_4 = arith.constant 0 : index
    %c0_5 = arith.constant 0 : index
    %5 = vector.load %arg5[%c0_3, %c0_4, %c0_5] : memref<1x1x128xbf16, #tpu.memory_space<vmem>>, vector<1x1x128xbf16>
    %6 = vector.shape_cast %5 : vector<1x1x128xbf16> to vector<1x128xbf16>
    %7 = vector.broadcast %6 : vector<1x128xbf16> to vector<64x128xbf16>
    %8 = arith.mulf %4, %7 : vector<64x128xbf16>
    %c0_6 = arith.constant 0 : index
    %c0_7 = arith.constant 0 : index
    %9 = vector.load %arg11[%c0_6, %c0_7] : memref<64x128xf32, #tpu.memory_space<vmem>>, vector<64x128xf32>
    %c0_8 = arith.constant 0 : index
    %c0_9 = arith.constant 0 : index
    %10 = vector.load %arg6[%c0_8, %c0_9] : memref<128x128xbf16, #tpu.memory_space<vmem>>, vector<128x128xbf16>
    %cst = arith.constant dense<0.000000e+00> : vector<64x128xf32>
    %11 = tpu.matmul %8, %10, %cst {dimension_numbers = #tpu.dot_dimension_numbers<[1], [0], [0], [1], [0, 0, 1, 1], [], []>} : vector<64x128xbf16>, vector<128x128xbf16>, vector<64x128xf32> -> vector<64x128xf32>
    %12 = arith.addf %9, %11 : vector<64x128xf32>
    %c0_10 = arith.constant 0 : index
    %c0_11 = arith.constant 0 : index
    %13 = vector.load %arg11[%c0_10, %c0_11] : memref<64x128xf32, #tpu.memory_space<vmem>>, vector<64x128xf32>
    tpu.vector_store %arg11[%c0_10, %c0_11], %12 {strides = array<i32>} : memref<64x128xf32, #tpu.memory_space<vmem>>, vector<64x128xf32>,
    %c0_i32_12 = arith.constant 0 : i32
    %14 = arith.cmpi eq, %arg3, %c0_i32_12 : i32
    %15 = arith.extui %14 : i1 to i32
    %c0_i32_13 = arith.constant 0 : i32
    %16 = arith.cmpi ne, %15, %c0_i32_13 : i32
    scf.if %16 {
      %c0_14 = arith.constant 0 : index
      %c0_15 = arith.constant 0 : index
      %17 = vector.load %arg11[%c0_14, %c0_15] : memref<64x128xf32, #tpu.memory_space<vmem>>, vector<64x128xf32>
      %c0_16 = arith.constant 0 : index
      %c0_17 = arith.constant 0 : index
      %18 = vector.load %arg7[%c0_16, %c0_17] : memref<1x128xf32, #tpu.memory_space<vmem>>, vector<1x128xf32>
      %19 = vector.broadcast %18 : vector<1x128xf32> to vector<64x128xf32>
      %20 = arith.mulf %17, %19 : vector<64x128xf32>
      %c0_18 = arith.constant 0 : index
      %c0_19 = arith.constant 0 : index
      %21 = vector.load %arg8[%c0_18, %c0_19] : memref<1x128xf32, #tpu.memory_space<vmem>>, vector<1x128xf32>
      %22 = vector.broadcast %21 : vector<1x128xf32> to vector<64x128xf32>
      %23 = arith.addf %20, %22 : vector<64x128xf32>
      %c0_20 = arith.constant 0 : index
      %c0_21 = arith.constant 0 : index
      %c0_22 = arith.constant 0 : index
      %24 = vector.load %arg9[%c0_20, %c0_21, %c0_22] : memref<1x64x128xbf16, #tpu.memory_space<vmem>>, vector<1x64x128xbf16>
      %25 = vector.shape_cast %24 : vector<1x64x128xbf16> to vector<64x128xbf16>
      %26 = arith.extf %25 : vector<64x128xbf16> to vector<64x128xf32>
      %27 = arith.addf %23, %26 : vector<64x128xf32>
      %28 = arith.truncf %27 : vector<64x128xf32> to vector<64x128xbf16>
      %c0_23 = arith.constant 0 : index
      %c0_24 = arith.constant 0 : index
      %c0_25 = arith.constant 0 : index
      %29 = vector.load %arg10[%c0_23, %c0_24, %c0_25] : memref<1x64x128xbf16, #tpu.memory_space<vmem>>, vector<1x64x128xbf16>
      %30 = vector.shape_cast %29 : vector<1x64x128xbf16> to vector<64x128xbf16>
      %31 = vector.shape_cast %28 : vector<64x128xbf16> to vector<1x64x128xbf16>
      tpu.vector_store %arg10[%c0_23, %c0_24, %c0_25], %31 {strides = array<i32>} : memref<1x64x128xbf16, #tpu.memory_space<vmem>>, vector<1x64x128xbf16>,
    } else {
    }
    return
  }
  func.func @transform_0(%arg0: i32, %arg1: i32, %arg2: i32, %arg3: i32) -> (i32, i32, i32) {
    %c0_i32 = arith.constant 0 : i32
    return %arg0, %arg1, %arg3 : i32, i32, i32
  }
  func.func @transform_1(%arg0: i32, %arg1: i32, %arg2: i32, %arg3: i32) -> (i32, i32, i32) {
    %c0_i32 = arith.constant 0 : i32
    %c0_i32_0 = arith.constant 0 : i32
    return %arg0, %c0_i32, %arg3 : i32, i32, i32
  }
  func.func @transform_2(%arg0: i32, %arg1: i32, %arg2: i32, %arg3: i32) -> (i32, i32) {
    %c0_i32 = arith.constant 0 : i32
    return %arg3, %arg2 : i32, i32
  }
  func.func @transform_3(%arg0: i32, %arg1: i32, %arg2: i32, %arg3: i32) -> (i32, i32) {
    %c0_i32 = arith.constant 0 : i32
    %c0_i32_0 = arith.constant 0 : i32
    return %c0_i32, %arg2 : i32, i32
  }
  func.func @transform_4(%arg0: i32, %arg1: i32, %arg2: i32, %arg3: i32) -> (i32, i32) {
    %c0_i32 = arith.constant 0 : i32
    %c0_i32_0 = arith.constant 0 : i32
    return %c0_i32, %arg2 : i32, i32
  }
  func.func @transform_5(%arg0: i32, %arg1: i32, %arg2: i32, %arg3: i32) -> (i32, i32, i32) {
    %c0_i32 = arith.constant 0 : i32
    return %arg0, %arg1, %arg2 : i32, i32, i32
  }
  func.func @transform_6(%arg0: i32, %arg1: i32, %arg2: i32, %arg3: i32) -> (i32, i32, i32) {
    %c0_i32 = arith.constant 0 : i32
    return %arg0, %arg1, %arg2 : i32, i32, i32
  }
}

module attributes {stable_mosaic.version = 11 : i64} {
  func.func @_head_gap_kernel(%arg0: i32, %arg1: i32, %arg2: i32, %arg3: i32, %arg4: memref<1x64x128xbf16, #tpu.memory_space<vmem>>, %arg5: memref<128x128xbf16, #tpu.memory_space<vmem>>, %arg6: memref<1x128xf32, #tpu.memory_space<vmem>>, %arg7: memref<1x128xf32, #tpu.memory_space<vmem>>, %arg8: memref<1x1x128xf32, #tpu.memory_space<vmem>>, %arg9: memref<64x128xf32, #tpu.memory_space<vmem>>) attributes {dimension_semantics = [#tpu.dimension_semantics<parallel>, #tpu.dimension_semantics<parallel>, #tpu.dimension_semantics<arbitrary>, #tpu.dimension_semantics<arbitrary>], iteration_bounds = array<i64: 2, 1, 1, 1>, scalar_prefetch = 0 : i64, scratch_operands = 1 : i64, tpu.core_type = #tpu.core_type<tc>, window_params = [{transform_indices = @transform_0, window_bounds = array<i64: 1, 64, 128>}, {transform_indices = @transform_1, window_bounds = array<i64: 128, 128>}, {transform_indices = @transform_2, window_bounds = array<i64: 1, 128>}, {transform_indices = @transform_3, window_bounds = array<i64: 1, 128>}, {transform_indices = @transform_4, window_bounds = array<i64: 1, 1, 128>}]} {
    %c0_i32 = arith.constant 0 : i32
    %0 = arith.cmpi eq, %arg3, %c0_i32 : i32
    %1 = arith.extui %0 : i1 to i32
    %c0_i32_0 = arith.constant 0 : i32
    %2 = arith.cmpi ne, %1, %c0_i32_0 : i32
    scf.if %2 {
      %cst_11 = arith.constant 0.000000e+00 : f32
      %13 = vector.broadcast %cst_11 : f32 to vector<64x128xf32>
      %c0_12 = arith.constant 0 : index
      %c0_13 = arith.constant 0 : index
      %14 = vector.load %arg9[%c0_12, %c0_13] : memref<64x128xf32, #tpu.memory_space<vmem>>, vector<64x128xf32>
      tpu.vector_store %arg9[%c0_12, %c0_13], %13 {strides = array<i32>} : memref<64x128xf32, #tpu.memory_space<vmem>>, vector<64x128xf32>,
    } else {
    }
    %c0 = arith.constant 0 : index
    %c0_1 = arith.constant 0 : index
    %3 = vector.load %arg9[%c0, %c0_1] : memref<64x128xf32, #tpu.memory_space<vmem>>, vector<64x128xf32>
    %c0_2 = arith.constant 0 : index
    %c0_3 = arith.constant 0 : index
    %c0_4 = arith.constant 0 : index
    %4 = vector.load %arg4[%c0_2, %c0_3, %c0_4] : memref<1x64x128xbf16, #tpu.memory_space<vmem>>, vector<1x64x128xbf16>
    %5 = vector.shape_cast %4 : vector<1x64x128xbf16> to vector<64x128xbf16>
    %c0_5 = arith.constant 0 : index
    %c0_6 = arith.constant 0 : index
    %6 = vector.load %arg5[%c0_5, %c0_6] : memref<128x128xbf16, #tpu.memory_space<vmem>>, vector<128x128xbf16>
    %cst = arith.constant dense<0.000000e+00> : vector<64x128xf32>
    %7 = tpu.matmul %5, %6, %cst {dimension_numbers = #tpu.dot_dimension_numbers<[1], [0], [0], [1], [0, 0, 1, 1], [], []>} : vector<64x128xbf16>, vector<128x128xbf16>, vector<64x128xf32> -> vector<64x128xf32>
    %8 = arith.addf %3, %7 : vector<64x128xf32>
    %c0_7 = arith.constant 0 : index
    %c0_8 = arith.constant 0 : index
    %9 = vector.load %arg9[%c0_7, %c0_8] : memref<64x128xf32, #tpu.memory_space<vmem>>, vector<64x128xf32>
    tpu.vector_store %arg9[%c0_7, %c0_8], %8 {strides = array<i32>} : memref<64x128xf32, #tpu.memory_space<vmem>>, vector<64x128xf32>,
    %c0_i32_9 = arith.constant 0 : i32
    %10 = arith.cmpi eq, %arg3, %c0_i32_9 : i32
    %11 = arith.extui %10 : i1 to i32
    %c0_i32_10 = arith.constant 0 : i32
    %12 = arith.cmpi ne, %11, %c0_i32_10 : i32
    scf.if %12 {
      %c0_11 = arith.constant 0 : index
      %c0_12 = arith.constant 0 : index
      %13 = vector.load %arg9[%c0_11, %c0_12] : memref<64x128xf32, #tpu.memory_space<vmem>>, vector<64x128xf32>
      %c0_13 = arith.constant 0 : index
      %c0_14 = arith.constant 0 : index
      %14 = vector.load %arg6[%c0_13, %c0_14] : memref<1x128xf32, #tpu.memory_space<vmem>>, vector<1x128xf32>
      %15 = vector.broadcast %14 : vector<1x128xf32> to vector<64x128xf32>
      %16 = arith.mulf %13, %15 : vector<64x128xf32>
      %c0_15 = arith.constant 0 : index
      %c0_16 = arith.constant 0 : index
      %17 = vector.load %arg7[%c0_15, %c0_16] : memref<1x128xf32, #tpu.memory_space<vmem>>, vector<1x128xf32>
      %18 = vector.broadcast %17 : vector<1x128xf32> to vector<64x128xf32>
      %19 = arith.addf %16, %18 : vector<64x128xf32>
      %20 = arith.negf %19 : vector<64x128xf32>
      %21 = math.exp %20 : vector<64x128xf32>
      %cst_17 = arith.constant 1.000000e+00 : f32
      %22 = vector.broadcast %cst_17 : f32 to vector<64x128xf32>
      %23 = arith.addf %22, %21 : vector<64x128xf32>
      %24 = arith.divf %22, %23 : vector<64x128xf32>
      %25 = arith.mulf %19, %24 : vector<64x128xf32>
      %26 = tpu.iota {dimensions = array<i32: 0>} : vector<64x1xi32>
      %c64_i32 = arith.constant 64 : i32
      %27 = arith.muli %arg2, %c64_i32 : i32
      %28 = vector.broadcast %27 : i32 to vector<64x1xi32>
      %29 = arith.addi %26, %28 : vector<64x1xi32>
      %c64_i32_18 = arith.constant 64 : i32
      %30 = vector.broadcast %c64_i32_18 : i32 to vector<64x1xi32>
      %31 = arith.cmpi slt, %29, %30 : vector<64x1xi32>
      %cst_19 = arith.constant 0.000000e+00 : f32
      %32 = vector.shape_cast %31 : vector<64x1xi1> to vector<64x1xi1>
      %33 = vector.broadcast %32 : vector<64x1xi1> to vector<64x128xi1>
      %34 = vector.broadcast %cst_19 : f32 to vector<64x128xf32>
      %35 = arith.select %33, %25, %34 : vector<64x128xi1>, vector<64x128xf32>
      %cst_20 = arith.constant dense<0.000000e+00> : vector<128xf32>
      %36 = vector.multi_reduction <add>, %35, %cst_20 [0] : vector<64x128xf32> to vector<128xf32>
      %37 = vector.shape_cast %36 : vector<128xf32> to vector<1x128xf32>
      %cst_21 = arith.constant 1.562500e-02 : f32
      %38 = vector.broadcast %cst_21 : f32 to vector<1x128xf32>
      %39 = arith.mulf %37, %38 : vector<1x128xf32>
      %c0_i32_22 = arith.constant 0 : i32
      %40 = arith.cmpi eq, %arg2, %c0_i32_22 : i32
      %41 = arith.extui %40 : i1 to i32
      %c0_i32_23 = arith.constant 0 : i32
      %42 = arith.cmpi ne, %41, %c0_i32_23 : i32
      scf.if %42 {
        %c0_26 = arith.constant 0 : index
        %c0_27 = arith.constant 0 : index
        %c0_28 = arith.constant 0 : index
        %46 = vector.load %arg8[%c0_26, %c0_27, %c0_28] : memref<1x1x128xf32, #tpu.memory_space<vmem>>, vector<1x1x128xf32>
        %47 = vector.shape_cast %46 : vector<1x1x128xf32> to vector<1x128xf32>
        %48 = vector.shape_cast %39 : vector<1x128xf32> to vector<1x1x128xf32>
        tpu.vector_store %arg8[%c0_26, %c0_27, %c0_28], %48 {strides = array<i32>} : memref<1x1x128xf32, #tpu.memory_space<vmem>>, vector<1x1x128xf32>,
      } else {
      }
      %c0_i32_24 = arith.constant 0 : i32
      %43 = arith.cmpi sgt, %arg2, %c0_i32_24 : i32
      %44 = arith.extui %43 : i1 to i32
      %c0_i32_25 = arith.constant 0 : i32
      %45 = arith.cmpi ne, %44, %c0_i32_25 : i32
      scf.if %45 {
        %c0_26 = arith.constant 0 : index
        %c0_27 = arith.constant 0 : index
        %c0_28 = arith.constant 0 : index
        %46 = vector.load %arg8[%c0_26, %c0_27, %c0_28] : memref<1x1x128xf32, #tpu.memory_space<vmem>>, vector<1x1x128xf32>
        %47 = vector.shape_cast %46 : vector<1x1x128xf32> to vector<1x128xf32>
        %48 = arith.addf %47, %39 : vector<1x128xf32>
        %c0_29 = arith.constant 0 : index
        %c0_30 = arith.constant 0 : index
        %c0_31 = arith.constant 0 : index
        %49 = vector.load %arg8[%c0_29, %c0_30, %c0_31] : memref<1x1x128xf32, #tpu.memory_space<vmem>>, vector<1x1x128xf32>
        %50 = vector.shape_cast %49 : vector<1x1x128xf32> to vector<1x128xf32>
        %51 = vector.shape_cast %48 : vector<1x128xf32> to vector<1x1x128xf32>
        tpu.vector_store %arg8[%c0_29, %c0_30, %c0_31], %51 {strides = array<i32>} : memref<1x1x128xf32, #tpu.memory_space<vmem>>, vector<1x1x128xf32>,
      } else {
      }
    } else {
    }
    return
  }
  func.func @transform_0(%arg0: i32, %arg1: i32, %arg2: i32, %arg3: i32) -> (i32, i32, i32) {
    %c0_i32 = arith.constant 0 : i32
    return %arg0, %arg2, %arg3 : i32, i32, i32
  }
  func.func @transform_1(%arg0: i32, %arg1: i32, %arg2: i32, %arg3: i32) -> (i32, i32) {
    %c0_i32 = arith.constant 0 : i32
    return %arg3, %arg1 : i32, i32
  }
  func.func @transform_2(%arg0: i32, %arg1: i32, %arg2: i32, %arg3: i32) -> (i32, i32) {
    %c0_i32 = arith.constant 0 : i32
    %c0_i32_0 = arith.constant 0 : i32
    return %c0_i32, %arg1 : i32, i32
  }
  func.func @transform_3(%arg0: i32, %arg1: i32, %arg2: i32, %arg3: i32) -> (i32, i32) {
    %c0_i32 = arith.constant 0 : i32
    %c0_i32_0 = arith.constant 0 : i32
    return %c0_i32, %arg1 : i32, i32
  }
  func.func @transform_4(%arg0: i32, %arg1: i32, %arg2: i32, %arg3: i32) -> (i32, i32, i32) {
    %c0_i32 = arith.constant 0 : i32
    %c0_i32_0 = arith.constant 0 : i32
    return %arg0, %c0_i32, %arg1 : i32, i32, i32
  }
}

</mosaic_0001>

<llo_original>
// kernel: _lambda_.13
$region0: #{_lambda_.13}
  #allocation0 [shape = 'u32[]', space=smem, size = 0x4, offset = 0x4, fixed_abs, tag = 'smem constant byte address 0x4 - core index']
  #allocation1 [shape = 'u32[144,128]{1,0:T(1,128)}', space=vmem, size = 0x12000, scoped, tag = 'internal scratch']
  #allocation2 [shape = 'f32[10,10,128]{2,1,0:T(8,128)}', space=vmem, size = 0x14000, scoped, tag = 'scratch operand']
  %s0 = inlined_call_operand.vmem [shape: bf16[2,8,8,128], index: 0, kind: input, shape index: {}]
  %s1 = inlined_call_operand.vmem [shape: f32[9,128], index: 1, kind: input, shape index: {}]
  %s2 = inlined_call_operand.vmem [shape: f32[1,128], index: 2, kind: input, shape index: {}]
  %s3 = inlined_call_operand.vmem [shape: f32[1,128], index: 3, kind: input, shape index: {}]
  %s4 = inlined_call_operand.vmem [shape: bf16[2,8,8,128], index: 4, kind: output, shape index: {0}]
  %s5 = inlined_call_operand.vmem [shape: f32[2,1,128], index: 5, kind: output, shape index: {1}]
  %6 = xla_tuple %s4, %s5
  %s7 = sld [smem:[#allocation0]]
  $region57: #{_lambda_.13} parent=0
    _
  %s9 = ssub.s32 1, %s7
  %s10 = scalar_select 0, %s9, %s7
  loop: start=0, step=1, limit=4
  $region2: #{_lambda_.13} parent=0 // loop_pre_header
    _
  $region3: #{_lambda_.13} parent=0 // loop_header
    %s12 = sphi 0, %s16
    %p13 = scmp.ge.s32.totalorder %s12, 4
    %s19 = sphi 0, %s31
    %s20 = sphi 0, %s27
    %s21 = sphi 0, %s19
    %s22 = sphi 0, %s20
    %s23 = sphi 0, %s21
    %s24 = sphi 0, %s22
    %s36 = sphi 0, %s38
    %s39 = sphi 0, %s36
    %s40 = sphi 0, %s39
    %s56 = sphi 0, %s40
    %s62 = sphi 0, %s64
    %s65 = sphi 0, %s62
    %s66 = sphi 0, %s65
    %s82 = sphi 0, %s66
    %s88 = sphi 0, %s90
    %s91 = sphi 0, %s88
    %s92 = sphi 0, %s91
    %s108 = sphi 0, %s92
    %s114 = sphi 0, %s116
    %s117 = sphi 0, %s114
    %s118 = sphi 0, %s117
    %s134 = sphi 0, %s118
    %s142 = sphi 0, %s144
    %s145 = sphi 0, %s142
    %s146 = sphi 0, %s145
    %s162 = sphi 0, %s146
    %s170 = sphi 0, %s172
    %s173 = sphi 0, %s170
    %s174 = sphi 0, %s173
    %s190 = sphi 0, %s174
  $region4: #{_lambda_.13} parent=0 // loop_header_branch
    %15 = sbr.rel (%p13) target = $region8
  $region5: #{_lambda_.13} parent=0 // loop_body
    %s17 = ssub.s32 %s12, 1
    %s18 = ssub.s32 %s12, 2
    %s25 = sadd.s32 1, %s20
    %p26 = scmp.ge.s32.totalorder %s25, 1
    %s27 = scalar_select %p26, 0, %s25
    %s28 = sadd.s32 1, %s19
    %s29 = scalar_select %p26, %s28, %s19
    %p30 = scmp.ge.s32.totalorder %s29, 2
    %s31 = scalar_select %p30, 0, %s29
    %s32 = ssub.s32 %s19, %s31
    %s33 = ssub.s32 %s20, %s27
    %s34 = sor.u32 %s32, %s33
    %p35 = scmp.eq.s32.totalorder %s34, 0
    %s37 = sadd.s32 %s36, 1
    %s38 = scalar_select %p35, %s36, %s37
    %p41 = pneg %p35
    %p42 = scmp.eq.s32.totalorder %s12, 1
    %p43 = por %p41, %p42
    %p44 = scmp.ne.s32.totalorder %s36, %s39
    %p45 = scmp.eq.s32.totalorder %s12, 0
    %p46 = por %p44, %p45
    %p47 = scmp.ne.s32.totalorder %s36, %s39
    %p48 = scmp.eq.s32.totalorder %s17, 1
    %p49 = por %p47, %p48
    %p50 = scmp.ne.s32.totalorder %s39, %s40
    %p51 = scmp.eq.s32.totalorder %s17, 0
    %p52 = por %p50, %p51
    %p53 = scmp.ne.s32.totalorder %s39, %s40
    %p54 = scmp.eq.s32.totalorder %s18, 1
    %p55 = por %p53, %p54
    %p57 = scmp.ne.s32.totalorder %s40, %s56
    %p58 = scmp.eq.s32.totalorder %s18, 0
    %p59 = por %p57, %p58
    %s60 = ssub.s32 %s20, %s27
    %p61 = scmp.eq.s32.totalorder %s60, 0
    %s63 = sadd.s32 %s62, 1
    %s64 = scalar_select %p61, %s62, %s63
    %p67 = pneg %p61
    %p68 = scmp.eq.s32.totalorder %s12, 1
    %p69 = por %p67, %p68
    %p70 = scmp.ne.s32.totalorder %s62, %s65
    %p71 = scmp.eq.s32.totalorder %s12, 0
    %p72 = por %p70, %p71
    %p73 = scmp.ne.s32.totalorder %s62, %s65
    %p74 = scmp.eq.s32.totalorder %s17, 1
    %p75 = por %p73, %p74
    %p76 = scmp.ne.s32.totalorder %s65, %s66
    %p77 = scmp.eq.s32.totalorder %s17, 0
    %p78 = por %p76, %p77
    %p79 = scmp.ne.s32.totalorder %s65, %s66
    %p80 = scmp.eq.s32.totalorder %s18, 1
    %p81 = por %p79, %p80
    %p83 = scmp.ne.s32.totalorder %s66, %s82
    %p84 = scmp.eq.s32.totalorder %s18, 0
    %p85 = por %p83, %p84
    %s86 = ssub.s32 %s20, %s27
    %p87 = scmp.eq.s32.totalorder %s86, 0
    %s89 = sadd.s32 %s88, 1
    %s90 = scalar_select %p87, %s88, %s89
    %p93 = pneg %p87
    %p94 = scmp.eq.s32.totalorder %s12, 1
    %p95 = por %p93, %p94
    %p96 = scmp.ne.s32.totalorder %s88, %s91
    %p97 = scmp.eq.s32.totalorder %s12, 0
    %p98 = por %p96, %p97
    %p99 = scmp.ne.s32.totalorder %s88, %s91
    %p100 = scmp.eq.s32.totalorder %s17, 1
    %p101 = por %p99, %p100
    %p102 = scmp.ne.s32.totalorder %s91, %s92
    %p103 = scmp.eq.s32.totalorder %s17, 0
    %p104 = por %p102, %p103
    %p105 = scmp.ne.s32.totalorder %s91, %s92
    %p106 = scmp.eq.s32.totalorder %s18, 1
    %p107 = por %p105, %p106
    %p109 = scmp.ne.s32.totalorder %s92, %s108
    %p110 = scmp.eq.s32.totalorder %s18, 0
    %p111 = por %p109, %p110
    %s112 = ssub.s32 %s20, %s27
    %p113 = scmp.eq.s32.totalorder %s112, 0
    %s115 = sadd.s32 %s114, 1
    %s116 = scalar_select %p113, %s114, %s115
    %p119 = pneg %p113
    %p120 = scmp.eq.s32.totalorder %s12, 1
    %p121 = por %p119, %p120
    %p122 = scmp.ne.s32.totalorder %s114, %s117
    %p123 = scmp.eq.s32.totalorder %s12, 0
    %p124 = por %p122, %p123
    %p125 = scmp.ne.s32.totalorder %s114, %s117
    %p126 = scmp.eq.s32.totalorder %s17, 1
    %p127 = por %p125, %p126
    %p128 = scmp.ne.s32.totalorder %s117, %s118
    %p129 = scmp.eq.s32.totalorder %s17, 0
    %p130 = por %p128, %p129
    %p131 = scmp.ne.s32.totalorder %s117, %s118
    %p132 = scmp.eq.s32.totalorder %s18, 1
    %p133 = por %p131, %p132
    %p135 = scmp.ne.s32.totalorder %s118, %s134
    %p136 = scmp.eq.s32.totalorder %s18, 0
    %p137 = por %p135, %p136
    %s138 = ssub.s32 %s19, %s31
    %s139 = ssub.s32 %s20, %s27
    %s140 = sor.u32 %s138, %s139
    %p141 = scmp.eq.s32.totalorder %s140, 0
    %s143 = sadd.s32 %s142, 1
    %s144 = scalar_select %p141, %s142, %s143
    %p147 = pneg %p141
    %p148 = scmp.eq.s32.totalorder %s12, 1
    %p149 = por %p147, %p148
    %p150 = scmp.ne.s32.totalorder %s142, %s145
    %p151 = scmp.eq.s32.totalorder %s12, 0
    %p152 = por %p150, %p151
    %p153 = scmp.ne.s32.totalorder %s142, %s145
    %p154 = scmp.eq.s32.totalorder %s17, 1
    %p155 = por %p153, %p154
    %p156 = scmp.ne.s32.totalorder %s145, %s146
    %p157 = scmp.eq.s32.totalorder %s17, 0
    %p158 = por %p156, %p157
    %p159 = scmp.ne.s32.totalorder %s145, %s146
    %p160 = scmp.eq.s32.totalorder %s18, 1
    %p161 = por %p159, %p160
    %p163 = scmp.ne.s32.totalorder %s146, %s162
    %p164 = scmp.eq.s32.totalorder %s18, 0
    %p165 = por %p163, %p164
    %s166 = ssub.s32 %s19, %s31
    %s167 = ssub.s32 %s20, %s27
    %s168 = sor.u32 %s166, %s167
    %p169 = scmp.eq.s32.totalorder %s168, 0
    %s171 = sadd.s32 %s170, 1
    %s172 = scalar_select %p169, %s170, %s171
    %p175 = pneg %p169
    %p176 = scmp.eq.s32.totalorder %s12, 1
    %p177 = por %p175, %p176
    %p178 = scmp.ne.s32.totalorder %s170, %s173
    %p179 = scmp.eq.s32.totalorder %s12, 0
    %p180 = por %p178, %p179
    %p181 = scmp.ne.s32.totalorder %s170, %s173
    %p182 = scmp.eq.s32.totalorder %s17, 1
    %p183 = por %p181, %p182
    %p184 = scmp.ne.s32.totalorder %s173, %s174
    %p185 = scmp.eq.s32.totalorder %s17, 0
    %p186 = por %p184, %p185
    %p187 = scmp.ne.s32.totalorder %s173, %s174
    %p188 = scmp.eq.s32.totalorder %s18, 1
    %p189 = por %p187, %p188
    %p191 = scmp.ne.s32.totalorder %s174, %s190
    %p192 = scmp.eq.s32.totalorder %s18, 0
    %p193 = por %p191, %p192
    %p194 = scmp.le.s32.totalorder 1, %s12
    %p195 = scmp.lt.s32.totalorder %s12, 3
    %p196 = pnand %p194, %p195
    %p197 = pneg %p196
    // Predicated region
    $region9: #{_lambda_.13} parent=5 // pred_check
      _
    $region10: #{_lambda_.13} parent=5 // pred_check_branch
      %199 = sbr.rel (%p196) target = $region12
    $region11: #{_lambda_.13} parent=5 // pred_region
      %s200 = ssub.s32 %s12, 1
      // Predicated region
      $region13: #{_lambda_.13} parent=11 // pred_check
        %p201 = pneg %p78
      $region14: #{_lambda_.13} parent=11 // pred_check_branch
        %203 = sbr.rel (%p201) target = $region16
      $region15: #{_lambda_.13} parent=11 // pred_region
        %p204 = scmp.lt.s32.totalorder %s22, 0
        %s205 = scalar_select %p204, %s22, 0
        %s206 = smul.addr %s205, 8
        %s207 = scalar_lea.vmem %s1, %s206
      $region16: #{_lambda_.13} parent=11 // pred_fallthru
        _
      // Predicated region
      $region17: #{_lambda_.13} parent=11 // pred_check
        %p208 = pneg %p104
      $region18: #{_lambda_.13} parent=11 // pred_check_branch
        %210 = sbr.rel (%p208) target = $region20
      $region19: #{_lambda_.13} parent=11 // pred_region
        %p211 = scmp.lt.s32.totalorder %s22, 0
        %s212 = scalar_select %p211, %s22, 0
        %s213 = scalar_lea.vmem %s2, %s212
      $region20: #{_lambda_.13} parent=11 // pred_fallthru
        _
      // Predicated region
      $region21: #{_lambda_.13} parent=11 // pred_check
        %p214 = pneg %p130
      $region22: #{_lambda_.13} parent=11 // pred_check_branch
        %216 = sbr.rel (%p214) target = $region24
      $region23: #{_lambda_.13} parent=11 // pred_region
        %p217 = scmp.lt.s32.totalorder %s22, 0
        %s218 = scalar_select %p217, %s22, 0
        %s219 = scalar_lea.vmem %s3, %s218
      $region24: #{_lambda_.13} parent=11 // pred_fallthru
        _
    $region12: #{_lambda_.13} parent=5 // pred_fallthru
      _
    %p220 = scmp.lt.s32.totalorder %s12, 2
    // Predicated region
    $region25: #{_lambda_.13} parent=5 // pred_check
      %p221 = pneg %p220
    $region26: #{_lambda_.13} parent=5 // pred_check_branch
      %223 = sbr.rel (%p221) target = $region28
    $region27: #{_lambda_.13} parent=5 // pred_region
      // Predicated region
      $region29: #{_lambda_.13} parent=27 // pred_check
        %p224 = pneg %p46
      $region30: #{_lambda_.13} parent=27 // pred_check_branch
        %226 = sbr.rel (%p224) target = $region32
      $region31: #{_lambda_.13} parent=27 // pred_region
        %p227 = scmp.lt.s32.totalorder %s19, 1
        %s228 = scalar_select %p227, %s19, 1
        %p229 = scmp.lt.s32.totalorder %s20, 0
        %s230 = scalar_select %p229, %s20, 0
        %s231 = smul.addr %s228, 8
        %s232 = sadd.s32 %s230, %s231
        %s233 = smul.addr %s232, 4
        %s234 = scalar_lea.vmem %s0, %s233
      $region32: #{_lambda_.13} parent=27 // pred_fallthru
        _
    $region28: #{_lambda_.13} parent=5 // pred_fallthru
      _
    %p235 = scmp.le.s32.totalorder 1, %s12
    %p236 = scmp.lt.s32.totalorder %s12, 3
    %p237 = pnand %p235, %p236
    %p238 = pneg %p237
    // Predicated region
    $region33: #{_lambda_.13} parent=5 // pred_check
      _
    $region34: #{_lambda_.13} parent=5 // pred_check_branch
      %240 = sbr.rel (%p237) target = $region36
    $region35: #{_lambda_.13} parent=5 // pred_region
      %s241 = ssub.s32 %s12, 1
      %p242 = scmp.lt.s32.totalorder %s21, 1
      %s243 = scalar_select %p242, %s21, 1
      %p244 = scmp.lt.s32.totalorder %s22, 0
      %s245 = scalar_select %p244, %s22, 0
      %s246 = smul.addr %s243, 8
      %s247 = sadd.s32 %s245, %s246
      %s248 = smul.addr %s247, 4
      %s249 = scalar_lea.vmem %s0, %s248
      %p250 = pneg %p52
      %p251 = pneg %p49
      %p252 = scmp.lt.s32.totalorder %s22, 0
      %s253 = scalar_select %p252, %s22, 0
      %s254 = smul.addr %s253, 8
      %s255 = scalar_lea.vmem %s1, %s254
      %p256 = pneg %p78
      %p257 = pneg %p75
      %p258 = scmp.lt.s32.totalorder %s22, 0
      %s259 = scalar_select %p258, %s22, 0
      %s260 = scalar_lea.vmem %s2, %s259
      %p261 = pneg %p104
      %p262 = pneg %p101
      %p263 = scmp.lt.s32.totalorder %s22, 0
      %s264 = scalar_select %p263, %s22, 0
      %s265 = scalar_lea.vmem %s3, %s264
      %p266 = pneg %p130
      %p267 = pneg %p127
      %p268 = pneg %p158
      %p269 = pneg %p155
      %p270 = scmp.lt.s32.totalorder %s21, 1
      %s271 = scalar_select %p270, %s21, 1
      %p272 = scmp.lt.s32.totalorder %s22, 0
      %s273 = scalar_select %p272, %s22, 0
      %s274 = smul.addr %s271, 8
      %s275 = sadd.s32 %s273, %s274
      %s276 = smul.addr %s275, 4
      %s277 = scalar_lea.vmem %s4, %s276
      %p278 = pneg %p186
      %p279 = pneg %p183
      %p280 = scmp.lt.s32.totalorder %s21, 1
      %s281 = scalar_select %p280, %s21, 1
      %p282 = scmp.lt.s32.totalorder %s22, 0
      %s283 = scalar_select %p282, %s22, 0
      %s284 = sadd.s32 %s283, %s281
      %s285 = scalar_lea.vmem %s5, %s284
      %p286 = scmp.lt.s32.totalorder %s21, 1
      %s287 = scalar_select %p286, %s21, 1
      %p288 = scmp.lt.s32.totalorder %s22, 0
      %s289 = scalar_select %p288, %s22, 0
      %s290 = smul.addr %s287, 8
      %s291 = sadd.s32 %s289, %s290
      %s292 = smul.addr %s291, 4
      %s293 = scalar_lea.vmem %s0, %s292
      %p294 = scmp.lt.s32.totalorder %s22, 0
      %s295 = scalar_select %p294, %s22, 0
      %s296 = smul.addr %s295, 8
      %s297 = scalar_lea.vmem %s1, %s296
      %p298 = scmp.lt.s32.totalorder %s22, 0
      %s299 = scalar_select %p298, %s22, 0
      %s300 = scalar_lea.vmem %s2, %s299
      %p301 = scmp.lt.s32.totalorder %s22, 0
      %s302 = scalar_select %p301, %s22, 0
      %s303 = scalar_lea.vmem %s3, %s302
      %p304 = scmp.lt.s32.totalorder %s21, 1
      %s305 = scalar_select %p304, %s21, 1
      %p306 = scmp.lt.s32.totalorder %s22, 0
      %s307 = scalar_select %p306, %s22, 0
      %s308 = smul.addr %s305, 8
      %s309 = sadd.s32 %s307, %s308
      %s310 = smul.addr %s309, 4
      %s311 = scalar_lea.vmem %s4, %s310
      %p312 = scmp.lt.s32.totalorder %s21, 1
      %s313 = scalar_select %p312, %s21, 1
      %p314 = scmp.lt.s32.totalorder %s22, 0
      %s315 = scalar_select %p314, %s22, 0
      %s316 = sadd.s32 %s315, %s313
      %s317 = scalar_lea.vmem %s5, %s316
      %318 = vst [vmem:[#allocation2] sm:$0xff] 0.0
      %319 = vst [vmem:[#allocation2 + $0x8] sm:$0x3] 0.0
      %s320 = scalar_lea.vmem [#allocation2], 144
      %321 = vst [vmem:[%s320] sm:$0xff] 0.0
      %322 = vst [vmem:[%s320 + $0x8] sm:$0x3] 0.0
      %s323 = scalar_lea.vmem [#allocation2], 16
      %324 = vst [vmem:[%s323] sm:$0x1] 0.0
      %325 = vst [vmem:[%s323 + $0x10] sm:$0x1] 0.0
      %326 = vst [vmem:[%s323 + $0x20] sm:$0x1] 0.0
      %327 = vst [vmem:[%s323 + $0x30] sm:$0x1] 0.0
      %328 = vst [vmem:[%s323 + $0x40] sm:$0x1] 0.0
      %329 = vst [vmem:[%s323 + $0x50] sm:$0x1] 0.0
      %330 = vst [vmem:[%s323 + $0x60] sm:$0x1] 0.0
      %331 = vst [vmem:[%s323 + $0x70] sm:$0x1] 0.0
      %332 = vst [vmem:[%s323 + $0x9] sm:$0x1] 0.0
      %333 = vst [vmem:[%s323 + $0x19] sm:$0x1] 0.0
      %334 = vst [vmem:[%s323 + $0x29] sm:$0x1] 0.0
      %335 = vst [vmem:[%s323 + $0x39] sm:$0x1] 0.0
      %336 = vst [vmem:[%s323 + $0x49] sm:$0x1] 0.0
      %337 = vst [vmem:[%s323 + $0x59] sm:$0x1] 0.0
      %338 = vst [vmem:[%s323 + $0x69] sm:$0x1] 0.0
      %339 = vst [vmem:[%s323 + $0x79] sm:$0x1] 0.0
      %v340 = vld [vmem:[%s293] sm:$0xf]
      %v341 = vld [vmem:[%s293 + $0x4] sm:$0xf]
      %v342 = vld [vmem:[%s293 + $0x8] sm:$0xf]
      %v343 = vld [vmem:[%s293 + $0xc] sm:$0xf]
      %v344 = vld [vmem:[%s293 + $0x10] sm:$0xf]
      %v345 = vld [vmem:[%s293 + $0x14] sm:$0xf]
      %v346 = vld [vmem:[%s293 + $0x18] sm:$0xf]
      %v347 = vld [vmem:[%s293 + $0x1c] sm:$0xf]
      %v348 = vunpack.c.l.bf16 %v340
      %v349 = vunpack.c.l.bf16 %v341
      %v350 = vunpack.c.l.bf16 %v342
      %v351 = vunpack.c.l.bf16 %v343
      %v352 = vunpack.c.l.bf16 %v344
      %v353 = vunpack.c.l.bf16 %v345
      %v354 = vunpack.c.l.bf16 %v346
      %v355 = vunpack.c.l.bf16 %v347
      %356 = vst [vmem:[%s323 + $0x1] sm:$0xff] %v348
      %357 = vst [vmem:[%s323 + $0x11] sm:$0xff] %v349
      %358 = vst [vmem:[%s323 + $0x21] sm:$0xff] %v350
      %359 = vst [vmem:[%s323 + $0x31] sm:$0xff] %v351
      %360 = vst [vmem:[%s323 + $0x41] sm:$0xff] %v352
      %361 = vst [vmem:[%s323 + $0x51] sm:$0xff] %v353
      %362 = vst [vmem:[%s323 + $0x61] sm:$0xff] %v354
      %363 = vst [vmem:[%s323 + $0x71] sm:$0xff] %v355
      %v364 = vld [vmem:[%s297] sm:$0xff]
      %v365 = vld [vmem:[%s297 + $0x8] sm:$0x1]
      %v366 = vld [vmem:[#allocation2] sm:$0xff]
      %v367 = vld [vmem:[#allocation2 + $0x10] sm:$0xff]
      %v368 = vld [vmem:[#allocation2 + $0x20] sm:$0xff]
      %v369 = vld [vmem:[#allocation2 + $0x30] sm:$0xff]
      %v370 = vld [vmem:[#allocation2 + $0x40] sm:$0xff]
      %v371 = vld [vmem:[#allocation2 + $0x50] sm:$0xff]
      %v372 = vld [vmem:[#allocation2 + $0x60] sm:$0xff]
      %v373 = vld [vmem:[#allocation2 + $0x70] sm:$0xff]
      %v374 = vlaneseq
      %v375 = vshrl.u32 %v374, 7
      %v376 = vsub.s32 0, %v375
      %v377 = vrot.slane %v364, %v376
      %v378 = vmul.f32 %v366, %v377
      %v379 = vmul.f32 %v367, %v377
      %v380 = vmul.f32 %v368, %v377
      %v381 = vmul.f32 %v369, %v377
      %v382 = vmul.f32 %v370, %v377
      %v383 = vmul.f32 %v371, %v377
      %v384 = vmul.f32 %v372, %v377
      %v385 = vmul.f32 %v373, %v377
      %v386 = vld [vmem:[#allocation2 + $0x1] sm:$0xff]
      %v387 = vld [vmem:[#allocation2 + $0x11] sm:$0xff]
      %v388 = vld [vmem:[#allocation2 + $0x21] sm:$0xff]
      %v389 = vld [vmem:[#allocation2 + $0x31] sm:$0xff]
      %v390 = vld [vmem:[#allocation2 + $0x41] sm:$0xff]
      %v391 = vld [vmem:[#allocation2 + $0x51] sm:$0xff]
      %v392 = vld [vmem:[#allocation2 + $0x61] sm:$0xff]
      %v393 = vld [vmem:[#allocation2 + $0x71] sm:$0xff]
      %v394 = vlaneseq
      %v395 = vshrl.u32 %v394, 7
      %v396 = vsub.s32 1, %v395
      %v397 = vrot.slane %v364, %v396
      %v398 = vmul.f32 %v386, %v397
      %v399 = vmul.f32 %v387, %v397
      %v400 = vmul.f32 %v388, %v397
      %v401 = vmul.f32 %v389, %v397
      %v402 = vmul.f32 %v390, %v397
      %v403 = vmul.f32 %v391, %v397
      %v404 = vmul.f32 %v392, %v397
      %v405 = vmul.f32 %v393, %v397
      %v406 = vadd.f32 %v378, %v398
      %v407 = vadd.f32 %v379, %v399
      %v408 = vadd.f32 %v380, %v400
      %v409 = vadd.f32 %v381, %v401
      %v410 = vadd.f32 %v382, %v402
      %v411 = vadd.f32 %v383, %v403
      %v412 = vadd.f32 %v384, %v404
      %v413 = vadd.f32 %v385, %v405
      %v414 = vld [vmem:[#allocation2 + $0x2] sm:$0xff]
      %v415 = vld [vmem:[#allocation2 + $0x12] sm:$0xff]
      %v416 = vld [vmem:[#allocation2 + $0x22] sm:$0xff]
      %v417 = vld [vmem:[#allocation2 + $0x32] sm:$0xff]
      %v418 = vld [vmem:[#allocation2 + $0x42] sm:$0xff]
      %v419 = vld [vmem:[#allocation2 + $0x52] sm:$0xff]
      %v420 = vld [vmem:[#allocation2 + $0x62] sm:$0xff]
      %v421 = vld [vmem:[#allocation2 + $0x72] sm:$0xff]
      %v422 = vlaneseq
      %v423 = vshrl.u32 %v422, 7
      %v424 = vsub.s32 2, %v423
      %v425 = vrot.slane %v364, %v424
      %v426 = vmul.f32 %v414, %v425
      %v427 = vmul.f32 %v415, %v425
      %v428 = vmul.f32 %v416, %v425
      %v429 = vmul.f32 %v417, %v425
      %v430 = vmul.f32 %v418, %v425
      %v431 = vmul.f32 %v419, %v425
      %v432 = vmul.f32 %v420, %v425
      %v433 = vmul.f32 %v421, %v425
      %v434 = vadd.f32 %v406, %v426
      %v435 = vadd.f32 %v407, %v427
      %v436 = vadd.f32 %v408, %v428
      %v437 = vadd.f32 %v409, %v429
      %v438 = vadd.f32 %v410, %v430
      %v439 = vadd.f32 %v411, %v431
      %v440 = vadd.f32 %v412, %v432
      %v441 = vadd.f32 %v413, %v433
      %v442 = vld [vmem:[%s323] sm:$0xff]
      %v443 = vld [vmem:[%s323 + $0x10] sm:$0xff]
      %v444 = vld [vmem:[%s323 + $0x20] sm:$0xff]
      %v445 = vld [vmem:[%s323 + $0x30] sm:$0xff]
      %v446 = vld [vmem:[%s323 + $0x40] sm:$0xff]
      %v447 = vld [vmem:[%s323 + $0x50] sm:$0xff]
      %v448 = vld [vmem:[%s323 + $0x60] sm:$0xff]
      %v449 = vld [vmem:[%s323 + $0x70] sm:$0xff]
      %v450 = vlaneseq
      %v451 = vshrl.u32 %v450, 7
      %v452 = vsub.s32 3, %v451
      %v453 = vrot.slane %v364, %v452
      %v454 = vmul.f32 %v442, %v453
      %v455 = vmul.f32 %v443, %v453
      %v456 = vmul.f32 %v444, %v453
      %v457 = vmul.f32 %v445, %v453
      %v458 = vmul.f32 %v446, %v453
      %v459 = vmul.f32 %v447, %v453
      %v460 = vmul.f32 %v448, %v453
      %v461 = vmul.f32 %v449, %v453
      %v462 = vadd.f32 %v434, %v454
      %v463 = vadd.f32 %v435, %v455
      %v464 = vadd.f32 %v436, %v456
      %v465 = vadd.f32 %v437, %v457
      %v466 = vadd.f32 %v438, %v458
      %v467 = vadd.f32 %v439, %v459
      %v468 = vadd.f32 %v440, %v460
      %v469 = vadd.f32 %v441, %v461
      %v470 = vld [vmem:[%s323 + $0x1] sm:$0xff]
      %v471 = vld [vmem:[%s323 + $0x11] sm:$0xff]
      %v472 = vld [vmem:[%s323 + $0x21] sm:$0xff]
      %v473 = vld [vmem:[%s323 + $0x31] sm:$0xff]
      %v474 = vld [vmem:[%s323 + $0x41] sm:$0xff]
      %v475 = vld [vmem:[%s323 + $0x51] sm:$0xff]
      %v476 = vld [vmem:[%s323 + $0x61] sm:$0xff]
      %v477 = vld [vmem:[%s323 + $0x71] sm:$0xff]
      %v478 = vlaneseq
      %v479 = vshrl.u32 %v478, 7
      %v480 = vsub.s32 4, %v479
      %v481 = vrot.slane %v364, %v480
      %v482 = vmul.f32 %v470, %v481
      %v483 = vmul.f32 %v471, %v481
      %v484 = vmul.f32 %v472, %v481
      %v485 = vmul.f32 %v473, %v481
      %v486 = vmul.f32 %v474, %v481
      %v487 = vmul.f32 %v475, %v481
      %v488 = vmul.f32 %v476, %v481
      %v489 = vmul.f32 %v477, %v481
      %v490 = vadd.f32 %v462, %v482
      %v491 = vadd.f32 %v463, %v483
      %v492 = vadd.f32 %v464, %v484
      %v493 = vadd.f32 %v465, %v485
      %v494 = vadd.f32 %v466, %v486
      %v495 = vadd.f32 %v467, %v487
      %v496 = vadd.f32 %v468, %v488
      %v497 = vadd.f32 %v469, %v489
      %v498 = vld [vmem:[%s323 + $0x2] sm:$0xff]
      %v499 = vld [vmem:[%s323 + $0x12] sm:$0xff]
      %v500 = vld [vmem:[%s323 + $0x22] sm:$0xff]
      %v501 = vld [vmem:[%s323 + $0x32] sm:$0xff]
      %v502 = vld [vmem:[%s323 + $0x42] sm:$0xff]
      %v503 = vld [vmem:[%s323 + $0x52] sm:$0xff]
      %v504 = vld [vmem:[%s323 + $0x62] sm:$0xff]
      %v505 = vld [vmem:[%s323 + $0x72] sm:$0xff]
      %v506 = vlaneseq
      %v507 = vshrl.u32 %v506, 7
      %v508 = vsub.s32 5, %v507
      %v509 = vrot.slane %v364, %v508
      %v510 = vmul.f32 %v498, %v509
      %v511 = vmul.f32 %v499, %v509
      %v512 = vmul.f32 %v500, %v509
      %v513 = vmul.f32 %v501, %v509
      %v514 = vmul.f32 %v502, %v509
      %v515 = vmul.f32 %v503, %v509
      %v516 = vmul.f32 %v504, %v509
      %v517 = vmul.f32 %v505, %v509
      %v518 = vadd.f32 %v490, %v510
      %v519 = vadd.f32 %v491, %v511
      %v520 = vadd.f32 %v492, %v512
      %v521 = vadd.f32 %v493, %v513
      %v522 = vadd.f32 %v494, %v514
      %v523 = vadd.f32 %v495, %v515
      %v524 = vadd.f32 %v496, %v516
      %v525 = vadd.f32 %v497, %v517
      %s526 = scalar_lea.vmem [#allocation2], 32
      %v527 = vld [vmem:[%s526] sm:$0xff]
      %v528 = vld [vmem:[%s526 + $0x10] sm:$0xff]
      %v529 = vld [vmem:[%s526 + $0x20] sm:$0xff]
      %v530 = vld [vmem:[%s526 + $0x30] sm:$0xff]
      %v531 = vld [vmem:[%s526 + $0x40] sm:$0xff]
      %v532 = vld [vmem:[%s526 + $0x50] sm:$0xff]
      %v533 = vld [vmem:[%s526 + $0x60] sm:$0xff]
      %v534 = vld [vmem:[%s526 + $0x70] sm:$0xff]
      %v535 = vlaneseq
      %v536 = vshrl.u32 %v535, 7
      %v537 = vsub.s32 6, %v536
      %v538 = vrot.slane %v364, %v537
      %v539 = vmul.f32 %v527, %v538
      %v540 = vmul.f32 %v528, %v538
      %v541 = vmul.f32 %v529, %v538
      %v542 = vmul.f32 %v530, %v538
      %v543 = vmul.f32 %v531, %v538
      %v544 = vmul.f32 %v532, %v538
      %v545 = vmul.f32 %v533, %v538
      %v546 = vmul.f32 %v534, %v538
      %v547 = vadd.f32 %v518, %v539
      %v548 = vadd.f32 %v519, %v540
      %v549 = vadd.f32 %v520, %v541
      %v550 = vadd.f32 %v521, %v542
      %v551 = vadd.f32 %v522, %v543
      %v552 = vadd.f32 %v523, %v544
      %v553 = vadd.f32 %v524, %v545
      %v554 = vadd.f32 %v525, %v546
      %v555 = vld [vmem:[%s526 + $0x1] sm:$0xff]
      %v556 = vld [vmem:[%s526 + $0x11] sm:$0xff]
      %v557 = vld [vmem:[%s526 + $0x21] sm:$0xff]
      %v558 = vld [vmem:[%s526 + $0x31] sm:$0xff]
      %v559 = vld [vmem:[%s526 + $0x41] sm:$0xff]
      %v560 = vld [vmem:[%s526 + $0x51] sm:$0xff]
      %v561 = vld [vmem:[%s526 + $0x61] sm:$0xff]
      %v562 = vld [vmem:[%s526 + $0x71] sm:$0xff]
      %v563 = vlaneseq
      %v564 = vshrl.u32 %v563, 7
      %v565 = vsub.s32 7, %v564
      %v566 = vrot.slane %v364, %v565
      %v567 = vmul.f32 %v555, %v566
      %v568 = vmul.f32 %v556, %v566
      %v569 = vmul.f32 %v557, %v566
      %v570 = vmul.f32 %v558, %v566
      %v571 = vmul.f32 %v559, %v566
      %v572 = vmul.f32 %v560, %v566
      %v573 = vmul.f32 %v561, %v566
      %v574 = vmul.f32 %v562, %v566
      %v575 = vadd.f32 %v547, %v567
      %v576 = vadd.f32 %v548, %v568
      %v577 = vadd.f32 %v549, %v569
      %v578 = vadd.f32 %v550, %v570
      %v579 = vadd.f32 %v551, %v571
      %v580 = vadd.f32 %v552, %v572
      %v581 = vadd.f32 %v553, %v573
      %v582 = vadd.f32 %v554, %v574
      %v583 = vld [vmem:[%s526 + $0x2] sm:$0xff]
      %v584 = vld [vmem:[%s526 + $0x12] sm:$0xff]
      %v585 = vld [vmem:[%s526 + $0x22] sm:$0xff]
      %v586 = vld [vmem:[%s526 + $0x32] sm:$0xff]
      %v587 = vld [vmem:[%s526 + $0x42] sm:$0xff]
      %v588 = vld [vmem:[%s526 + $0x52] sm:$0xff]
      %v589 = vld [vmem:[%s526 + $0x62] sm:$0xff]
      %v590 = vld [vmem:[%s526 + $0x72] sm:$0xff]
      %v591 = vlaneseq
      %v592 = vshrl.u32 %v591, 7
      %v593 = vsub.s32 0, %v592
      %v594 = vrot.slane %v365, %v593
      %v595 = vmul.f32 %v583, %v594
      %v596 = vmul.f32 %v584, %v594
      %v597 = vmul.f32 %v585, %v594
      %v598 = vmul.f32 %v586, %v594
      %v599 = vmul.f32 %v587, %v594
      %v600 = vmul.f32 %v588, %v594
      %v601 = vmul.f32 %v589, %v594
      %v602 = vmul.f32 %v590, %v594
      %v603 = vadd.f32 %v575, %v595
      %v604 = vadd.f32 %v576, %v596
      %v605 = vadd.f32 %v577, %v597
      %v606 = vadd.f32 %v578, %v598
      %v607 = vadd.f32 %v579, %v599
      %v608 = vadd.f32 %v580, %v600
      %v609 = vadd.f32 %v581, %v601
      %v610 = vadd.f32 %v582, %v602
      %v611 = vld [vmem:[%s300] sm:$0x1]
      %v613 = vlaneseq
      %v614 = vshrl.u32 %v613, 7
      %v615 = vsub.s32 0, %v614
      %v616 = vrot.slane %v611, %v615
      %v618 = vmul.f32 %v603, %v616
      %v619 = vmul.f32 %v604, %v616
      %v620 = vmul.f32 %v605, %v616
      %v621 = vmul.f32 %v606, %v616
      %v622 = vmul.f32 %v607, %v616
      %v623 = vmul.f32 %v608, %v616
      %v624 = vmul.f32 %v609, %v616
      %v625 = vmul.f32 %v610, %v616
      %v626 = vld [vmem:[%s303] sm:$0x1]
      %v628 = vlaneseq
      %v629 = vshrl.u32 %v628, 7
      %v630 = vsub.s32 0, %v629
      %v631 = vrot.slane %v626, %v630
      %v633 = vadd.f32 %v618, %v631
      %v634 = vadd.f32 %v619, %v631
      %v635 = vadd.f32 %v620, %v631
      %v636 = vadd.f32 %v621, %v631
      %v637 = vadd.f32 %v622, %v631
      %v638 = vadd.f32 %v623, %v631
      %v639 = vadd.f32 %v624, %v631
      %v640 = vadd.f32 %v625, %v631
      %v641 = vxor.u32 %v633, 2147483648
      %v642 = vxor.u32 %v634, 2147483648
      %v643 = vxor.u32 %v635, 2147483648
      %v644 = vxor.u32 %v636, 2147483648
      %v645 = vxor.u32 %v637, 2147483648
      %v646 = vxor.u32 %v638, 2147483648
      %v647 = vxor.u32 %v639, 2147483648
      %v648 = vxor.u32 %v640, 2147483648
      %v649 = vmul.f32 %v641, 1.442695
      %v650 = vpow.pop %v649
      %v651 = vmul.f32 %v642, 1.442695
      %v652 = vpow.pop %v651
      %v653 = vmul.f32 %v643, 1.442695
      %v654 = vpow.pop %v653
      %v655 = vmul.f32 %v644, 1.442695
      %v656 = vpow.pop %v655
      %v657 = vmul.f32 %v645, 1.442695
      %v658 = vpow.pop %v657
      %v659 = vmul.f32 %v646, 1.442695
      %v660 = vpow.pop %v659
      %v661 = vmul.f32 %v647, 1.442695
      %v662 = vpow.pop %v661
      %v663 = vmul.f32 %v648, 1.442695
      %v664 = vpow.pop %v663
      %v665 = vadd.f32 %v650, 1.0
      %v666 = vadd.f32 %v652, 1.0
      %v667 = vadd.f32 %v654, 1.0
      %v668 = vadd.f32 %v656, 1.0
      %v669 = vadd.f32 %v658, 1.0
      %v670 = vadd.f32 %v660, 1.0
      %v671 = vadd.f32 %v662, 1.0
      %v672 = vadd.f32 %v664, 1.0
      %v673 = vrcp.pop %v665
      %v674 = vmul.f32 1.0, %v673
      %v675 = vrcp.pop %v666
      %v676 = vmul.f32 1.0, %v675
      %v677 = vrcp.pop %v667
      %v678 = vmul.f32 1.0, %v677
      %v679 = vrcp.pop %v668
      %v680 = vmul.f32 1.0, %v679
      %v681 = vrcp.pop %v669
      %v682 = vmul.f32 1.0, %v681
      %v683 = vrcp.pop %v670
      %v684 = vmul.f32 1.0, %v683
      %v685 = vrcp.pop %v671
      %v686 = vmul.f32 1.0, %v685
      %v687 = vrcp.pop %v672
      %v688 = vmul.f32 1.0, %v687
      %v689 = vmul.f32 %v633, %v674
      %v690 = vmul.f32 %v634, %v676
      %v691 = vmul.f32 %v635, %v678
      %v692 = vmul.f32 %v636, %v680
      %v693 = vmul.f32 %v637, %v682
      %v694 = vmul.f32 %v638, %v684
      %v695 = vmul.f32 %v639, %v686
      %v696 = vmul.f32 %v640, %v688
      %v697 = vpack.c.bf16 %v689, %v689
      %v698 = vpack.c.bf16 %v690, %v690
      %v699 = vpack.c.bf16 %v691, %v691
      %v700 = vpack.c.bf16 %v692, %v692
      %v701 = vpack.c.bf16 %v693, %v693
      %v702 = vpack.c.bf16 %v694, %v694
      %v703 = vpack.c.bf16 %v695, %v695
      %v704 = vpack.c.bf16 %v696, %v696
      %705 = vst [vmem:[%s311] sm:$0xf] %v697
      %706 = vst [vmem:[%s311 + $0x4] sm:$0xf] %v698
      %707 = vst [vmem:[%s311 + $0x8] sm:$0xf] %v699
      %708 = vst [vmem:[%s311 + $0xc] sm:$0xf] %v700
      %709 = vst [vmem:[%s311 + $0x10] sm:$0xf] %v701
      %710 = vst [vmem:[%s311 + $0x14] sm:$0xf] %v702
      %711 = vst [vmem:[%s311 + $0x18] sm:$0xf] %v703
      %712 = vst [vmem:[%s311 + $0x1c] sm:$0xf] %v704
      %v713 = vadd.f32 %v689, %v690
      %v714 = vadd.f32 %v713, %v691
      %v715 = vadd.f32 %v714, %v692
      %v716 = vadd.f32 %v715, %v693
      %v717 = vadd.f32 %v716, %v694
      %v718 = vadd.f32 %v717, %v695
      %v719 = vadd.f32 %v718, %v696
      %v720 = vrot.slane %v719, 4
      %v721 = vadd.f32 %v719, %v720
      %v722 = vrot.slane %v721, 2
      %v723 = vadd.f32 %v721, %v722
      %v724 = vrot.slane %v723, 1
      %v725 = vadd.f32 %v723, %v724
      %v726 = vmul.f32 %v725, 0.015625
      %727 = vst [vmem:[%s317] sm:$0x1] %v726
      %p728 = scmp.lt.s32.totalorder %s21, 1
      %s729 = scalar_select %p728, %s21, 1
      %p730 = scmp.lt.s32.totalorder %s22, 0
      %s731 = scalar_select %p730, %s22, 0
      %s732 = smul.addr %s729, 8
      %s733 = sadd.s32 %s731, %s732
      %s734 = smul.addr %s733, 4
      %s735 = scalar_lea.vmem %s4, %s734
      %p736 = scmp.lt.s32.totalorder %s21, 1
      %s737 = scalar_select %p736, %s21, 1
      %p738 = scmp.lt.s32.totalorder %s22, 0
      %s739 = scalar_select %p738, %s22, 0
      %s740 = sadd.s32 %s739, %s737
      %s741 = scalar_lea.vmem %s5, %s740
      // Predicated region
      $region37: #{_lambda_.13} parent=35 // pred_check
        %p742 = pneg %p155
      $region38: #{_lambda_.13} parent=35 // pred_check_branch
        %744 = sbr.rel (%p742) target = $region40
      $region39: #{_lambda_.13} parent=35 // pred_region
        _
      $region40: #{_lambda_.13} parent=35 // pred_fallthru
        _
      // Predicated region
      $region41: #{_lambda_.13} parent=35 // pred_check
        %p745 = pneg %p183
      $region42: #{_lambda_.13} parent=35 // pred_check_branch
        %747 = sbr.rel (%p745) target = $region44
      $region43: #{_lambda_.13} parent=35 // pred_region
        _
      $region44: #{_lambda_.13} parent=35 // pred_fallthru
        _
    $region36: #{_lambda_.13} parent=5 // pred_fallthru
      _
    %p748 = scmp.le.s32.totalorder 2, %s12
    // Predicated region
    $region45: #{_lambda_.13} parent=5 // pred_check
      %p749 = pneg %p748
    $region46: #{_lambda_.13} parent=5 // pred_check_branch
      %751 = sbr.rel (%p749) target = $region48
    $region47: #{_lambda_.13} parent=5 // pred_region
      %s752 = ssub.s32 %s12, 2
      // Predicated region
      $region49: #{_lambda_.13} parent=47 // pred_check
        %p753 = pneg %p161
      $region50: #{_lambda_.13} parent=47 // pred_check_branch
        %755 = sbr.rel (%p753) target = $region52
      $region51: #{_lambda_.13} parent=47 // pred_region
        %p756 = scmp.lt.s32.totalorder %s23, 1
        %s757 = scalar_select %p756, %s23, 1
        %p758 = scmp.lt.s32.totalorder %s24, 0
        %s759 = scalar_select %p758, %s24, 0
        %s760 = smul.addr %s757, 8
        %s761 = sadd.s32 %s759, %s760
        %s762 = smul.addr %s761, 4
        %s763 = scalar_lea.vmem %s4, %s762
      $region52: #{_lambda_.13} parent=47 // pred_fallthru
        _
      // Predicated region
      $region53: #{_lambda_.13} parent=47 // pred_check
        %p764 = pneg %p189
      $region54: #{_lambda_.13} parent=47 // pred_check_branch
        %766 = sbr.rel (%p764) target = $region56
      $region55: #{_lambda_.13} parent=47 // pred_region
        %p767 = scmp.lt.s32.totalorder %s23, 1
        %s768 = scalar_select %p767, %s23, 1
        %p769 = scmp.lt.s32.totalorder %s24, 0
        %s770 = scalar_select %p769, %s24, 0
        %s771 = sadd.s32 %s770, %s768
        %s772 = scalar_lea.vmem %s5, %s771
      $region56: #{_lambda_.13} parent=47 // pred_fallthru
        _
    $region48: #{_lambda_.13} parent=5 // pred_fallthru
      _
  $region6: #{_lambda_.13} parent=0 // loop_footer
    %s16 = sadd.s32 1, %s12
  $region7: #{_lambda_.13} parent=0 // loop_footer_branch
    %11 = sbr.rel target = $region3
  $region8: #{_lambda_.13} parent=0 // loop_exit
    _

// kernel: _lambda_.14
$region0: #{_lambda_.14}
  #allocation0 [shape = 'u32[]', space=smem, size = 0x4, offset = 0x4, fixed_abs, tag = 'smem constant byte address 0x4 - core index']
  #allocation1 [shape = 'u32[144,128]{1,0:T(1,128)}', space=vmem, size = 0x12000, scoped, tag = 'internal scratch']
  %s0 = inlined_call_operand.vmem [shape: f32[2,1,128], index: 0, kind: input, shape index: {}]
  %s1 = inlined_call_operand.vmem [shape: bf16[128,128], index: 1, kind: input, shape index: {}]
  %s2 = inlined_call_operand.vmem [shape: f32[1,128], index: 2, kind: input, shape index: {}]
  %s3 = inlined_call_operand.vmem [shape: bf16[128,128], index: 3, kind: input, shape index: {}]
  %s4 = inlined_call_operand.vmem [shape: f32[1,128], index: 4, kind: input, shape index: {}]
  %s5 = inlined_call_operand.vmem [shape: bf16[2,1,128], index: 5, kind: output, shape index: {}]
  %s6 = sld [smem:[#allocation0]]
  $region53: #{_lambda_.14} parent=0
    _
  %s8 = ssub.s32 1, %s6
  %s9 = scalar_select 0, %s8, %s6
  loop: start=0, step=1, limit=4
  $region2: #{_lambda_.14} parent=0 // loop_pre_header
    _
  $region3: #{_lambda_.14} parent=0 // loop_header
    %s11 = sphi 0, %s15
    %p12 = scmp.ge.s32.totalorder %s11, 4
    %s21 = sphi 0, %s23
    %s24 = sphi 0, %s21
    %s25 = sphi 0, %s24
    %s41 = sphi 0, %s25
    %s45 = sphi 0, %s45
    %s47 = sphi 0, %s45
    %s48 = sphi 0, %s47
    %s62 = sphi 0, %s48
    %s66 = sphi 0, %s66
    %s68 = sphi 0, %s66
    %s69 = sphi 0, %s68
    %s83 = sphi 0, %s69
    %s87 = sphi 0, %s87
    %s89 = sphi 0, %s87
    %s90 = sphi 0, %s89
    %s104 = sphi 0, %s90
    %s108 = sphi 0, %s108
    %s110 = sphi 0, %s108
    %s111 = sphi 0, %s110
    %s125 = sphi 0, %s111
    %s131 = sphi 0, %s133
    %s134 = sphi 0, %s131
    %s135 = sphi 0, %s134
    %s151 = sphi 0, %s135
  $region4: #{_lambda_.14} parent=0 // loop_header_branch
    %14 = sbr.rel (%p12) target = $region8
  $region5: #{_lambda_.14} parent=0 // loop_body
    %s16 = ssub.s32 %s11, 1
    %s17 = ssub.s32 %s11, 2
    %s18 = sadd.s32 %s11, 1
    %s19 = ssub.s32 %s11, %s18
    %p20 = scmp.eq.s32.totalorder %s19, 0
    %s22 = sadd.s32 %s21, 1
    %s23 = scalar_select %p20, %s21, %s22
    %p26 = pneg %p20
    %p27 = scmp.eq.s32.totalorder %s11, 1
    %p28 = por %p26, %p27
    %p29 = scmp.ne.s32.totalorder %s21, %s24
    %p30 = scmp.eq.s32.totalorder %s11, 0
    %p31 = por %p29, %p30
    %p32 = scmp.ne.s32.totalorder %s21, %s24
    %p33 = scmp.eq.s32.totalorder %s16, 1
    %p34 = por %p32, %p33
    %p35 = scmp.ne.s32.totalorder %s24, %s25
    %p36 = scmp.eq.s32.totalorder %s16, 0
    %p37 = por %p35, %p36
    %p38 = scmp.ne.s32.totalorder %s24, %s25
    %p39 = scmp.eq.s32.totalorder %s17, 1
    %p40 = por %p38, %p39
    %p42 = scmp.ne.s32.totalorder %s25, %s41
    %p43 = scmp.eq.s32.totalorder %s17, 0
    %p44 = por %p42, %p43
    %s46 = sadd.s32 %s45, 1
    %p49 = scmp.eq.s32.totalorder %s11, 1
    %p50 = scmp.ne.s32.totalorder %s45, %s47
    %p51 = scmp.eq.s32.totalorder %s11, 0
    %p52 = por %p50, %p51
    %p53 = scmp.ne.s32.totalorder %s45, %s47
    %p54 = scmp.eq.s32.totalorder %s16, 1
    %p55 = por %p53, %p54
    %p56 = scmp.ne.s32.totalorder %s47, %s48
    %p57 = scmp.eq.s32.totalorder %s16, 0
    %p58 = por %p56, %p57
    %p59 = scmp.ne.s32.totalorder %s47, %s48
    %p60 = scmp.eq.s32.totalorder %s17, 1
    %p61 = por %p59, %p60
    %p63 = scmp.ne.s32.totalorder %s48, %s62
    %p64 = scmp.eq.s32.totalorder %s17, 0
    %p65 = por %p63, %p64
    %s67 = sadd.s32 %s66, 1
    %p70 = scmp.eq.s32.totalorder %s11, 1
    %p71 = scmp.ne.s32.totalorder %s66, %s68
    %p72 = scmp.eq.s32.totalorder %s11, 0
    %p73 = por %p71, %p72
    %p74 = scmp.ne.s32.totalorder %s66, %s68
    %p75 = scmp.eq.s32.totalorder %s16, 1
    %p76 = por %p74, %p75
    %p77 = scmp.ne.s32.totalorder %s68, %s69
    %p78 = scmp.eq.s32.totalorder %s16, 0
    %p79 = por %p77, %p78
    %p80 = scmp.ne.s32.totalorder %s68, %s69
    %p81 = scmp.eq.s32.totalorder %s17, 1
    %p82 = por %p80, %p81
    %p84 = scmp.ne.s32.totalorder %s69, %s83
    %p85 = scmp.eq.s32.totalorder %s17, 0
    %p86 = por %p84, %p85
    %s88 = sadd.s32 %s87, 1
    %p91 = scmp.eq.s32.totalorder %s11, 1
    %p92 = scmp.ne.s32.totalorder %s87, %s89
    %p93 = scmp.eq.s32.totalorder %s11, 0
    %p94 = por %p92, %p93
    %p95 = scmp.ne.s32.totalorder %s87, %s89
    %p96 = scmp.eq.s32.totalorder %s16, 1
    %p97 = por %p95, %p96
    %p98 = scmp.ne.s32.totalorder %s89, %s90
    %p99 = scmp.eq.s32.totalorder %s16, 0
    %p100 = por %p98, %p99
    %p101 = scmp.ne.s32.totalorder %s89, %s90
    %p102 = scmp.eq.s32.totalorder %s17, 1
    %p103 = por %p101, %p102
    %p105 = scmp.ne.s32.totalorder %s90, %s104
    %p106 = scmp.eq.s32.totalorder %s17, 0
    %p107 = por %p105, %p106
    %s109 = sadd.s32 %s108, 1
    %p112 = scmp.eq.s32.totalorder %s11, 1
    %p113 = scmp.ne.s32.totalorder %s108, %s110
    %p114 = scmp.eq.s32.totalorder %s11, 0
    %p115 = por %p113, %p114
    %p116 = scmp.ne.s32.totalorder %s108, %s110
    %p117 = scmp.eq.s32.totalorder %s16, 1
    %p118 = por %p116, %p117
    %p119 = scmp.ne.s32.totalorder %s110, %s111
    %p120 = scmp.eq.s32.totalorder %s16, 0
    %p121 = por %p119, %p120
    %p122 = scmp.ne.s32.totalorder %s110, %s111
    %p123 = scmp.eq.s32.totalorder %s17, 1
    %p124 = por %p122, %p123
    %p126 = scmp.ne.s32.totalorder %s111, %s125
    %p127 = scmp.eq.s32.totalorder %s17, 0
    %p128 = por %p126, %p127
    %s129 = ssub.s32 %s11, %s18
    %p130 = scmp.eq.s32.totalorder %s129, 0
    %s132 = sadd.s32 %s131, 1
    %s133 = scalar_select %p130, %s131, %s132
    %p136 = pneg %p130
    %p137 = scmp.eq.s32.totalorder %s11, 1
    %p138 = por %p136, %p137
    %p139 = scmp.ne.s32.totalorder %s131, %s134
    %p140 = scmp.eq.s32.totalorder %s11, 0
    %p141 = por %p139, %p140
    %p142 = scmp.ne.s32.totalorder %s131, %s134
    %p143 = scmp.eq.s32.totalorder %s16, 1
    %p144 = por %p142, %p143
    %p145 = scmp.ne.s32.totalorder %s134, %s135
    %p146 = scmp.eq.s32.totalorder %s16, 0
    %p147 = por %p145, %p146
    %p148 = scmp.ne.s32.totalorder %s134, %s135
    %p149 = scmp.eq.s32.totalorder %s17, 1
    %p150 = por %p148, %p149
    %p152 = scmp.ne.s32.totalorder %s135, %s151
    %p153 = scmp.eq.s32.totalorder %s17, 0
    %p154 = por %p152, %p153
    %p155 = scmp.le.s32.totalorder 1, %s11
    %p156 = scmp.lt.s32.totalorder %s11, 3
    %p157 = pnand %p155, %p156
    %p158 = pneg %p157
    // Predicated region
    $region9: #{_lambda_.14} parent=5 // pred_check
      _
    $region10: #{_lambda_.14} parent=5 // pred_check_branch
      %160 = sbr.rel (%p157) target = $region12
    $region11: #{_lambda_.14} parent=5 // pred_region
      %s161 = ssub.s32 %s11, 1
      // Predicated region
      $region13: #{_lambda_.14} parent=11 // pred_check
        %p162 = pneg %p58
      $region14: #{_lambda_.14} parent=11 // pred_check_branch
        %164 = sbr.rel (%p162) target = $region16
      $region15: #{_lambda_.14} parent=11 // pred_region
        _
      $region16: #{_lambda_.14} parent=11 // pred_fallthru
        _
      // Predicated region
      $region17: #{_lambda_.14} parent=11 // pred_check
        %p165 = pneg %p79
      $region18: #{_lambda_.14} parent=11 // pred_check_branch
        %167 = sbr.rel (%p165) target = $region20
      $region19: #{_lambda_.14} parent=11 // pred_region
        _
      $region20: #{_lambda_.14} parent=11 // pred_fallthru
        _
      // Predicated region
      $region21: #{_lambda_.14} parent=11 // pred_check
        %p168 = pneg %p100
      $region22: #{_lambda_.14} parent=11 // pred_check_branch
        %170 = sbr.rel (%p168) target = $region24
      $region23: #{_lambda_.14} parent=11 // pred_region
        _
      $region24: #{_lambda_.14} parent=11 // pred_fallthru
        _
      // Predicated region
      $region25: #{_lambda_.14} parent=11 // pred_check
        %p171 = pneg %p121
      $region26: #{_lambda_.14} parent=11 // pred_check_branch
        %173 = sbr.rel (%p171) target = $region28
      $region27: #{_lambda_.14} parent=11 // pred_region
        _
      $region28: #{_lambda_.14} parent=11 // pred_fallthru
        _
    $region12: #{_lambda_.14} parent=5 // pred_fallthru
      _
    %p174 = scmp.lt.s32.totalorder %s11, 2
    // Predicated region
    $region29: #{_lambda_.14} parent=5 // pred_check
      %p175 = pneg %p174
    $region30: #{_lambda_.14} parent=5 // pred_check_branch
      %177 = sbr.rel (%p175) target = $region32
    $region31: #{_lambda_.14} parent=5 // pred_region
      // Predicated region
      $region33: #{_lambda_.14} parent=31 // pred_check
        %p178 = pneg %p31
      $region34: #{_lambda_.14} parent=31 // pred_check_branch
        %180 = sbr.rel (%p178) target = $region36
      $region35: #{_lambda_.14} parent=31 // pred_region
        %p181 = scmp.lt.s32.totalorder %s11, 1
        %s182 = scalar_select %p181, %s11, 1
        %s183 = scalar_lea.vmem %s0, %s182
      $region36: #{_lambda_.14} parent=31 // pred_fallthru
        _
    $region32: #{_lambda_.14} parent=5 // pred_fallthru
      _
    %p184 = scmp.le.s32.totalorder 1, %s11
    %p185 = scmp.lt.s32.totalorder %s11, 3
    %p186 = pnand %p184, %p185
    %p187 = pneg %p186
    // Predicated region
    $region37: #{_lambda_.14} parent=5 // pred_check
      _
    $region38: #{_lambda_.14} parent=5 // pred_check_branch
      %189 = sbr.rel (%p186) target = $region40
    $region39: #{_lambda_.14} parent=5 // pred_region
      %s190 = ssub.s32 %s11, 1
      %p191 = scmp.lt.s32.totalorder %s16, 1
      %s192 = scalar_select %p191, %s16, 1
      %s193 = scalar_lea.vmem %s0, %s192
      %p194 = pneg %p37
      %p195 = pneg %p34
      %p196 = pneg %p58
      %p197 = pneg %p55
      %p198 = pneg %p79
      %p199 = pneg %p76
      %p200 = pneg %p100
      %p201 = pneg %p97
      %p202 = pneg %p121
      %p203 = pneg %p118
      %p204 = pneg %p147
      %p205 = pneg %p144
      %p206 = scmp.lt.s32.totalorder %s16, 1
      %s207 = scalar_select %p206, %s16, 1
      %s208 = scalar_lea.vmem %s5, %s207
      %p209 = scmp.lt.s32.totalorder %s16, 1
      %s210 = scalar_select %p209, %s16, 1
      %s211 = scalar_lea.vmem %s0, %s210
      %p212 = scmp.lt.s32.totalorder %s16, 1
      %s213 = scalar_select %p212, %s16, 1
      %s214 = scalar_lea.vmem %s5, %s213
      %v216 = vld [vmem:[%s211] sm:$0x1]
      %v217 = vpack.c.bf16 %v216, %v216
      %v218 = vld [vmem:[%s1] sm:$0xf]
      %v219 = vld [vmem:[%s1 + $0x4] sm:$0xf]
      %v220 = vld [vmem:[%s1 + $0x8] sm:$0xf]
      %v221 = vld [vmem:[%s1 + $0xc] sm:$0xf]
      %v222 = vld [vmem:[%s1 + $0x10] sm:$0xf]
      %v223 = vld [vmem:[%s1 + $0x14] sm:$0xf]
      %v224 = vld [vmem:[%s1 + $0x18] sm:$0xf]
      %v225 = vld [vmem:[%s1 + $0x1c] sm:$0xf]
      %v226 = vld [vmem:[%s1 + $0x20] sm:$0xf]
      %v227 = vld [vmem:[%s1 + $0x24] sm:$0xf]
      %v228 = vld [vmem:[%s1 + $0x28] sm:$0xf]
      %v229 = vld [vmem:[%s1 + $0x2c] sm:$0xf]
      %v230 = vld [vmem:[%s1 + $0x30] sm:$0xf]
      %v231 = vld [vmem:[%s1 + $0x34] sm:$0xf]
      %v232 = vld [vmem:[%s1 + $0x38] sm:$0xf]
      %v233 = vld [vmem:[%s1 + $0x3c] sm:$0xf]
      %v234 = vld [vmem:[%s2] sm:$0x1]
      %v251 = vunpack.c.l.b16 %v218
      %v252 = vunpack.c.l.b16 %v219
      %v253 = vunpack.c.l.b16 %v220
      %v254 = vunpack.c.l.b16 %v221
      %v255 = vunpack.c.l.b16 %v222
      %v256 = vunpack.c.l.b16 %v223
      %v257 = vunpack.c.l.b16 %v224
      %v258 = vunpack.c.l.b16 %v225
      %v259 = vunpack.c.l.b16 %v226
      %v260 = vunpack.c.l.b16 %v227
      %v261 = vunpack.c.l.b16 %v228
      %v262 = vunpack.c.l.b16 %v229
      %v263 = vunpack.c.l.b16 %v230
      %v264 = vunpack.c.l.b16 %v231
      %v265 = vunpack.c.l.b16 %v232
      %v266 = vunpack.c.l.b16 %v233
      %v267 = vpack.c.b16 %v252, %v251
      %v268 = vpack.c.b16 %v254, %v253
      %v269 = vpack.c.b16 %v256, %v255
      %v270 = vpack.c.b16 %v258, %v257
      %v271 = vpack.c.b16 %v260, %v259
      %v272 = vpack.c.b16 %v262, %v261
      %v273 = vpack.c.b16 %v264, %v263
      %v274 = vpack.c.b16 %v266, %v265
      %283 = vmatprep.subr.bf16.mxu0 0
      %284 = vmatpush1.bf16.msra.mxu0 %v267
      %285 = vmatprep.subr.bf16.mxu0 0
      %286 = vmatpush1.bf16.msra.mxu0 %v268
      %287 = vmatprep.subr.bf16.mxu0 0
      %288 = vmatpush1.bf16.msra.mxu0 %v269
      %289 = vmatprep.subr.bf16.mxu0 0
      %290 = vmatpush1.bf16.msra.mxu0 %v270
      %291 = vmatprep.subr.bf16.mxu0 0
      %292 = vmatpush1.bf16.msra.mxu0 %v271
      %293 = vmatprep.subr.bf16.mxu0 0
      %294 = vmatpush1.bf16.msra.mxu0 %v272
      %295 = vmatprep.subr.bf16.mxu0 0
      %296 = vmatpush1.bf16.msra.mxu0 %v273
      %297 = vmatprep.subr.bf16.mxu0 0
      %298 = vmatpush1.bf16.msra.mxu0 %v274
      %299 = vmatprep.subr.bf16.mxu0 0
      %300 = vmatpush1.bf16.msra.mxu0 0
      %301 = vmatprep.subr.bf16.mxu0 0
      %302 = vmatpush1.bf16.msra.mxu0 0
      %303 = vmatprep.subr.bf16.mxu0 0
      %304 = vmatpush1.bf16.msra.mxu0 0
      %305 = vmatprep.subr.bf16.mxu0 0
      %306 = vmatpush1.bf16.msra.mxu0 0
      %307 = vmatprep.subr.bf16.mxu0 0
      %308 = vmatpush1.bf16.msra.mxu0 0
      %309 = vmatprep.subr.bf16.mxu0 0
      %310 = vmatpush1.bf16.msra.mxu0 0
      %311 = vmatprep.subr.bf16.mxu0 0
      %312 = vmatpush1.bf16.msra.mxu0 0
      %313 = vmatprep.subr.bf16.mxu0 0
      %314 = vmatpush1.bf16.msra.mxu0 0
      %315 = vmatprep.mubr.bf16.mxu0 0
      %316 = vmatmul.mubr.bf16.gmra.mrb[0].mxu0 %v217
      %v317 = vpop.f32.mrb[0].mxu0
      %v318 = vadd.f32 %v234, %v317
      %v319 = vpop.f32.mrb[0].mxu0
      %v320 = vpop.f32.mrb[0].mxu0
      %v321 = vpop.f32.mrb[0].mxu0
      %322 = vdwg.mxu0
      %v323 = vxor.u32 %v318, 2147483648
      %v324 = vmul.f32 %v323, 1.442695
      %v325 = vpow.pop %v324
      %v326 = vadd.f32 %v325, 1.0
      %v327 = vrcp.pop %v326
      %v328 = vmul.f32 1.0, %v327
      %v329 = vmul.f32 %v318, %v328
      %v330 = vpack.c.bf16 %v329, %v329
      %v331 = vld [vmem:[%s3] sm:$0xf]
      %v332 = vld [vmem:[%s3 + $0x4] sm:$0xf]
      %v333 = vld [vmem:[%s3 + $0x8] sm:$0xf]
      %v334 = vld [vmem:[%s3 + $0xc] sm:$0xf]
      %v335 = vld [vmem:[%s3 + $0x10] sm:$0xf]
      %v336 = vld [vmem:[%s3 + $0x14] sm:$0xf]
      %v337 = vld [vmem:[%s3 + $0x18] sm:$0xf]
      %v338 = vld [vmem:[%s3 + $0x1c] sm:$0xf]
      %v339 = vld [vmem:[%s3 + $0x20] sm:$0xf]
      %v340 = vld [vmem:[%s3 + $0x24] sm:$0xf]
      %v341 = vld [vmem:[%s3 + $0x28] sm:$0xf]
      %v342 = vld [vmem:[%s3 + $0x2c] sm:$0xf]
      %v343 = vld [vmem:[%s3 + $0x30] sm:$0xf]
      %v344 = vld [vmem:[%s3 + $0x34] sm:$0xf]
      %v345 = vld [vmem:[%s3 + $0x38] sm:$0xf]
      %v346 = vld [vmem:[%s3 + $0x3c] sm:$0xf]
      %v347 = vld [vmem:[%s4] sm:$0x1]
      %v364 = vunpack.c.l.b16 %v331
      %v365 = vunpack.c.l.b16 %v332
      %v366 = vunpack.c.l.b16 %v333
      %v367 = vunpack.c.l.b16 %v334
      %v368 = vunpack.c.l.b16 %v335
      %v369 = vunpack.c.l.b16 %v336
      %v370 = vunpack.c.l.b16 %v337
      %v371 = vunpack.c.l.b16 %v338
      %v372 = vunpack.c.l.b16 %v339
      %v373 = vunpack.c.l.b16 %v340
      %v374 = vunpack.c.l.b16 %v341
      %v375 = vunpack.c.l.b16 %v342
      %v376 = vunpack.c.l.b16 %v343
      %v377 = vunpack.c.l.b16 %v344
      %v378 = vunpack.c.l.b16 %v345
      %v379 = vunpack.c.l.b16 %v346
      %v380 = vpack.c.b16 %v365, %v364
      %v381 = vpack.c.b16 %v367, %v366
      %v382 = vpack.c.b16 %v369, %v368
      %v383 = vpack.c.b16 %v371, %v370
      %v384 = vpack.c.b16 %v373, %v372
      %v385 = vpack.c.b16 %v375, %v374
      %v386 = vpack.c.b16 %v377, %v376
      %v387 = vpack.c.b16 %v379, %v378
      %396 = vmatprep.subr.bf16.mxu0 0
      %397 = vmatpush1.bf16.msra.mxu0 %v380
      %398 = vmatprep.subr.bf16.mxu0 0
      %399 = vmatpush1.bf16.msra.mxu0 %v381
      %400 = vmatprep.subr.bf16.mxu0 0
      %401 = vmatpush1.bf16.msra.mxu0 %v382
      %402 = vmatprep.subr.bf16.mxu0 0
      %403 = vmatpush1.bf16.msra.mxu0 %v383
      %404 = vmatprep.subr.bf16.mxu0 0
      %405 = vmatpush1.bf16.msra.mxu0 %v384
      %406 = vmatprep.subr.bf16.mxu0 0
      %407 = vmatpush1.bf16.msra.mxu0 %v385
      %408 = vmatprep.subr.bf16.mxu0 0
      %409 = vmatpush1.bf16.msra.mxu0 %v386
      %410 = vmatprep.subr.bf16.mxu0 0
      %411 = vmatpush1.bf16.msra.mxu0 %v387
      %412 = vmatprep.subr.bf16.mxu0 0
      %413 = vmatpush1.bf16.msra.mxu0 0
      %414 = vmatprep.subr.bf16.mxu0 0
      %415 = vmatpush1.bf16.msra.mxu0 0
      %416 = vmatprep.subr.bf16.mxu0 0
      %417 = vmatpush1.bf16.msra.mxu0 0
      %418 = vmatprep.subr.bf16.mxu0 0
      %419 = vmatpush1.bf16.msra.mxu0 0
      %420 = vmatprep.subr.bf16.mxu0 0
      %421 = vmatpush1.bf16.msra.mxu0 0
      %422 = vmatprep.subr.bf16.mxu0 0
      %423 = vmatpush1.bf16.msra.mxu0 0
      %424 = vmatprep.subr.bf16.mxu0 0
      %425 = vmatpush1.bf16.msra.mxu0 0
      %426 = vmatprep.subr.bf16.mxu0 0
      %427 = vmatpush1.bf16.msra.mxu0 0
      %428 = vmatprep.mubr.bf16.mxu0 0
      %429 = vmatmul.mubr.bf16.gmra.mrb[0].mxu0 %v330
      %v430 = vpop.f32.mrb[0].mxu0
      %v431 = vadd.f32 %v347, %v430
      %v432 = vpop.f32.mrb[0].mxu0
      %v433 = vpop.f32.mrb[0].mxu0
      %v434 = vpop.f32.mrb[0].mxu0
      %435 = vdwg.mxu0
      %v436 = vxor.u32 %v431, 2147483648
      %v437 = vmul.f32 %v436, 1.442695
      %v438 = vpow.pop %v437
      %v439 = vadd.f32 %v438, 1.0
      %v440 = vrcp.pop %v439
      %v441 = vmul.f32 1.0, %v440
      %v442 = vpack.c.bf16 %v441, %v441
      %vm443 = vcmask 1040384
      %vm444 = vsmask.f32 256
      %vm445 = vmand %vm443, %vm444
      %v446 = vld [vmem:[%s214] sm:$0x1]
      %v447 = vsel %vm445, %v442, %v446
      %448 = vst [vmem:[%s214] sm:$0x1] %v447
      %p449 = scmp.lt.s32.totalorder %s16, 1
      %s450 = scalar_select %p449, %s16, 1
      %s451 = scalar_lea.vmem %s5, %s450
      // Predicated region
      $region41: #{_lambda_.14} parent=39 // pred_check
        %p452 = pneg %p144
      $region42: #{_lambda_.14} parent=39 // pred_check_branch
        %454 = sbr.rel (%p452) target = $region44
      $region43: #{_lambda_.14} parent=39 // pred_region
        _
      $region44: #{_lambda_.14} parent=39 // pred_fallthru
        _
    $region40: #{_lambda_.14} parent=5 // pred_fallthru
      _
    %p455 = scmp.le.s32.totalorder 2, %s11
    // Predicated region
    $region45: #{_lambda_.14} parent=5 // pred_check
      %p456 = pneg %p455
    $region46: #{_lambda_.14} parent=5 // pred_check_branch
      %458 = sbr.rel (%p456) target = $region48
    $region47: #{_lambda_.14} parent=5 // pred_region
      %s459 = ssub.s32 %s11, 2
      // Predicated region
      $region49: #{_lambda_.14} parent=47 // pred_check
        %p460 = pneg %p150
      $region50: #{_lambda_.14} parent=47 // pred_check_branch
        %462 = sbr.rel (%p460) target = $region52
      $region51: #{_lambda_.14} parent=47 // pred_region
        %p463 = scmp.lt.s32.totalorder %s17, 1
        %s464 = scalar_select %p463, %s17, 1
        %s465 = scalar_lea.vmem %s5, %s464
      $region52: #{_lambda_.14} parent=47 // pred_fallthru
        _
    $region48: #{_lambda_.14} parent=5 // pred_fallthru
      _
  $region6: #{_lambda_.14} parent=0 // loop_footer
    %s15 = sadd.s32 1, %s11
  $region7: #{_lambda_.14} parent=0 // loop_footer_branch
    %10 = sbr.rel target = $region3
  $region8: #{_lambda_.14} parent=0 // loop_exit
    _

// kernel: _lambda_.11
$region0: #{_lambda_.11}
  #allocation0 [shape = 'u32[]', space=smem, size = 0x4, offset = 0x4, fixed_abs, tag = 'smem constant byte address 0x4 - core index']
  #allocation1 [shape = 'u32[144,128]{1,0:T(1,128)}', space=vmem, size = 0x12000, scoped, tag = 'internal scratch']
  #allocation2 [shape = 'f32[128,128]{1,0:T(8,128)}', space=vmem, size = 0x10000, scoped, tag = 'scratch operand']
  %s0 = inlined_call_operand.vmem [shape: bf16[128,128], index: 0, kind: input, shape index: {}]
  %s1 = inlined_call_operand.vmem [shape: bf16[128,128], index: 1, kind: input, shape index: {}]
  %s2 = inlined_call_operand.vmem [shape: f32[1,128], index: 2, kind: input, shape index: {}]
  %s3 = inlined_call_operand.vmem [shape: f32[1,128], index: 3, kind: input, shape index: {}]
  %s4 = inlined_call_operand.vmem [shape: bf16[128,128], index: 4, kind: output, shape index: {}]
  %s5 = sld [smem:[#allocation0]]
  $region34: #{_lambda_.11} parent=0
    _
  %s7 = ssub.s32 1, %s5
  %s8 = scalar_select 0, %s7, %s5
  // Predicated region
  $region2: #{_lambda_.11} parent=0 // pred_check
    _
  $region3: #{_lambda_.11} parent=0 // pred_check_branch
    %10 = sbr.rel (0) target = $region5
  $region4: #{_lambda_.11} parent=0 // pred_region
    _
  $region5: #{_lambda_.11} parent=0 // pred_fallthru
    _
  // Predicated region
  $region6: #{_lambda_.11} parent=0 // pred_check
    _
  $region7: #{_lambda_.11} parent=0 // pred_check_branch
    %12 = sbr.rel (0) target = $region9
  $region8: #{_lambda_.11} parent=0 // pred_region
    _
  $region9: #{_lambda_.11} parent=0 // pred_fallthru
    _
  // Predicated region
  $region10: #{_lambda_.11} parent=0 // pred_check
    _
  $region11: #{_lambda_.11} parent=0 // pred_check_branch
    %14 = sbr.rel (0) target = $region13
  $region12: #{_lambda_.11} parent=0 // pred_region
    _
  $region13: #{_lambda_.11} parent=0 // pred_fallthru
    _
  // Predicated region
  $region14: #{_lambda_.11} parent=0 // pred_check
    _
  $region15: #{_lambda_.11} parent=0 // pred_check_branch
    %16 = sbr.rel (0) target = $region17
  $region16: #{_lambda_.11} parent=0 // pred_region
    _
  $region17: #{_lambda_.11} parent=0 // pred_fallthru
    _
  %p18 = scmp.eq.s32.totalorder 0, 0
  // Predicated region
  $region18: #{_lambda_.11} parent=0 // pred_check
    %p19 = pneg %p18
  $region19: #{_lambda_.11} parent=0 // pred_check_branch
    %21 = sbr.rel (%p19) target = $region21
  $region20: #{_lambda_.11} parent=0 // pred_region
    %22 = vst [vmem:[#allocation2] sm:$0xff] 0.0
    %23 = vst [vmem:[#allocation2 + $0x8] sm:$0xff] 0.0
    %24 = vst [vmem:[#allocation2 + $0x10] sm:$0xff] 0.0
    %25 = vst [vmem:[#allocation2 + $0x18] sm:$0xff] 0.0
    %26 = vst [vmem:[#allocation2 + $0x20] sm:$0xff] 0.0
    %27 = vst [vmem:[#allocation2 + $0x28] sm:$0xff] 0.0
    %28 = vst [vmem:[#allocation2 + $0x30] sm:$0xff] 0.0
    %29 = vst [vmem:[#allocation2 + $0x38] sm:$0xff] 0.0
    %30 = vst [vmem:[#allocation2 + $0x40] sm:$0xff] 0.0
    %31 = vst [vmem:[#allocation2 + $0x48] sm:$0xff] 0.0
    %32 = vst [vmem:[#allocation2 + $0x50] sm:$0xff] 0.0
    %33 = vst [vmem:[#allocation2 + $0x58] sm:$0xff] 0.0
    %34 = vst [vmem:[#allocation2 + $0x60] sm:$0xff] 0.0
    %35 = vst [vmem:[#allocation2 + $0x68] sm:$0xff] 0.0
    %36 = vst [vmem:[#allocation2 + $0x70] sm:$0xff] 0.0
    %37 = vst [vmem:[#allocation2 + $0x78] sm:$0xff] 0.0
  $region21: #{_lambda_.11} parent=0 // pred_fallthru
    _
  %v38 = vld [vmem:[#allocation2] sm:$0xff]
  %v39 = vld [vmem:[#allocation2 + $0x8] sm:$0xff]
  %v40 = vld [vmem:[#allocation2 + $0x10] sm:$0xff]
  %v41 = vld [vmem:[#allocation2 + $0x18] sm:$0xff]
  %v42 = vld [vmem:[#allocation2 + $0x20] sm:$0xff]
  %v43 = vld [vmem:[#allocation2 + $0x28] sm:$0xff]
  %v44 = vld [vmem:[#allocation2 + $0x30] sm:$0xff]
  %v45 = vld [vmem:[#allocation2 + $0x38] sm:$0xff]
  %v46 = vld [vmem:[#allocation2 + $0x40] sm:$0xff]
  %v47 = vld [vmem:[#allocation2 + $0x48] sm:$0xff]
  %v48 = vld [vmem:[#allocation2 + $0x50] sm:$0xff]
  %v49 = vld [vmem:[#allocation2 + $0x58] sm:$0xff]
  %v50 = vld [vmem:[#allocation2 + $0x60] sm:$0xff]
  %v51 = vld [vmem:[#allocation2 + $0x68] sm:$0xff]
  %v52 = vld [vmem:[#allocation2 + $0x70] sm:$0xff]
  %v53 = vld [vmem:[#allocation2 + $0x78] sm:$0xff]
  %v54 = vld [vmem:[%s0] sm:$0xf]
  %v55 = vld [vmem:[%s0 + $0x4] sm:$0xf]
  %v56 = vld [vmem:[%s0 + $0x8] sm:$0xf]
  %v57 = vld [vmem:[%s0 + $0xc] sm:$0xf]
  %v58 = vld [vmem:[%s0 + $0x10] sm:$0xf]
  %v59 = vld [vmem:[%s0 + $0x14] sm:$0xf]
  %v60 = vld [vmem:[%s0 + $0x18] sm:$0xf]
  %v61 = vld [vmem:[%s0 + $0x1c] sm:$0xf]
  %v62 = vld [vmem:[%s0 + $0x20] sm:$0xf]
  %v63 = vld [vmem:[%s0 + $0x24] sm:$0xf]
  %v64 = vld [vmem:[%s0 + $0x28] sm:$0xf]
  %v65 = vld [vmem:[%s0 + $0x2c] sm:$0xf]
  %v66 = vld [vmem:[%s0 + $0x30] sm:$0xf]
  %v67 = vld [vmem:[%s0 + $0x34] sm:$0xf]
  %v68 = vld [vmem:[%s0 + $0x38] sm:$0xf]
  %v69 = vld [vmem:[%s0 + $0x3c] sm:$0xf]
  %v70 = vld [vmem:[%s1] sm:$0xf]
  %v71 = vld [vmem:[%s1 + $0x4] sm:$0xf]
  %v72 = vld [vmem:[%s1 + $0x8] sm:$0xf]
  %v73 = vld [vmem:[%s1 + $0xc] sm:$0xf]
  %v74 = vld [vmem:[%s1 + $0x10] sm:$0xf]
  %v75 = vld [vmem:[%s1 + $0x14] sm:$0xf]
  %v76 = vld [vmem:[%s1 + $0x18] sm:$0xf]
  %v77 = vld [vmem:[%s1 + $0x1c] sm:$0xf]
  %v78 = vld [vmem:[%s1 + $0x20] sm:$0xf]
  %v79 = vld [vmem:[%s1 + $0x24] sm:$0xf]
  %v80 = vld [vmem:[%s1 + $0x28] sm:$0xf]
  %v81 = vld [vmem:[%s1 + $0x2c] sm:$0xf]
  %v82 = vld [vmem:[%s1 + $0x30] sm:$0xf]
  %v83 = vld [vmem:[%s1 + $0x34] sm:$0xf]
  %v84 = vld [vmem:[%s1 + $0x38] sm:$0xf]
  %v85 = vld [vmem:[%s1 + $0x3c] sm:$0xf]
  %v102 = vunpack.c.l.b16 %v54
  %v103 = vunpack.c.l.b16 %v55
  %v104 = vunpack.c.l.b16 %v56
  %v105 = vunpack.c.l.b16 %v57
  %v106 = vunpack.c.l.b16 %v58
  %v107 = vunpack.c.l.b16 %v59
  %v108 = vunpack.c.l.b16 %v60
  %v109 = vunpack.c.l.b16 %v61
  %v110 = vunpack.c.l.b16 %v62
  %v111 = vunpack.c.l.b16 %v63
  %v112 = vunpack.c.l.b16 %v64
  %v113 = vunpack.c.l.b16 %v65
  %v114 = vunpack.c.l.b16 %v66
  %v115 = vunpack.c.l.b16 %v67
  %v116 = vunpack.c.l.b16 %v68
  %v117 = vunpack.c.l.b16 %v69
  %v118 = vpack.c.b16 %v103, %v102
  %v119 = vpack.c.b16 %v105, %v104
  %v120 = vpack.c.b16 %v107, %v106
  %v121 = vpack.c.b16 %v109, %v108
  %v122 = vpack.c.b16 %v111, %v110
  %v123 = vpack.c.b16 %v113, %v112
  %v124 = vpack.c.b16 %v115, %v114
  %v125 = vpack.c.b16 %v117, %v116
  %v150 = vunpack.c.l.b16 %v70
  %v151 = vunpack.c.l.b16 %v71
  %v152 = vunpack.c.l.b16 %v72
  %v153 = vunpack.c.l.b16 %v73
  %v154 = vunpack.c.l.b16 %v74
  %v155 = vunpack.c.l.b16 %v75
  %v156 = vunpack.c.l.b16 %v76
  %v157 = vunpack.c.l.b16 %v77
  %v158 = vunpack.c.l.b16 %v78
  %v159 = vunpack.c.l.b16 %v79
  %v160 = vunpack.c.l.b16 %v80
  %v161 = vunpack.c.l.b16 %v81
  %v162 = vunpack.c.l.b16 %v82
  %v163 = vunpack.c.l.b16 %v83
  %v164 = vunpack.c.l.b16 %v84
  %v165 = vunpack.c.l.b16 %v85
  %v166 = vpack.c.b16 %v151, %v150
  %v167 = vpack.c.b16 %v153, %v152
  %v168 = vpack.c.b16 %v155, %v154
  %v169 = vpack.c.b16 %v157, %v156
  %v170 = vpack.c.b16 %v159, %v158
  %v171 = vpack.c.b16 %v161, %v160
  %v172 = vpack.c.b16 %v163, %v162
  %v173 = vpack.c.b16 %v165, %v164
  %182 = vmatprep.subr.bf16.mxu0 0
  %183 = vmatpush1.bf16.msra.mxu0 %v166
  %184 = vmatprep.subr.bf16.mxu0 0
  %185 = vmatpush1.bf16.msra.mxu0 %v167
  %186 = vmatprep.subr.bf16.mxu0 0
  %187 = vmatpush1.bf16.msra.mxu0 %v168
  %188 = vmatprep.subr.bf16.mxu0 0
  %189 = vmatpush1.bf16.msra.mxu0 %v169
  %190 = vmatprep.subr.bf16.mxu0 0
  %191 = vmatpush1.bf16.msra.mxu0 %v170
  %192 = vmatprep.subr.bf16.mxu0 0
  %193 = vmatpush1.bf16.msra.mxu0 %v171
  %194 = vmatprep.subr.bf16.mxu0 0
  %195 = vmatpush1.bf16.msra.mxu0 %v172
  %196 = vmatprep.subr.bf16.mxu0 0
  %197 = vmatpush1.bf16.msra.mxu0 %v173
  %198 = vmatprep.subr.bf16.mxu0 0
  %199 = vmatpush1.bf16.msra.mxu0 0
  %200 = vmatprep.subr.bf16.mxu0 0
  %201 = vmatpush1.bf16.msra.mxu0 0
  %202 = vmatprep.subr.bf16.mxu0 0
  %203 = vmatpush1.bf16.msra.mxu0 0
  %204 = vmatprep.subr.bf16.mxu0 0
  %205 = vmatpush1.bf16.msra.mxu0 0
  %206 = vmatprep.subr.bf16.mxu0 0
  %207 = vmatpush1.bf16.msra.mxu0 0
  %208 = vmatprep.subr.bf16.mxu0 0
  %209 = vmatpush1.bf16.msra.mxu0 0
  %210 = vmatprep.subr.bf16.mxu0 0
  %211 = vmatpush1.bf16.msra.mxu0 0
  %212 = vmatprep.subr.bf16.mxu0 0
  %213 = vmatpush1.bf16.msra.mxu0 0
  %214 = vmatprep.mubr.bf16.mxu0 0
  %215 = vmatmul.mubr.bf16.gmra.mrb[0].mxu0 %v118
  %v216 = vpop.f32.mrb[0].mxu0
  %v217 = vadd.f32 0.0, %v216
  %v218 = vpop.f32.mrb[0].mxu0
  %v219 = vpop.f32.mrb[0].mxu0
  %v220 = vadd.f32 0.0, %v219
  %v221 = vpop.f32.mrb[0].mxu0
  %222 = vmatprep.mubr.bf16.mxu0 0
  %223 = vmatmul.mubr.bf16.gmra.mrb[0].mxu0 %v119
  %v224 = vpop.f32.mrb[0].mxu0
  %v225 = vadd.f32 0.0, %v224
  %v226 = vpop.f32.mrb[0].mxu0
  %v227 = vpop.f32.mrb[0].mxu0
  %v228 = vadd.f32 0.0, %v227
  %v229 = vpop.f32.mrb[0].mxu0
  %230 = vmatprep.mubr.bf16.mxu0 0
  %231 = vmatmul.mubr.bf16.gmra.mrb[0].mxu0 %v120
  %v232 = vpop.f32.mrb[0].mxu0
  %v233 = vadd.f32 0.0, %v232
  %v234 = vpop.f32.mrb[0].mxu0
  %v235 = vpop.f32.mrb[0].mxu0
  %v236 = vadd.f32 0.0, %v235
  %v237 = vpop.f32.mrb[0].mxu0
  %238 = vmatprep.mubr.bf16.mxu0 0
  %239 = vmatmul.mubr.bf16.gmra.mrb[0].mxu0 %v121
  %v240 = vpop.f32.mrb[0].mxu0
  %v241 = vadd.f32 0.0, %v240
  %v242 = vpop.f32.mrb[0].mxu0
  %v243 = vpop.f32.mrb[0].mxu0
  %v244 = vadd.f32 0.0, %v243
  %v245 = vpop.f32.mrb[0].mxu0
  %246 = vmatprep.mubr.bf16.mxu0 0
  %247 = vmatmul.mubr.bf16.gmra.mrb[0].mxu0 %v122
  %v248 = vpop.f32.mrb[0].mxu0
  %v249 = vadd.f32 0.0, %v248
  %v250 = vpop.f32.mrb[0].mxu0
  %v251 = vpop.f32.mrb[0].mxu0
  %v252 = vadd.f32 0.0, %v251
  %v253 = vpop.f32.mrb[0].mxu0
  %254 = vmatprep.mubr.bf16.mxu0 0
  %255 = vmatmul.mubr.bf16.gmra.mrb[0].mxu0 %v123
  %v256 = vpop.f32.mrb[0].mxu0
  %v257 = vadd.f32 0.0, %v256
  %v258 = vpop.f32.mrb[0].mxu0
  %v259 = vpop.f32.mrb[0].mxu0
  %v260 = vadd.f32 0.0, %v259
  %v261 = vpop.f32.mrb[0].mxu0
  %262 = vmatprep.mubr.bf16.mxu0 0
  %263 = vmatmul.mubr.bf16.gmra.mrb[0].mxu0 %v124
  %v264 = vpop.f32.mrb[0].mxu0
  %v265 = vadd.f32 0.0, %v264
  %v266 = vpop.f32.mrb[0].mxu0
  %v267 = vpop.f32.mrb[0].mxu0
  %v268 = vadd.f32 0.0, %v267
  %v269 = vpop.f32.mrb[0].mxu0
  %270 = vmatprep.mubr.bf16.mxu0 0
  %271 = vmatmul.mubr.bf16.gmra.mrb[0].mxu0 %v125
  %v272 = vpop.f32.mrb[0].mxu0
  %v273 = vadd.f32 0.0, %v272
  %v274 = vpop.f32.mrb[0].mxu0
  %v275 = vpop.f32.mrb[0].mxu0
  %v276 = vadd.f32 0.0, %v275
  %v277 = vpop.f32.mrb[0].mxu0
  %278 = vdwg.mxu0
  %v279 = vadd.f32 %v38, %v217
  %v280 = vadd.f32 %v39, %v220
  %v281 = vadd.f32 %v40, %v225
  %v282 = vadd.f32 %v41, %v228
  %v283 = vadd.f32 %v42, %v233
  %v284 = vadd.f32 %v43, %v236
  %v285 = vadd.f32 %v44, %v241
  %v286 = vadd.f32 %v45, %v244
  %v287 = vadd.f32 %v46, %v249
  %v288 = vadd.f32 %v47, %v252
  %v289 = vadd.f32 %v48, %v257
  %v290 = vadd.f32 %v49, %v260
  %v291 = vadd.f32 %v50, %v265
  %v292 = vadd.f32 %v51, %v268
  %v293 = vadd.f32 %v52, %v273
  %v294 = vadd.f32 %v53, %v276
  %295 = vst [vmem:[#allocation2] sm:$0xff] %v279
  %296 = vst [vmem:[#allocation2 + $0x8] sm:$0xff] %v280
  %297 = vst [vmem:[#allocation2 + $0x10] sm:$0xff] %v281
  %298 = vst [vmem:[#allocation2 + $0x18] sm:$0xff] %v282
  %299 = vst [vmem:[#allocation2 + $0x20] sm:$0xff] %v283
  %300 = vst [vmem:[#allocation2 + $0x28] sm:$0xff] %v284
  %301 = vst [vmem:[#allocation2 + $0x30] sm:$0xff] %v285
  %302 = vst [vmem:[#allocation2 + $0x38] sm:$0xff] %v286
  %303 = vst [vmem:[#allocation2 + $0x40] sm:$0xff] %v287
  %304 = vst [vmem:[#allocation2 + $0x48] sm:$0xff] %v288
  %305 = vst [vmem:[#allocation2 + $0x50] sm:$0xff] %v289
  %306 = vst [vmem:[#allocation2 + $0x58] sm:$0xff] %v290
  %307 = vst [vmem:[#allocation2 + $0x60] sm:$0xff] %v291
  %308 = vst [vmem:[#allocation2 + $0x68] sm:$0xff] %v292
  %309 = vst [vmem:[#allocation2 + $0x70] sm:$0xff] %v293
  %310 = vst [vmem:[#allocation2 + $0x78] sm:$0xff] %v294
  // Predicated region
  $region22: #{_lambda_.11} parent=0 // pred_check
    %p311 = pneg %p18
  $region23: #{_lambda_.11} parent=0 // pred_check_branch
    %313 = sbr.rel (%p311) target = $region25
  $region24: #{_lambda_.11} parent=0 // pred_region
    %v314 = vld [vmem:[#allocation2] sm:$0xff]
    %v315 = vld [vmem:[#allocation2 + $0x8] sm:$0xff]
    %v316 = vld [vmem:[#allocation2 + $0x10] sm:$0xff]
    %v317 = vld [vmem:[#allocation2 + $0x18] sm:$0xff]
    %v318 = vld [vmem:[#allocation2 + $0x20] sm:$0xff]
    %v319 = vld [vmem:[#allocation2 + $0x28] sm:$0xff]
    %v320 = vld [vmem:[#allocation2 + $0x30] sm:$0xff]
    %v321 = vld [vmem:[#allocation2 + $0x38] sm:$0xff]
    %v322 = vld [vmem:[#allocation2 + $0x40] sm:$0xff]
    %v323 = vld [vmem:[#allocation2 + $0x48] sm:$0xff]
    %v324 = vld [vmem:[#allocation2 + $0x50] sm:$0xff]
    %v325 = vld [vmem:[#allocation2 + $0x58] sm:$0xff]
    %v326 = vld [vmem:[#allocation2 + $0x60] sm:$0xff]
    %v327 = vld [vmem:[#allocation2 + $0x68] sm:$0xff]
    %v328 = vld [vmem:[#allocation2 + $0x70] sm:$0xff]
    %v329 = vld [vmem:[#allocation2 + $0x78] sm:$0xff]
    %v330 = vld [vmem:[%s2] sm:$0x1]
    %v332 = vlaneseq
    %v333 = vshrl.u32 %v332, 7
    %v334 = vsub.s32 0, %v333
    %v335 = vrot.slane %v330, %v334
    %v337 = vmul.f32 %v314, %v335
    %v338 = vmul.f32 %v315, %v335
    %v339 = vmul.f32 %v316, %v335
    %v340 = vmul.f32 %v317, %v335
    %v341 = vmul.f32 %v318, %v335
    %v342 = vmul.f32 %v319, %v335
    %v343 = vmul.f32 %v320, %v335
    %v344 = vmul.f32 %v321, %v335
    %v345 = vmul.f32 %v322, %v335
    %v346 = vmul.f32 %v323, %v335
    %v347 = vmul.f32 %v324, %v335
    %v348 = vmul.f32 %v325, %v335
    %v349 = vmul.f32 %v326, %v335
    %v350 = vmul.f32 %v327, %v335
    %v351 = vmul.f32 %v328, %v335
    %v352 = vmul.f32 %v329, %v335
    %v353 = vld [vmem:[%s3] sm:$0x1]
    %v355 = vlaneseq
    %v356 = vshrl.u32 %v355, 7
    %v357 = vsub.s32 0, %v356
    %v358 = vrot.slane %v353, %v357
    %v360 = vadd.f32 %v337, %v358
    %v361 = vadd.f32 %v338, %v358
    %v362 = vadd.f32 %v339, %v358
    %v363 = vadd.f32 %v340, %v358
    %v364 = vadd.f32 %v341, %v358
    %v365 = vadd.f32 %v342, %v358
    %v366 = vadd.f32 %v343, %v358
    %v367 = vadd.f32 %v344, %v358
    %v368 = vadd.f32 %v345, %v358
    %v369 = vadd.f32 %v346, %v358
    %v370 = vadd.f32 %v347, %v358
    %v371 = vadd.f32 %v348, %v358
    %v372 = vadd.f32 %v349, %v358
    %v373 = vadd.f32 %v350, %v358
    %v374 = vadd.f32 %v351, %v358
    %v375 = vadd.f32 %v352, %v358
    %v376 = vxor.u32 %v360, 2147483648
    %v377 = vxor.u32 %v361, 2147483648
    %v378 = vxor.u32 %v362, 2147483648
    %v379 = vxor.u32 %v363, 2147483648
    %v380 = vxor.u32 %v364, 2147483648
    %v381 = vxor.u32 %v365, 2147483648
    %v382 = vxor.u32 %v366, 2147483648
    %v383 = vxor.u32 %v367, 2147483648
    %v384 = vxor.u32 %v368, 2147483648
    %v385 = vxor.u32 %v369, 2147483648
    %v386 = vxor.u32 %v370, 2147483648
    %v387 = vxor.u32 %v371, 2147483648
    %v388 = vxor.u32 %v372, 2147483648
    %v389 = vxor.u32 %v373, 2147483648
    %v390 = vxor.u32 %v374, 2147483648
    %v391 = vxor.u32 %v375, 2147483648
    %v392 = vmul.f32 %v376, 1.442695
    %v393 = vpow.pop %v392
    %v394 = vmul.f32 %v377, 1.442695
    %v395 = vpow.pop %v394
    %v396 = vmul.f32 %v378, 1.442695
    %v397 = vpow.pop %v396
    %v398 = vmul.f32 %v379, 1.442695
    %v399 = vpow.pop %v398
    %v400 = vmul.f32 %v380, 1.442695
    %v401 = vpow.pop %v400
    %v402 = vmul.f32 %v381, 1.442695
    %v403 = vpow.pop %v402
    %v404 = vmul.f32 %v382, 1.442695
    %v405 = vpow.pop %v404
    %v406 = vmul.f32 %v383, 1.442695
    %v407 = vpow.pop %v406
    %v408 = vmul.f32 %v384, 1.442695
    %v409 = vpow.pop %v408
    %v410 = vmul.f32 %v385, 1.442695
    %v411 = vpow.pop %v410
    %v412 = vmul.f32 %v386, 1.442695
    %v413 = vpow.pop %v412
    %v414 = vmul.f32 %v387, 1.442695
    %v415 = vpow.pop %v414
    %v416 = vmul.f32 %v388, 1.442695
    %v417 = vpow.pop %v416
    %v418 = vmul.f32 %v389, 1.442695
    %v419 = vpow.pop %v418
    %v420 = vmul.f32 %v390, 1.442695
    %v421 = vpow.pop %v420
    %v422 = vmul.f32 %v391, 1.442695
    %v423 = vpow.pop %v422
    %v424 = vadd.f32 %v393, 1.0
    %v425 = vadd.f32 %v395, 1.0
    %v426 = vadd.f32 %v397, 1.0
    %v427 = vadd.f32 %v399, 1.0
    %v428 = vadd.f32 %v401, 1.0
    %v429 = vadd.f32 %v403, 1.0
    %v430 = vadd.f32 %v405, 1.0
    %v431 = vadd.f32 %v407, 1.0
    %v432 = vadd.f32 %v409, 1.0
    %v433 = vadd.f32 %v411, 1.0
    %v434 = vadd.f32 %v413, 1.0
    %v435 = vadd.f32 %v415, 1.0
    %v436 = vadd.f32 %v417, 1.0
    %v437 = vadd.f32 %v419, 1.0
    %v438 = vadd.f32 %v421, 1.0
    %v439 = vadd.f32 %v423, 1.0
    %v440 = vrcp.pop %v424
    %v441 = vmul.f32 1.0, %v440
    %v442 = vrcp.pop %v425
    %v443 = vmul.f32 1.0, %v442
    %v444 = vrcp.pop %v426
    %v445 = vmul.f32 1.0, %v444
    %v446 = vrcp.pop %v427
    %v447 = vmul.f32 1.0, %v446
    %v448 = vrcp.pop %v428
    %v449 = vmul.f32 1.0, %v448
    %v450 = vrcp.pop %v429
    %v451 = vmul.f32 1.0, %v450
    %v452 = vrcp.pop %v430
    %v453 = vmul.f32 1.0, %v452
    %v454 = vrcp.pop %v431
    %v455 = vmul.f32 1.0, %v454
    %v456 = vrcp.pop %v432
    %v457 = vmul.f32 1.0, %v456
    %v458 = vrcp.pop %v433
    %v459 = vmul.f32 1.0, %v458
    %v460 = vrcp.pop %v434
    %v461 = vmul.f32 1.0, %v460
    %v462 = vrcp.pop %v435
    %v463 = vmul.f32 1.0, %v462
    %v464 = vrcp.pop %v436
    %v465 = vmul.f32 1.0, %v464
    %v466 = vrcp.pop %v437
    %v467 = vmul.f32 1.0, %v466
    %v468 = vrcp.pop %v438
    %v469 = vmul.f32 1.0, %v468
    %v470 = vrcp.pop %v439
    %v471 = vmul.f32 1.0, %v470
    %v472 = vmul.f32 %v360, %v441
    %v473 = vmul.f32 %v361, %v443
    %v474 = vmul.f32 %v362, %v445
    %v475 = vmul.f32 %v363, %v447
    %v476 = vmul.f32 %v364, %v449
    %v477 = vmul.f32 %v365, %v451
    %v478 = vmul.f32 %v366, %v453
    %v479 = vmul.f32 %v367, %v455
    %v480 = vmul.f32 %v368, %v457
    %v481 = vmul.f32 %v369, %v459
    %v482 = vmul.f32 %v370, %v461
    %v483 = vmul.f32 %v371, %v463
    %v484 = vmul.f32 %v372, %v465
    %v485 = vmul.f32 %v373, %v467
    %v486 = vmul.f32 %v374, %v469
    %v487 = vmul.f32 %v375, %v471
    %v488 = vpack.c.bf16 %v473, %v472
    %v489 = vpack.c.bf16 %v475, %v474
    %v490 = vpack.c.bf16 %v477, %v476
    %v491 = vpack.c.bf16 %v479, %v478
    %v492 = vpack.c.bf16 %v481, %v480
    %v493 = vpack.c.bf16 %v483, %v482
    %v494 = vpack.c.bf16 %v485, %v484
    %v495 = vpack.c.bf16 %v487, %v486
    %v504 = vunpack.c.l.b16 %v488
    %v505 = vunpack.c.h.b16 %v488
    %v506 = vunpack.c.l.b16 %v489
    %v507 = vunpack.c.h.b16 %v489
    %v508 = vunpack.c.l.b16 %v490
    %v509 = vunpack.c.h.b16 %v490
    %v510 = vunpack.c.l.b16 %v491
    %v511 = vunpack.c.h.b16 %v491
    %v512 = vunpack.c.l.b16 %v492
    %v513 = vunpack.c.h.b16 %v492
    %v514 = vunpack.c.l.b16 %v493
    %v515 = vunpack.c.h.b16 %v493
    %v516 = vunpack.c.l.b16 %v494
    %v517 = vunpack.c.h.b16 %v494
    %v518 = vunpack.c.l.b16 %v495
    %v519 = vunpack.c.h.b16 %v495
    %v520 = vpack.c.b16 %v504, %v504
    %v521 = vpack.c.b16 %v505, %v505
    %v522 = vpack.c.b16 %v506, %v506
    %v523 = vpack.c.b16 %v507, %v507
    %v524 = vpack.c.b16 %v508, %v508
    %v525 = vpack.c.b16 %v509, %v509
    %v526 = vpack.c.b16 %v510, %v510
    %v527 = vpack.c.b16 %v511, %v511
    %v528 = vpack.c.b16 %v512, %v512
    %v529 = vpack.c.b16 %v513, %v513
    %v530 = vpack.c.b16 %v514, %v514
    %v531 = vpack.c.b16 %v515, %v515
    %v532 = vpack.c.b16 %v516, %v516
    %v533 = vpack.c.b16 %v517, %v517
    %v534 = vpack.c.b16 %v518, %v518
    %v535 = vpack.c.b16 %v519, %v519
    %552 = vst [vmem:[%s4] sm:$0xf] %v520
    %553 = vst [vmem:[%s4 + $0x4] sm:$0xf] %v521
    %554 = vst [vmem:[%s4 + $0x8] sm:$0xf] %v522
    %555 = vst [vmem:[%s4 + $0xc] sm:$0xf] %v523
    %556 = vst [vmem:[%s4 + $0x10] sm:$0xf] %v524
    %557 = vst [vmem:[%s4 + $0x14] sm:$0xf] %v525
    %558 = vst [vmem:[%s4 + $0x18] sm:$0xf] %v526
    %559 = vst [vmem:[%s4 + $0x1c] sm:$0xf] %v527
    %560 = vst [vmem:[%s4 + $0x20] sm:$0xf] %v528
    %561 = vst [vmem:[%s4 + $0x24] sm:$0xf] %v529
    %562 = vst [vmem:[%s4 + $0x28] sm:$0xf] %v530
    %563 = vst [vmem:[%s4 + $0x2c] sm:$0xf] %v531
    %564 = vst [vmem:[%s4 + $0x30] sm:$0xf] %v532
    %565 = vst [vmem:[%s4 + $0x34] sm:$0xf] %v533
    %566 = vst [vmem:[%s4 + $0x38] sm:$0xf] %v534
    %567 = vst [vmem:[%s4 + $0x3c] sm:$0xf] %v535
  $region25: #{_lambda_.11} parent=0 // pred_fallthru
    _
  // Predicated region
  $region26: #{_lambda_.11} parent=0 // pred_check
    _
  $region27: #{_lambda_.11} parent=0 // pred_check_branch
    %569 = sbr.rel (0) target = $region29
  $region28: #{_lambda_.11} parent=0 // pred_region
    _
  $region29: #{_lambda_.11} parent=0 // pred_fallthru
    _
  // Predicated region
  $region30: #{_lambda_.11} parent=0 // pred_check
    _
  $region31: #{_lambda_.11} parent=0 // pred_check_branch
    %571 = sbr.rel (0) target = $region33
  $region32: #{_lambda_.11} parent=0 // pred_region
    _
  $region33: #{_lambda_.11} parent=0 // pred_fallthru
    _

// kernel: _lambda_.15
$region0: #{_lambda_.15}
  #allocation0 [shape = 'u32[]', space=smem, size = 0x4, offset = 0x4, fixed_abs, tag = 'smem constant byte address 0x4 - core index']
  #allocation1 [shape = 'u32[144,128]{1,0:T(1,128)}', space=vmem, size = 0x12000, scoped, tag = 'internal scratch']
  #allocation2 [shape = 'f32[64,128]{1,0:T(8,128)}', space=vmem, size = 0x8000, scoped, tag = 'scratch operand']
  %s0 = inlined_call_operand.vmem [shape: bf16[2,64,128], index: 0, kind: input, shape index: {}]
  %s1 = inlined_call_operand.vmem [shape: bf16[2,1,128], index: 1, kind: input, shape index: {}]
  %s2 = inlined_call_operand.vmem [shape: bf16[128,128], index: 2, kind: input, shape index: {}]
  %s3 = inlined_call_operand.vmem [shape: f32[1,128], index: 3, kind: input, shape index: {}]
  %s4 = inlined_call_operand.vmem [shape: f32[1,128], index: 4, kind: input, shape index: {}]
  %s5 = inlined_call_operand.vmem [shape: bf16[2,64,128], index: 5, kind: output, shape index: {}]
  %s6 = sld [smem:[#allocation0]]
  $region61: #{_lambda_.15} parent=0
    _
  %s8 = ssub.s32 1, %s6
  %s9 = scalar_select 0, %s8, %s6
  loop: start=0, step=1, limit=4
  $region2: #{_lambda_.15} parent=0 // loop_pre_header
    _
  $region3: #{_lambda_.15} parent=0 // loop_header
    %s11 = sphi 0, %s15
    %p12 = scmp.ge.s32.totalorder %s11, 4
    %s18 = sphi 0, %s44
    %s19 = sphi 0, %s40
    %s20 = sphi 0, %s36
    %s21 = sphi 0, %s32
    %s22 = sphi 0, %s18
    %s23 = sphi 0, %s19
    %s24 = sphi 0, %s20
    %s25 = sphi 0, %s21
    %s26 = sphi 0, %s22
    %s27 = sphi 0, %s23
    %s28 = sphi 0, %s24
    %s29 = sphi 0, %s25
    %s51 = sphi 0, %s53
    %s54 = sphi 0, %s51
    %s55 = sphi 0, %s54
    %s71 = sphi 0, %s55
    %s79 = sphi 0, %s81
    %s82 = sphi 0, %s79
    %s83 = sphi 0, %s82
    %s99 = sphi 0, %s83
    %s107 = sphi 0, %s109
    %s110 = sphi 0, %s107
    %s111 = sphi 0, %s110
    %s127 = sphi 0, %s111
    %s133 = sphi 0, %s135
    %s136 = sphi 0, %s133
    %s137 = sphi 0, %s136
    %s153 = sphi 0, %s137
    %s159 = sphi 0, %s161
    %s162 = sphi 0, %s159
    %s163 = sphi 0, %s162
    %s179 = sphi 0, %s163
    %s189 = sphi 0, %s191
    %s192 = sphi 0, %s189
    %s193 = sphi 0, %s192
    %s209 = sphi 0, %s193
  $region4: #{_lambda_.15} parent=0 // loop_header_branch
    %14 = sbr.rel (%p12) target = $region8
  $region5: #{_lambda_.15} parent=0 // loop_body
    %s16 = ssub.s32 %s11, 1
    %s17 = ssub.s32 %s11, 2
    %s30 = sadd.s32 1, %s21
    %p31 = scmp.ge.s32.totalorder %s30, 1
    %s32 = scalar_select %p31, 0, %s30
    %s33 = sadd.s32 1, %s20
    %s34 = scalar_select %p31, %s33, %s20
    %p35 = scmp.ge.s32.totalorder %s34, 1
    %s36 = scalar_select %p35, 0, %s34
    %s37 = sadd.s32 1, %s19
    %s38 = scalar_select %p35, %s37, %s19
    %p39 = scmp.ge.s32.totalorder %s38, 1
    %s40 = scalar_select %p39, 0, %s38
    %s41 = sadd.s32 1, %s18
    %s42 = scalar_select %p39, %s41, %s18
    %p43 = scmp.ge.s32.totalorder %s42, 2
    %s44 = scalar_select %p43, 0, %s42
    %s45 = ssub.s32 %s18, %s44
    %s46 = ssub.s32 %s19, %s40
    %s47 = sor.u32 %s45, %s46
    %s48 = ssub.s32 %s21, %s32
    %s49 = sor.u32 %s47, %s48
    %p50 = scmp.eq.s32.totalorder %s49, 0
    %s52 = sadd.s32 %s51, 1
    %s53 = scalar_select %p50, %s51, %s52
    %p56 = pneg %p50
    %p57 = scmp.eq.s32.totalorder %s11, 1
    %p58 = por %p56, %p57
    %p59 = scmp.ne.s32.totalorder %s51, %s54
    %p60 = scmp.eq.s32.totalorder %s11, 0
    %p61 = por %p59, %p60
    %p62 = scmp.ne.s32.totalorder %s51, %s54
    %p63 = scmp.eq.s32.totalorder %s16, 1
    %p64 = por %p62, %p63
    %p65 = scmp.ne.s32.totalorder %s54, %s55
    %p66 = scmp.eq.s32.totalorder %s16, 0
    %p67 = por %p65, %p66
    %p68 = scmp.ne.s32.totalorder %s54, %s55
    %p69 = scmp.eq.s32.totalorder %s17, 1
    %p70 = por %p68, %p69
    %p72 = scmp.ne.s32.totalorder %s55, %s71
    %p73 = scmp.eq.s32.totalorder %s17, 0
    %p74 = por %p72, %p73
    %s75 = ssub.s32 %s18, %s44
    %s76 = ssub.s32 %s21, %s32
    %s77 = sor.u32 %s75, %s76
    %p78 = scmp.eq.s32.totalorder %s77, 0
    %s80 = sadd.s32 %s79, 1
    %s81 = scalar_select %p78, %s79, %s80
    %p84 = pneg %p78
    %p85 = scmp.eq.s32.totalorder %s11, 1
    %p86 = por %p84, %p85
    %p87 = scmp.ne.s32.totalorder %s79, %s82
    %p88 = scmp.eq.s32.totalorder %s11, 0
    %p89 = por %p87, %p88
    %p90 = scmp.ne.s32.totalorder %s79, %s82
    %p91 = scmp.eq.s32.totalorder %s16, 1
    %p92 = por %p90, %p91
    %p93 = scmp.ne.s32.totalorder %s82, %s83
    %p94 = scmp.eq.s32.totalorder %s16, 0
    %p95 = por %p93, %p94
    %p96 = scmp.ne.s32.totalorder %s82, %s83
    %p97 = scmp.eq.s32.totalorder %s17, 1
    %p98 = por %p96, %p97
    %p100 = scmp.ne.s32.totalorder %s83, %s99
    %p101 = scmp.eq.s32.totalorder %s17, 0
    %p102 = por %p100, %p101
    %s103 = ssub.s32 %s21, %s32
    %s104 = ssub.s32 %s20, %s36
    %s105 = sor.u32 %s103, %s104
    %p106 = scmp.eq.s32.totalorder %s105, 0
    %s108 = sadd.s32 %s107, 1
    %s109 = scalar_select %p106, %s107, %s108
    %p112 = pneg %p106
    %p113 = scmp.eq.s32.totalorder %s11, 1
    %p114 = por %p112, %p113
    %p115 = scmp.ne.s32.totalorder %s107, %s110
    %p116 = scmp.eq.s32.totalorder %s11, 0
    %p117 = por %p115, %p116
    %p118 = scmp.ne.s32.totalorder %s107, %s110
    %p119 = scmp.eq.s32.totalorder %s16, 1
    %p120 = por %p118, %p119
    %p121 = scmp.ne.s32.totalorder %s110, %s111
    %p122 = scmp.eq.s32.totalorder %s16, 0
    %p123 = por %p121, %p122
    %p124 = scmp.ne.s32.totalorder %s110, %s111
    %p125 = scmp.eq.s32.totalorder %s17, 1
    %p126 = por %p124, %p125
    %p128 = scmp.ne.s32.totalorder %s111, %s127
    %p129 = scmp.eq.s32.totalorder %s17, 0
    %p130 = por %p128, %p129
    %s131 = ssub.s32 %s20, %s36
    %p132 = scmp.eq.s32.totalorder %s131, 0
    %s134 = sadd.s32 %s133, 1
    %s135 = scalar_select %p132, %s133, %s134
    %p138 = pneg %p132
    %p139 = scmp.eq.s32.totalorder %s11, 1
    %p140 = por %p138, %p139
    %p141 = scmp.ne.s32.totalorder %s133, %s136
    %p142 = scmp.eq.s32.totalorder %s11, 0
    %p143 = por %p141, %p142
    %p144 = scmp.ne.s32.totalorder %s133, %s136
    %p145 = scmp.eq.s32.totalorder %s16, 1
    %p146 = por %p144, %p145
    %p147 = scmp.ne.s32.totalorder %s136, %s137
    %p148 = scmp.eq.s32.totalorder %s16, 0
    %p149 = por %p147, %p148
    %p150 = scmp.ne.s32.totalorder %s136, %s137
    %p151 = scmp.eq.s32.totalorder %s17, 1
    %p152 = por %p150, %p151
    %p154 = scmp.ne.s32.totalorder %s137, %s153
    %p155 = scmp.eq.s32.totalorder %s17, 0
    %p156 = por %p154, %p155
    %s157 = ssub.s32 %s20, %s36
    %p158 = scmp.eq.s32.totalorder %s157, 0
    %s160 = sadd.s32 %s159, 1
    %s161 = scalar_select %p158, %s159, %s160
    %p164 = pneg %p158
    %p165 = scmp.eq.s32.totalorder %s11, 1
    %p166 = por %p164, %p165
    %p167 = scmp.ne.s32.totalorder %s159, %s162
    %p168 = scmp.eq.s32.totalorder %s11, 0
    %p169 = por %p167, %p168
    %p170 = scmp.ne.s32.totalorder %s159, %s162
    %p171 = scmp.eq.s32.totalorder %s16, 1
    %p172 = por %p170, %p171
    %p173 = scmp.ne.s32.totalorder %s162, %s163
    %p174 = scmp.eq.s32.totalorder %s16, 0
    %p175 = por %p173, %p174
    %p176 = scmp.ne.s32.totalorder %s162, %s163
    %p177 = scmp.eq.s32.totalorder %s17, 1
    %p178 = por %p176, %p177
    %p180 = scmp.ne.s32.totalorder %s163, %s179
    %p181 = scmp.eq.s32.totalorder %s17, 0
    %p182 = por %p180, %p181
    %s183 = ssub.s32 %s18, %s44
    %s184 = ssub.s32 %s19, %s40
    %s185 = sor.u32 %s183, %s184
    %s186 = ssub.s32 %s20, %s36
    %s187 = sor.u32 %s185, %s186
    %p188 = scmp.eq.s32.totalorder %s187, 0
    %s190 = sadd.s32 %s189, 1
    %s191 = scalar_select %p188, %s189, %s190
    %p194 = pneg %p188
    %p195 = scmp.eq.s32.totalorder %s11, 1
    %p196 = por %p194, %p195
    %p197 = scmp.ne.s32.totalorder %s189, %s192
    %p198 = scmp.eq.s32.totalorder %s11, 0
    %p199 = por %p197, %p198
    %p200 = scmp.ne.s32.totalorder %s189, %s192
    %p201 = scmp.eq.s32.totalorder %s16, 1
    %p202 = por %p200, %p201
    %p203 = scmp.ne.s32.totalorder %s192, %s193
    %p204 = scmp.eq.s32.totalorder %s16, 0
    %p205 = por %p203, %p204
    %p206 = scmp.ne.s32.totalorder %s192, %s193
    %p207 = scmp.eq.s32.totalorder %s17, 1
    %p208 = por %p206, %p207
    %p210 = scmp.ne.s32.totalorder %s193, %s209
    %p211 = scmp.eq.s32.totalorder %s17, 0
    %p212 = por %p210, %p211
    %p213 = scmp.le.s32.totalorder 1, %s11
    %p214 = scmp.lt.s32.totalorder %s11, 3
    %p215 = pnand %p213, %p214
    %p216 = pneg %p215
    // Predicated region
    $region9: #{_lambda_.15} parent=5 // pred_check
      _
    $region10: #{_lambda_.15} parent=5 // pred_check_branch
      %218 = sbr.rel (%p215) target = $region12
    $region11: #{_lambda_.15} parent=5 // pred_region
      %s219 = ssub.s32 %s11, 1
      // Predicated region
      $region13: #{_lambda_.15} parent=11 // pred_check
        %p220 = pneg %p123
      $region14: #{_lambda_.15} parent=11 // pred_check_branch
        %222 = sbr.rel (%p220) target = $region16
      $region15: #{_lambda_.15} parent=11 // pred_region
        %s223 = smul.u32 16, %s25
        %p224 = scmp.lt.s32.totalorder %s223, 15
        %s225 = scalar_select %p224, %s223, 15
        %p226 = scmp.lt.s32.totalorder %s24, 0
        %s227 = scalar_select %p226, %s24, 0
        %s228 = sadd.s32 %s227, %s225
        %s229 = smul.addr %s228, 4
        %s230 = scalar_lea.vmem %s2, %s229
        %s231 = smul.u32 16, %s25
      $region16: #{_lambda_.15} parent=11 // pred_fallthru
        _
      // Predicated region
      $region17: #{_lambda_.15} parent=11 // pred_check
        %p232 = pneg %p149
      $region18: #{_lambda_.15} parent=11 // pred_check_branch
        %234 = sbr.rel (%p232) target = $region20
      $region19: #{_lambda_.15} parent=11 // pred_region
        %p235 = scmp.lt.s32.totalorder %s24, 0
        %s236 = scalar_select %p235, %s24, 0
        %s237 = scalar_lea.vmem %s3, %s236
      $region20: #{_lambda_.15} parent=11 // pred_fallthru
        _
      // Predicated region
      $region21: #{_lambda_.15} parent=11 // pred_check
        %p238 = pneg %p175
      $region22: #{_lambda_.15} parent=11 // pred_check_branch
        %240 = sbr.rel (%p238) target = $region24
      $region23: #{_lambda_.15} parent=11 // pred_region
        %p241 = scmp.lt.s32.totalorder %s24, 0
        %s242 = scalar_select %p241, %s24, 0
        %s243 = scalar_lea.vmem %s4, %s242
      $region24: #{_lambda_.15} parent=11 // pred_fallthru
        _
    $region12: #{_lambda_.15} parent=5 // pred_fallthru
      _
    %p244 = scmp.lt.s32.totalorder %s11, 2
    // Predicated region
    $region25: #{_lambda_.15} parent=5 // pred_check
      %p245 = pneg %p244
    $region26: #{_lambda_.15} parent=5 // pred_check_branch
      %247 = sbr.rel (%p245) target = $region28
    $region27: #{_lambda_.15} parent=5 // pred_region
      // Predicated region
      $region29: #{_lambda_.15} parent=27 // pred_check
        %p248 = pneg %p61
      $region30: #{_lambda_.15} parent=27 // pred_check_branch
        %250 = sbr.rel (%p248) target = $region32
      $region31: #{_lambda_.15} parent=27 // pred_region
        %s251 = smul.u32 8, %s19
        %p252 = scmp.lt.s32.totalorder %s18, 1
        %s253 = scalar_select %p252, %s18, 1
        %p254 = scmp.lt.s32.totalorder %s251, 7
        %s255 = scalar_select %p254, %s251, 7
        %p256 = scmp.lt.s32.totalorder %s21, 0
        %s257 = scalar_select %p256, %s21, 0
        %s258 = sadd.s32 %s257, %s255
        %s259 = smul.addr %s253, 8
        %s260 = sadd.s32 %s258, %s259
        %s261 = smul.addr %s260, 4
        %s262 = scalar_lea.vmem %s0, %s261
        %s263 = smul.u32 8, %s19
      $region32: #{_lambda_.15} parent=27 // pred_fallthru
        _
      // Predicated region
      $region33: #{_lambda_.15} parent=27 // pred_check
        %p264 = pneg %p89
      $region34: #{_lambda_.15} parent=27 // pred_check_branch
        %266 = sbr.rel (%p264) target = $region36
      $region35: #{_lambda_.15} parent=27 // pred_region
        %p267 = scmp.lt.s32.totalorder %s18, 1
        %s268 = scalar_select %p267, %s18, 1
        %p269 = scmp.lt.s32.totalorder %s21, 0
        %s270 = scalar_select %p269, %s21, 0
        %s271 = sadd.s32 %s270, %s268
        %s272 = scalar_lea.vmem %s1, %s271
      $region36: #{_lambda_.15} parent=27 // pred_fallthru
        _
    $region28: #{_lambda_.15} parent=5 // pred_fallthru
      _
    %p273 = scmp.le.s32.totalorder 1, %s11
    %p274 = scmp.lt.s32.totalorder %s11, 3
    %p275 = pnand %p273, %p274
    %p276 = pneg %p275
    // Predicated region
    $region37: #{_lambda_.15} parent=5 // pred_check
      _
    $region38: #{_lambda_.15} parent=5 // pred_check_branch
      %278 = sbr.rel (%p275) target = $region40
    $region39: #{_lambda_.15} parent=5 // pred_region
      %s279 = ssub.s32 %s11, 1
      %s280 = smul.u32 8, %s23
      %p281 = scmp.lt.s32.totalorder %s22, 1
      %s282 = scalar_select %p281, %s22, 1
      %p283 = scmp.lt.s32.totalorder %s280, 7
      %s284 = scalar_select %p283, %s280, 7
      %p285 = scmp.lt.s32.totalorder %s25, 0
      %s286 = scalar_select %p285, %s25, 0
      %s287 = sadd.s32 %s286, %s284
      %s288 = smul.addr %s282, 8
      %s289 = sadd.s32 %s287, %s288
      %s290 = smul.addr %s289, 4
      %s291 = scalar_lea.vmem %s0, %s290
      %p292 = pneg %p67
      %p293 = pneg %p64
      %p294 = scmp.lt.s32.totalorder %s22, 1
      %s295 = scalar_select %p294, %s22, 1
      %p296 = scmp.lt.s32.totalorder %s25, 0
      %s297 = scalar_select %p296, %s25, 0
      %s298 = sadd.s32 %s297, %s295
      %s299 = scalar_lea.vmem %s1, %s298
      %p300 = pneg %p95
      %p301 = pneg %p92
      %s302 = smul.u32 16, %s25
      %p303 = scmp.lt.s32.totalorder %s302, 15
      %s304 = scalar_select %p303, %s302, 15
      %p305 = scmp.lt.s32.totalorder %s24, 0
      %s306 = scalar_select %p305, %s24, 0
      %s307 = sadd.s32 %s306, %s304
      %s308 = smul.addr %s307, 4
      %s309 = scalar_lea.vmem %s2, %s308
      %p310 = pneg %p123
      %p311 = pneg %p120
      %p312 = scmp.lt.s32.totalorder %s24, 0
      %s313 = scalar_select %p312, %s24, 0
      %s314 = scalar_lea.vmem %s3, %s313
      %p315 = pneg %p149
      %p316 = pneg %p146
      %p317 = scmp.lt.s32.totalorder %s24, 0
      %s318 = scalar_select %p317, %s24, 0
      %s319 = scalar_lea.vmem %s4, %s318
      %p320 = pneg %p175
      %p321 = pneg %p172
      %p322 = pneg %p205
      %p323 = pneg %p202
      %s324 = smul.u32 8, %s23
      %p325 = scmp.lt.s32.totalorder %s22, 1
      %s326 = scalar_select %p325, %s22, 1
      %p327 = scmp.lt.s32.totalorder %s324, 7
      %s328 = scalar_select %p327, %s324, 7
      %p329 = scmp.lt.s32.totalorder %s24, 0
      %s330 = scalar_select %p329, %s24, 0
      %s331 = sadd.s32 %s330, %s328
      %s332 = smul.addr %s326, 8
      %s333 = sadd.s32 %s331, %s332
      %s334 = smul.addr %s333, 4
      %s335 = scalar_lea.vmem %s5, %s334
      %s336 = smul.u32 8, %s23
      %p337 = scmp.lt.s32.totalorder %s22, 1
      %s338 = scalar_select %p337, %s22, 1
      %p339 = scmp.lt.s32.totalorder %s336, 7
      %s340 = scalar_select %p339, %s336, 7
      %p341 = scmp.lt.s32.totalorder %s25, 0
      %s342 = scalar_select %p341, %s25, 0
      %s343 = sadd.s32 %s342, %s340
      %s344 = smul.addr %s338, 8
      %s345 = sadd.s32 %s343, %s344
      %s346 = smul.addr %s345, 4
      %s347 = scalar_lea.vmem %s0, %s346
      %s348 = smul.u32 8, %s23
      %p349 = scmp.lt.s32.totalorder %s22, 1
      %s350 = scalar_select %p349, %s22, 1
      %p351 = scmp.lt.s32.totalorder %s25, 0
      %s352 = scalar_select %p351, %s25, 0
      %s353 = sadd.s32 %s352, %s350
      %s354 = scalar_lea.vmem %s1, %s353
      %s355 = smul.u32 16, %s25
      %p356 = scmp.lt.s32.totalorder %s355, 15
      %s357 = scalar_select %p356, %s355, 15
      %p358 = scmp.lt.s32.totalorder %s24, 0
      %s359 = scalar_select %p358, %s24, 0
      %s360 = sadd.s32 %s359, %s357
      %s361 = smul.addr %s360, 4
      %s362 = scalar_lea.vmem %s2, %s361
      %s363 = smul.u32 16, %s25
      %p364 = scmp.lt.s32.totalorder %s24, 0
      %s365 = scalar_select %p364, %s24, 0
      %s366 = scalar_lea.vmem %s3, %s365
      %p367 = scmp.lt.s32.totalorder %s24, 0
      %s368 = scalar_select %p367, %s24, 0
      %s369 = scalar_lea.vmem %s4, %s368
      %s370 = smul.u32 8, %s23
      %p371 = scmp.lt.s32.totalorder %s22, 1
      %s372 = scalar_select %p371, %s22, 1
      %p373 = scmp.lt.s32.totalorder %s370, 7
      %s374 = scalar_select %p373, %s370, 7
      %p375 = scmp.lt.s32.totalorder %s24, 0
      %s376 = scalar_select %p375, %s24, 0
      %s377 = sadd.s32 %s376, %s374
      %s378 = smul.addr %s372, 8
      %s379 = sadd.s32 %s377, %s378
      %s380 = smul.addr %s379, 4
      %s381 = scalar_lea.vmem %s5, %s380
      %s382 = smul.u32 8, %s23
      %p384 = scmp.eq.s32.totalorder %s25, 0
      // Predicated region
      $region41: #{_lambda_.15} parent=39 // pred_check
        %p385 = pneg %p384
      $region42: #{_lambda_.15} parent=39 // pred_check_branch
        %387 = sbr.rel (%p385) target = $region44
      $region43: #{_lambda_.15} parent=39 // pred_region
        %388 = vst [vmem:[#allocation2] sm:$0xff] 0.0
        %389 = vst [vmem:[#allocation2 + $0x8] sm:$0xff] 0.0
        %390 = vst [vmem:[#allocation2 + $0x10] sm:$0xff] 0.0
        %391 = vst [vmem:[#allocation2 + $0x18] sm:$0xff] 0.0
        %392 = vst [vmem:[#allocation2 + $0x20] sm:$0xff] 0.0
        %393 = vst [vmem:[#allocation2 + $0x28] sm:$0xff] 0.0
        %394 = vst [vmem:[#allocation2 + $0x30] sm:$0xff] 0.0
        %395 = vst [vmem:[#allocation2 + $0x38] sm:$0xff] 0.0
      $region44: #{_lambda_.15} parent=39 // pred_fallthru
        _
      %v396 = vld [vmem:[%s347] sm:$0xf]
      %v397 = vld [vmem:[%s347 + $0x4] sm:$0xf]
      %v398 = vld [vmem:[%s347 + $0x8] sm:$0xf]
      %v399 = vld [vmem:[%s347 + $0xc] sm:$0xf]
      %v400 = vld [vmem:[%s347 + $0x10] sm:$0xf]
      %v401 = vld [vmem:[%s347 + $0x14] sm:$0xf]
      %v402 = vld [vmem:[%s347 + $0x18] sm:$0xf]
      %v403 = vld [vmem:[%s347 + $0x1c] sm:$0xf]
      %v404 = vld [vmem:[%s354] sm:$0x1]
      %v406 = vpack.i.b16 %v404, %v404
      %v408 = vlaneseq
      %v409 = vshrl.u32 %v408, 7
      %v410 = vsub.s32 0, %v409
      %v411 = vrot.slane %v406, %v410
      %v413 = vunpack.c.l.b16 %v411
      %v414 = vpack.c.b16 %v413, %v413
      %v416 = vmul.bf16 %v396, %v414
      %v417 = vmul.bf16 %v397, %v414
      %v418 = vmul.bf16 %v398, %v414
      %v419 = vmul.bf16 %v399, %v414
      %v420 = vmul.bf16 %v400, %v414
      %v421 = vmul.bf16 %v401, %v414
      %v422 = vmul.bf16 %v402, %v414
      %v423 = vmul.bf16 %v403, %v414
      %v424 = vld [vmem:[#allocation2] sm:$0xff]
      %v425 = vld [vmem:[#allocation2 + $0x8] sm:$0xff]
      %v426 = vld [vmem:[#allocation2 + $0x10] sm:$0xff]
      %v427 = vld [vmem:[#allocation2 + $0x18] sm:$0xff]
      %v428 = vld [vmem:[#allocation2 + $0x20] sm:$0xff]
      %v429 = vld [vmem:[#allocation2 + $0x28] sm:$0xff]
      %v430 = vld [vmem:[#allocation2 + $0x30] sm:$0xff]
      %v431 = vld [vmem:[#allocation2 + $0x38] sm:$0xff]
      %v432 = vld [vmem:[%s362] sm:$0xf]
      %v433 = vld [vmem:[%s362 + $0x4] sm:$0xf]
      %v434 = vld [vmem:[%s362 + $0x8] sm:$0xf]
      %v435 = vld [vmem:[%s362 + $0xc] sm:$0xf]
      %v436 = vld [vmem:[%s362 + $0x10] sm:$0xf]
      %v437 = vld [vmem:[%s362 + $0x14] sm:$0xf]
      %v438 = vld [vmem:[%s362 + $0x18] sm:$0xf]
      %v439 = vld [vmem:[%s362 + $0x1c] sm:$0xf]
      %v440 = vld [vmem:[%s362 + $0x20] sm:$0xf]
      %v441 = vld [vmem:[%s362 + $0x24] sm:$0xf]
      %v442 = vld [vmem:[%s362 + $0x28] sm:$0xf]
      %v443 = vld [vmem:[%s362 + $0x2c] sm:$0xf]
      %v444 = vld [vmem:[%s362 + $0x30] sm:$0xf]
      %v445 = vld [vmem:[%s362 + $0x34] sm:$0xf]
      %v446 = vld [vmem:[%s362 + $0x38] sm:$0xf]
      %v447 = vld [vmem:[%s362 + $0x3c] sm:$0xf]
      %v456 = vunpack.c.l.b16 %v416
      %v457 = vunpack.c.l.b16 %v417
      %v458 = vunpack.c.l.b16 %v418
      %v459 = vunpack.c.l.b16 %v419
      %v460 = vunpack.c.l.b16 %v420
      %v461 = vunpack.c.l.b16 %v421
      %v462 = vunpack.c.l.b16 %v422
      %v463 = vunpack.c.l.b16 %v423
      %v464 = vpack.c.b16 %v457, %v456
      %v465 = vpack.c.b16 %v459, %v458
      %v466 = vpack.c.b16 %v461, %v460
      %v467 = vpack.c.b16 %v463, %v462
      %v488 = vunpack.c.l.b16 %v432
      %v489 = vunpack.c.l.b16 %v433
      %v490 = vunpack.c.l.b16 %v434
      %v491 = vunpack.c.l.b16 %v435
      %v492 = vunpack.c.l.b16 %v436
      %v493 = vunpack.c.l.b16 %v437
      %v494 = vunpack.c.l.b16 %v438
      %v495 = vunpack.c.l.b16 %v439
      %v496 = vunpack.c.l.b16 %v440
      %v497 = vunpack.c.l.b16 %v441
      %v498 = vunpack.c.l.b16 %v442
      %v499 = vunpack.c.l.b16 %v443
      %v500 = vunpack.c.l.b16 %v444
      %v501 = vunpack.c.l.b16 %v445
      %v502 = vunpack.c.l.b16 %v446
      %v503 = vunpack.c.l.b16 %v447
      %v504 = vpack.c.b16 %v489, %v488
      %v505 = vpack.c.b16 %v491, %v490
      %v506 = vpack.c.b16 %v493, %v492
      %v507 = vpack.c.b16 %v495, %v494
      %v508 = vpack.c.b16 %v497, %v496
      %v509 = vpack.c.b16 %v499, %v498
      %v510 = vpack.c.b16 %v501, %v500
      %v511 = vpack.c.b16 %v503, %v502
      %520 = vmatprep.subr.bf16.mxu0 0
      %521 = vmatpush1.bf16.msra.mxu0 %v504
      %522 = vmatprep.subr.bf16.mxu0 0
      %523 = vmatpush1.bf16.msra.mxu0 %v505
      %524 = vmatprep.subr.bf16.mxu0 0
      %525 = vmatpush1.bf16.msra.mxu0 %v506
      %526 = vmatprep.subr.bf16.mxu0 0
      %527 = vmatpush1.bf16.msra.mxu0 %v507
      %528 = vmatprep.subr.bf16.mxu0 0
      %529 = vmatpush1.bf16.msra.mxu0 %v508
      %530 = vmatprep.subr.bf16.mxu0 0
      %531 = vmatpush1.bf16.msra.mxu0 %v509
      %532 = vmatprep.subr.bf16.mxu0 0
      %533 = vmatpush1.bf16.msra.mxu0 %v510
      %534 = vmatprep.subr.bf16.mxu0 0
      %535 = vmatpush1.bf16.msra.mxu0 %v511
      %536 = vmatprep.subr.bf16.mxu0 0
      %537 = vmatpush1.bf16.msra.mxu0 0
      %538 = vmatprep.subr.bf16.mxu0 0
      %539 = vmatpush1.bf16.msra.mxu0 0
      %540 = vmatprep.subr.bf16.mxu0 0
      %541 = vmatpush1.bf16.msra.mxu0 0
      %542 = vmatprep.subr.bf16.mxu0 0
      %543 = vmatpush1.bf16.msra.mxu0 0
      %544 = vmatprep.subr.bf16.mxu0 0
      %545 = vmatpush1.bf16.msra.mxu0 0
      %546 = vmatprep.subr.bf16.mxu0 0
      %547 = vmatpush1.bf16.msra.mxu0 0
      %548 = vmatprep.subr.bf16.mxu0 0
      %549 = vmatpush1.bf16.msra.mxu0 0
      %550 = vmatprep.subr.bf16.mxu0 0
      %551 = vmatpush1.bf16.msra.mxu0 0
      %552 = vmatprep.mubr.bf16.mxu0 0
      %553 = vmatmul.mubr.bf16.gmra.mrb[0].mxu0 %v464
      %v554 = vpop.f32.mrb[0].mxu0
      %v555 = vadd.f32 0.0, %v554
      %v556 = vpop.f32.mrb[0].mxu0
      %v557 = vpop.f32.mrb[0].mxu0
      %v558 = vadd.f32 0.0, %v557
      %v559 = vpop.f32.mrb[0].mxu0
      %560 = vmatprep.mubr.bf16.mxu0 0
      %561 = vmatmul.mubr.bf16.gmra.mrb[0].mxu0 %v465
      %v562 = vpop.f32.mrb[0].mxu0
      %v563 = vadd.f32 0.0, %v562
      %v564 = vpop.f32.mrb[0].mxu0
      %v565 = vpop.f32.mrb[0].mxu0
      %v566 = vadd.f32 0.0, %v565
      %v567 = vpop.f32.mrb[0].mxu0
      %568 = vmatprep.mubr.bf16.mxu0 0
      %569 = vmatmul.mubr.bf16.gmra.mrb[0].mxu0 %v466
      %v570 = vpop.f32.mrb[0].mxu0
      %v571 = vadd.f32 0.0, %v570
      %v572 = vpop.f32.mrb[0].mxu0
      %v573 = vpop.f32.mrb[0].mxu0
      %v574 = vadd.f32 0.0, %v573
      %v575 = vpop.f32.mrb[0].mxu0
      %576 = vmatprep.mubr.bf16.mxu0 0
      %577 = vmatmul.mubr.bf16.gmra.mrb[0].mxu0 %v467
      %v578 = vpop.f32.mrb[0].mxu0
      %v579 = vadd.f32 0.0, %v578
      %v580 = vpop.f32.mrb[0].mxu0
      %v581 = vpop.f32.mrb[0].mxu0
      %v582 = vadd.f32 0.0, %v581
      %v583 = vpop.f32.mrb[0].mxu0
      %584 = vdwg.mxu0
      %v585 = vadd.f32 %v424, %v555
      %v586 = vadd.f32 %v425, %v558
      %v587 = vadd.f32 %v426, %v563
      %v588 = vadd.f32 %v427, %v566
      %v589 = vadd.f32 %v428, %v571
      %v590 = vadd.f32 %v429, %v574
      %v591 = vadd.f32 %v430, %v579
      %v592 = vadd.f32 %v431, %v582
      %593 = vst [vmem:[#allocation2] sm:$0xff] %v585
      %594 = vst [vmem:[#allocation2 + $0x8] sm:$0xff] %v586
      %595 = vst [vmem:[#allocation2 + $0x10] sm:$0xff] %v587
      %596 = vst [vmem:[#allocation2 + $0x18] sm:$0xff] %v588
      %597 = vst [vmem:[#allocation2 + $0x20] sm:$0xff] %v589
      %598 = vst [vmem:[#allocation2 + $0x28] sm:$0xff] %v590
      %599 = vst [vmem:[#allocation2 + $0x30] sm:$0xff] %v591
      %600 = vst [vmem:[#allocation2 + $0x38] sm:$0xff] %v592
      // Predicated region
      $region45: #{_lambda_.15} parent=39 // pred_check
        %p601 = pneg %p384
      $region46: #{_lambda_.15} parent=39 // pred_check_branch
        %603 = sbr.rel (%p601) target = $region48
      $region47: #{_lambda_.15} parent=39 // pred_region
        %v604 = vld [vmem:[#allocation2] sm:$0xff]
        %v605 = vld [vmem:[#allocation2 + $0x8] sm:$0xff]
        %v606 = vld [vmem:[#allocation2 + $0x10] sm:$0xff]
        %v607 = vld [vmem:[#allocation2 + $0x18] sm:$0xff]
        %v608 = vld [vmem:[#allocation2 + $0x20] sm:$0xff]
        %v609 = vld [vmem:[#allocation2 + $0x28] sm:$0xff]
        %v610 = vld [vmem:[#allocation2 + $0x30] sm:$0xff]
        %v611 = vld [vmem:[#allocation2 + $0x38] sm:$0xff]
        %v612 = vld [vmem:[%s366] sm:$0x1]
        %v614 = vlaneseq
        %v615 = vshrl.u32 %v614, 7
        %v616 = vsub.s32 0, %v615
        %v617 = vrot.slane %v612, %v616
        %v619 = vmul.f32 %v604, %v617
        %v620 = vmul.f32 %v605, %v617
        %v621 = vmul.f32 %v606, %v617
        %v622 = vmul.f32 %v607, %v617
        %v623 = vmul.f32 %v608, %v617
        %v624 = vmul.f32 %v609, %v617
        %v625 = vmul.f32 %v610, %v617
        %v626 = vmul.f32 %v611, %v617
        %v627 = vld [vmem:[%s369] sm:$0x1]
        %v629 = vlaneseq
        %v630 = vshrl.u32 %v629, 7
        %v631 = vsub.s32 0, %v630
        %v632 = vrot.slane %v627, %v631
        %v634 = vadd.f32 %v619, %v632
        %v635 = vadd.f32 %v620, %v632
        %v636 = vadd.f32 %v621, %v632
        %v637 = vadd.f32 %v622, %v632
        %v638 = vadd.f32 %v623, %v632
        %v639 = vadd.f32 %v624, %v632
        %v640 = vadd.f32 %v625, %v632
        %v641 = vadd.f32 %v626, %v632
        %v642 = vpack.c.bf16 %v635, %v634
        %v643 = vpack.c.bf16 %v637, %v636
        %v644 = vpack.c.bf16 %v639, %v638
        %v645 = vpack.c.bf16 %v641, %v640
        %v650 = vunpack.c.l.b16 %v642
        %v651 = vunpack.c.h.b16 %v642
        %v652 = vunpack.c.l.b16 %v643
        %v653 = vunpack.c.h.b16 %v643
        %v654 = vunpack.c.l.b16 %v644
        %v655 = vunpack.c.h.b16 %v644
        %v656 = vunpack.c.l.b16 %v645
        %v657 = vunpack.c.h.b16 %v645
        %v658 = vpack.c.b16 %v650, %v650
        %v659 = vpack.c.b16 %v651, %v651
        %v660 = vpack.c.b16 %v652, %v652
        %v661 = vpack.c.b16 %v653, %v653
        %v662 = vpack.c.b16 %v654, %v654
        %v663 = vpack.c.b16 %v655, %v655
        %v664 = vpack.c.b16 %v656, %v656
        %v665 = vpack.c.b16 %v657, %v657
        %674 = vst [vmem:[%s381] sm:$0xf] %v658
        %675 = vst [vmem:[%s381 + $0x4] sm:$0xf] %v659
        %676 = vst [vmem:[%s381 + $0x8] sm:$0xf] %v660
        %677 = vst [vmem:[%s381 + $0xc] sm:$0xf] %v661
        %678 = vst [vmem:[%s381 + $0x10] sm:$0xf] %v662
        %679 = vst [vmem:[%s381 + $0x14] sm:$0xf] %v663
        %680 = vst [vmem:[%s381 + $0x18] sm:$0xf] %v664
        %681 = vst [vmem:[%s381 + $0x1c] sm:$0xf] %v665
      $region48: #{_lambda_.15} parent=39 // pred_fallthru
        _
      %s682 = smul.u32 8, %s23
      %p683 = scmp.lt.s32.totalorder %s22, 1
      %s684 = scalar_select %p683, %s22, 1
      %p685 = scmp.lt.s32.totalorder %s682, 7
      %s686 = scalar_select %p685, %s682, 7
      %p687 = scmp.lt.s32.totalorder %s24, 0
      %s688 = scalar_select %p687, %s24, 0
      %s689 = sadd.s32 %s688, %s686
      %s690 = smul.addr %s684, 8
      %s691 = sadd.s32 %s689, %s690
      %s692 = smul.addr %s691, 4
      %s693 = scalar_lea.vmem %s5, %s692
      // Predicated region
      $region49: #{_lambda_.15} parent=39 // pred_check
        %p694 = pneg %p202
      $region50: #{_lambda_.15} parent=39 // pred_check_branch
        %696 = sbr.rel (%p694) target = $region52
      $region51: #{_lambda_.15} parent=39 // pred_region
        %s697 = smul.u32 8, %s23
      $region52: #{_lambda_.15} parent=39 // pred_fallthru
        _
    $region40: #{_lambda_.15} parent=5 // pred_fallthru
      _
    %p698 = scmp.le.s32.totalorder 2, %s11
    // Predicated region
    $region53: #{_lambda_.15} parent=5 // pred_check
      %p699 = pneg %p698
    $region54: #{_lambda_.15} parent=5 // pred_check_branch
      %701 = sbr.rel (%p699) target = $region56
    $region55: #{_lambda_.15} parent=5 // pred_region
      %s702 = ssub.s32 %s11, 2
      // Predicated region
      $region57: #{_lambda_.15} parent=55 // pred_check
        %p703 = pneg %p208
      $region58: #{_lambda_.15} parent=55 // pred_check_branch
        %705 = sbr.rel (%p703) target = $region60
      $region59: #{_lambda_.15} parent=55 // pred_region
        %s706 = smul.u32 8, %s27
        %p707 = scmp.lt.s32.totalorder %s26, 1
        %s708 = scalar_select %p707, %s26, 1
        %p709 = scmp.lt.s32.totalorder %s706, 7
        %s710 = scalar_select %p709, %s706, 7
        %p711 = scmp.lt.s32.totalorder %s28, 0
        %s712 = scalar_select %p711, %s28, 0
        %s713 = sadd.s32 %s712, %s710
        %s714 = smul.addr %s708, 8
        %s715 = sadd.s32 %s713, %s714
        %s716 = smul.addr %s715, 4
        %s717 = scalar_lea.vmem %s5, %s716
      $region60: #{_lambda_.15} parent=55 // pred_fallthru
        _
    $region56: #{_lambda_.15} parent=5 // pred_fallthru
      _
  $region6: #{_lambda_.15} parent=0 // loop_footer
    %s15 = sadd.s32 1, %s11
  $region7: #{_lambda_.15} parent=0 // loop_footer_branch
    %10 = sbr.rel target = $region3
  $region8: #{_lambda_.15} parent=0 // loop_exit
    _

// kernel: _lambda_.21
$region0: #{_lambda_.21}
  #allocation0 [shape = 'u32[]', space=smem, size = 0x4, offset = 0x4, fixed_abs, tag = 'smem constant byte address 0x4 - core index']
  #allocation1 [shape = 'u32[144,128]{1,0:T(1,128)}', space=vmem, size = 0x12000, scoped, tag = 'internal scratch']
  %s0 = inlined_call_operand.vmem [shape: f32[2,1,128], index: 0, kind: input, shape index: {}]
  %s1 = inlined_call_operand.vmem [shape: bf16[128,128], index: 1, kind: input, shape index: {}]
  %s2 = inlined_call_operand.vmem [shape: f32[1,128], index: 2, kind: input, shape index: {}]
  %s3 = inlined_call_operand.vmem [shape: f32[2,1,128], index: 3, kind: output, shape index: {}]
  %s4 = sld [smem:[#allocation0]]
  $region45: #{_lambda_.21} parent=0
    _
  %s6 = ssub.s32 1, %s4
  %s7 = scalar_select 0, %s6, %s4
  loop: start=0, step=1, limit=4
  $region2: #{_lambda_.21} parent=0 // loop_pre_header
    _
  $region3: #{_lambda_.21} parent=0 // loop_header
    %s9 = sphi 0, %s13
    %p10 = scmp.ge.s32.totalorder %s9, 4
    %s19 = sphi 0, %s21
    %s22 = sphi 0, %s19
    %s23 = sphi 0, %s22
    %s39 = sphi 0, %s23
    %s43 = sphi 0, %s43
    %s45 = sphi 0, %s43
    %s46 = sphi 0, %s45
    %s60 = sphi 0, %s46
    %s64 = sphi 0, %s64
    %s66 = sphi 0, %s64
    %s67 = sphi 0, %s66
    %s81 = sphi 0, %s67
    %s87 = sphi 0, %s89
    %s90 = sphi 0, %s87
    %s91 = sphi 0, %s90
    %s107 = sphi 0, %s91
  $region4: #{_lambda_.21} parent=0 // loop_header_branch
    %12 = sbr.rel (%p10) target = $region8
  $region5: #{_lambda_.21} parent=0 // loop_body
    %s14 = ssub.s32 %s9, 1
    %s15 = ssub.s32 %s9, 2
    %s16 = sadd.s32 %s9, 1
    %s17 = ssub.s32 %s9, %s16
    %p18 = scmp.eq.s32.totalorder %s17, 0
    %s20 = sadd.s32 %s19, 1
    %s21 = scalar_select %p18, %s19, %s20
    %p24 = pneg %p18
    %p25 = scmp.eq.s32.totalorder %s9, 1
    %p26 = por %p24, %p25
    %p27 = scmp.ne.s32.totalorder %s19, %s22
    %p28 = scmp.eq.s32.totalorder %s9, 0
    %p29 = por %p27, %p28
    %p30 = scmp.ne.s32.totalorder %s19, %s22
    %p31 = scmp.eq.s32.totalorder %s14, 1
    %p32 = por %p30, %p31
    %p33 = scmp.ne.s32.totalorder %s22, %s23
    %p34 = scmp.eq.s32.totalorder %s14, 0
    %p35 = por %p33, %p34
    %p36 = scmp.ne.s32.totalorder %s22, %s23
    %p37 = scmp.eq.s32.totalorder %s15, 1
    %p38 = por %p36, %p37
    %p40 = scmp.ne.s32.totalorder %s23, %s39
    %p41 = scmp.eq.s32.totalorder %s15, 0
    %p42 = por %p40, %p41
    %s44 = sadd.s32 %s43, 1
    %p47 = scmp.eq.s32.totalorder %s9, 1
    %p48 = scmp.ne.s32.totalorder %s43, %s45
    %p49 = scmp.eq.s32.totalorder %s9, 0
    %p50 = por %p48, %p49
    %p51 = scmp.ne.s32.totalorder %s43, %s45
    %p52 = scmp.eq.s32.totalorder %s14, 1
    %p53 = por %p51, %p52
    %p54 = scmp.ne.s32.totalorder %s45, %s46
    %p55 = scmp.eq.s32.totalorder %s14, 0
    %p56 = por %p54, %p55
    %p57 = scmp.ne.s32.totalorder %s45, %s46
    %p58 = scmp.eq.s32.totalorder %s15, 1
    %p59 = por %p57, %p58
    %p61 = scmp.ne.s32.totalorder %s46, %s60
    %p62 = scmp.eq.s32.totalorder %s15, 0
    %p63 = por %p61, %p62
    %s65 = sadd.s32 %s64, 1
    %p68 = scmp.eq.s32.totalorder %s9, 1
    %p69 = scmp.ne.s32.totalorder %s64, %s66
    %p70 = scmp.eq.s32.totalorder %s9, 0
    %p71 = por %p69, %p70
    %p72 = scmp.ne.s32.totalorder %s64, %s66
    %p73 = scmp.eq.s32.totalorder %s14, 1
    %p74 = por %p72, %p73
    %p75 = scmp.ne.s32.totalorder %s66, %s67
    %p76 = scmp.eq.s32.totalorder %s14, 0
    %p77 = por %p75, %p76
    %p78 = scmp.ne.s32.totalorder %s66, %s67
    %p79 = scmp.eq.s32.totalorder %s15, 1
    %p80 = por %p78, %p79
    %p82 = scmp.ne.s32.totalorder %s67, %s81
    %p83 = scmp.eq.s32.totalorder %s15, 0
    %p84 = por %p82, %p83
    %s85 = ssub.s32 %s9, %s16
    %p86 = scmp.eq.s32.totalorder %s85, 0
    %s88 = sadd.s32 %s87, 1
    %s89 = scalar_select %p86, %s87, %s88
    %p92 = pneg %p86
    %p93 = scmp.eq.s32.totalorder %s9, 1
    %p94 = por %p92, %p93
    %p95 = scmp.ne.s32.totalorder %s87, %s90
    %p96 = scmp.eq.s32.totalorder %s9, 0
    %p97 = por %p95, %p96
    %p98 = scmp.ne.s32.totalorder %s87, %s90
    %p99 = scmp.eq.s32.totalorder %s14, 1
    %p100 = por %p98, %p99
    %p101 = scmp.ne.s32.totalorder %s90, %s91
    %p102 = scmp.eq.s32.totalorder %s14, 0
    %p103 = por %p101, %p102
    %p104 = scmp.ne.s32.totalorder %s90, %s91
    %p105 = scmp.eq.s32.totalorder %s15, 1
    %p106 = por %p104, %p105
    %p108 = scmp.ne.s32.totalorder %s91, %s107
    %p109 = scmp.eq.s32.totalorder %s15, 0
    %p110 = por %p108, %p109
    %p111 = scmp.le.s32.totalorder 1, %s9
    %p112 = scmp.lt.s32.totalorder %s9, 3
    %p113 = pnand %p111, %p112
    %p114 = pneg %p113
    // Predicated region
    $region9: #{_lambda_.21} parent=5 // pred_check
      _
    $region10: #{_lambda_.21} parent=5 // pred_check_branch
      %116 = sbr.rel (%p113) target = $region12
    $region11: #{_lambda_.21} parent=5 // pred_region
      %s117 = ssub.s32 %s9, 1
      // Predicated region
      $region13: #{_lambda_.21} parent=11 // pred_check
        %p118 = pneg %p56
      $region14: #{_lambda_.21} parent=11 // pred_check_branch
        %120 = sbr.rel (%p118) target = $region16
      $region15: #{_lambda_.21} parent=11 // pred_region
        _
      $region16: #{_lambda_.21} parent=11 // pred_fallthru
        _
      // Predicated region
      $region17: #{_lambda_.21} parent=11 // pred_check
        %p121 = pneg %p77
      $region18: #{_lambda_.21} parent=11 // pred_check_branch
        %123 = sbr.rel (%p121) target = $region20
      $region19: #{_lambda_.21} parent=11 // pred_region
        _
      $region20: #{_lambda_.21} parent=11 // pred_fallthru
        _
    $region12: #{_lambda_.21} parent=5 // pred_fallthru
      _
    %p124 = scmp.lt.s32.totalorder %s9, 2
    // Predicated region
    $region21: #{_lambda_.21} parent=5 // pred_check
      %p125 = pneg %p124
    $region22: #{_lambda_.21} parent=5 // pred_check_branch
      %127 = sbr.rel (%p125) target = $region24
    $region23: #{_lambda_.21} parent=5 // pred_region
      // Predicated region
      $region25: #{_lambda_.21} parent=23 // pred_check
        %p128 = pneg %p29
      $region26: #{_lambda_.21} parent=23 // pred_check_branch
        %130 = sbr.rel (%p128) target = $region28
      $region27: #{_lambda_.21} parent=23 // pred_region
        %p131 = scmp.lt.s32.totalorder %s9, 1
        %s132 = scalar_select %p131, %s9, 1
        %s133 = scalar_lea.vmem %s0, %s132
      $region28: #{_lambda_.21} parent=23 // pred_fallthru
        _
    $region24: #{_lambda_.21} parent=5 // pred_fallthru
      _
    %p134 = scmp.le.s32.totalorder 1, %s9
    %p135 = scmp.lt.s32.totalorder %s9, 3
    %p136 = pnand %p134, %p135
    %p137 = pneg %p136
    // Predicated region
    $region29: #{_lambda_.21} parent=5 // pred_check
      _
    $region30: #{_lambda_.21} parent=5 // pred_check_branch
      %139 = sbr.rel (%p136) target = $region32
    $region31: #{_lambda_.21} parent=5 // pred_region
      %s140 = ssub.s32 %s9, 1
      %p141 = scmp.lt.s32.totalorder %s14, 1
      %s142 = scalar_select %p141, %s14, 1
      %s143 = scalar_lea.vmem %s0, %s142
      %p144 = pneg %p35
      %p145 = pneg %p32
      %p146 = pneg %p56
      %p147 = pneg %p53
      %p148 = pneg %p77
      %p149 = pneg %p74
      %p150 = pneg %p103
      %p151 = pneg %p100
      %p152 = scmp.lt.s32.totalorder %s14, 1
      %s153 = scalar_select %p152, %s14, 1
      %s154 = scalar_lea.vmem %s3, %s153
      %p155 = scmp.lt.s32.totalorder %s14, 1
      %s156 = scalar_select %p155, %s14, 1
      %s157 = scalar_lea.vmem %s0, %s156
      %p158 = scmp.lt.s32.totalorder %s14, 1
      %s159 = scalar_select %p158, %s14, 1
      %s160 = scalar_lea.vmem %s3, %s159
      %v162 = vld [vmem:[%s157] sm:$0x1]
      %v163 = vpack.c.bf16 %v162, %v162
      %v164 = vld [vmem:[%s1] sm:$0xf]
      %v165 = vld [vmem:[%s1 + $0x4] sm:$0xf]
      %v166 = vld [vmem:[%s1 + $0x8] sm:$0xf]
      %v167 = vld [vmem:[%s1 + $0xc] sm:$0xf]
      %v168 = vld [vmem:[%s1 + $0x10] sm:$0xf]
      %v169 = vld [vmem:[%s1 + $0x14] sm:$0xf]
      %v170 = vld [vmem:[%s1 + $0x18] sm:$0xf]
      %v171 = vld [vmem:[%s1 + $0x1c] sm:$0xf]
      %v172 = vld [vmem:[%s1 + $0x20] sm:$0xf]
      %v173 = vld [vmem:[%s1 + $0x24] sm:$0xf]
      %v174 = vld [vmem:[%s1 + $0x28] sm:$0xf]
      %v175 = vld [vmem:[%s1 + $0x2c] sm:$0xf]
      %v176 = vld [vmem:[%s1 + $0x30] sm:$0xf]
      %v177 = vld [vmem:[%s1 + $0x34] sm:$0xf]
      %v178 = vld [vmem:[%s1 + $0x38] sm:$0xf]
      %v179 = vld [vmem:[%s1 + $0x3c] sm:$0xf]
      %v180 = vld [vmem:[%s2] sm:$0x1]
      %v197 = vunpack.c.l.b16 %v164
      %v198 = vunpack.c.l.b16 %v165
      %v199 = vunpack.c.l.b16 %v166
      %v200 = vunpack.c.l.b16 %v167
      %v201 = vunpack.c.l.b16 %v168
      %v202 = vunpack.c.l.b16 %v169
      %v203 = vunpack.c.l.b16 %v170
      %v204 = vunpack.c.l.b16 %v171
      %v205 = vunpack.c.l.b16 %v172
      %v206 = vunpack.c.l.b16 %v173
      %v207 = vunpack.c.l.b16 %v174
      %v208 = vunpack.c.l.b16 %v175
      %v209 = vunpack.c.l.b16 %v176
      %v210 = vunpack.c.l.b16 %v177
      %v211 = vunpack.c.l.b16 %v178
      %v212 = vunpack.c.l.b16 %v179
      %v213 = vpack.c.b16 %v198, %v197
      %v214 = vpack.c.b16 %v200, %v199
      %v215 = vpack.c.b16 %v202, %v201
      %v216 = vpack.c.b16 %v204, %v203
      %v217 = vpack.c.b16 %v206, %v205
      %v218 = vpack.c.b16 %v208, %v207
      %v219 = vpack.c.b16 %v210, %v209
      %v220 = vpack.c.b16 %v212, %v211
      %229 = vmatprep.subr.bf16.mxu0 0
      %230 = vmatpush1.bf16.msra.mxu0 %v213
      %231 = vmatprep.subr.bf16.mxu0 0
      %232 = vmatpush1.bf16.msra.mxu0 %v214
      %233 = vmatprep.subr.bf16.mxu0 0
      %234 = vmatpush1.bf16.msra.mxu0 %v215
      %235 = vmatprep.subr.bf16.mxu0 0
      %236 = vmatpush1.bf16.msra.mxu0 %v216
      %237 = vmatprep.subr.bf16.mxu0 0
      %238 = vmatpush1.bf16.msra.mxu0 %v217
      %239 = vmatprep.subr.bf16.mxu0 0
      %240 = vmatpush1.bf16.msra.mxu0 %v218
      %241 = vmatprep.subr.bf16.mxu0 0
      %242 = vmatpush1.bf16.msra.mxu0 %v219
      %243 = vmatprep.subr.bf16.mxu0 0
      %244 = vmatpush1.bf16.msra.mxu0 %v220
      %245 = vmatprep.subr.bf16.mxu0 0
      %246 = vmatpush1.bf16.msra.mxu0 0
      %247 = vmatprep.subr.bf16.mxu0 0
      %248 = vmatpush1.bf16.msra.mxu0 0
      %249 = vmatprep.subr.bf16.mxu0 0
      %250 = vmatpush1.bf16.msra.mxu0 0
      %251 = vmatprep.subr.bf16.mxu0 0
      %252 = vmatpush1.bf16.msra.mxu0 0
      %253 = vmatprep.subr.bf16.mxu0 0
      %254 = vmatpush1.bf16.msra.mxu0 0
      %255 = vmatprep.subr.bf16.mxu0 0
      %256 = vmatpush1.bf16.msra.mxu0 0
      %257 = vmatprep.subr.bf16.mxu0 0
      %258 = vmatpush1.bf16.msra.mxu0 0
      %259 = vmatprep.subr.bf16.mxu0 0
      %260 = vmatpush1.bf16.msra.mxu0 0
      %261 = vmatprep.mubr.bf16.mxu0 0
      %262 = vmatmul.mubr.bf16.gmra.mrb[0].mxu0 %v163
      %v263 = vpop.f32.mrb[0].mxu0
      %v264 = vadd.f32 %v180, %v263
      %v265 = vpop.f32.mrb[0].mxu0
      %v266 = vpop.f32.mrb[0].mxu0
      %v267 = vpop.f32.mrb[0].mxu0
      %268 = vdwg.mxu0
      %269 = vst [vmem:[%s160] sm:$0x1] %v264
      %p270 = scmp.lt.s32.totalorder %s14, 1
      %s271 = scalar_select %p270, %s14, 1
      %s272 = scalar_lea.vmem %s3, %s271
      // Predicated region
      $region33: #{_lambda_.21} parent=31 // pred_check
        %p273 = pneg %p100
      $region34: #{_lambda_.21} parent=31 // pred_check_branch
        %275 = sbr.rel (%p273) target = $region36
      $region35: #{_lambda_.21} parent=31 // pred_region
        _
      $region36: #{_lambda_.21} parent=31 // pred_fallthru
        _
    $region32: #{_lambda_.21} parent=5 // pred_fallthru
      _
    %p276 = scmp.le.s32.totalorder 2, %s9
    // Predicated region
    $region37: #{_lambda_.21} parent=5 // pred_check
      %p277 = pneg %p276
    $region38: #{_lambda_.21} parent=5 // pred_check_branch
      %279 = sbr.rel (%p277) target = $region40
    $region39: #{_lambda_.21} parent=5 // pred_region
      %s280 = ssub.s32 %s9, 2
      // Predicated region
      $region41: #{_lambda_.21} parent=39 // pred_check
        %p281 = pneg %p106
      $region42: #{_lambda_.21} parent=39 // pred_check_branch
        %283 = sbr.rel (%p281) target = $region44
      $region43: #{_lambda_.21} parent=39 // pred_region
        %p284 = scmp.lt.s32.totalorder %s15, 1
        %s285 = scalar_select %p284, %s15, 1
        %s286 = scalar_lea.vmem %s3, %s285
      $region44: #{_lambda_.21} parent=39 // pred_fallthru
        _
    $region40: #{_lambda_.21} parent=5 // pred_fallthru
      _
  $region6: #{_lambda_.21} parent=0 // loop_footer
    %s13 = sadd.s32 1, %s9
  $region7: #{_lambda_.21} parent=0 // loop_footer_branch
    %8 = sbr.rel target = $region3
  $region8: #{_lambda_.21} parent=0 // loop_exit
    _

// kernel: _lambda_.20
$region0: #{_lambda_.20}
  #allocation0 [shape = 'u32[]', space=smem, size = 0x4, offset = 0x4, fixed_abs, tag = 'smem constant byte address 0x4 - core index']
  #allocation1 [shape = 'u32[144,128]{1,0:T(1,128)}', space=vmem, size = 0x12000, scoped, tag = 'internal scratch']
  #allocation2 [shape = 'f32[64,128]{1,0:T(8,128)}', space=vmem, size = 0x8000, scoped, tag = 'scratch operand']
  %s0 = inlined_call_operand.vmem [shape: bf16[2,64,128], index: 0, kind: input, shape index: {}]
  %s1 = inlined_call_operand.vmem [shape: bf16[128,128], index: 1, kind: input, shape index: {}]
  %s2 = inlined_call_operand.vmem [shape: f32[1,128], index: 2, kind: input, shape index: {}]
  %s3 = inlined_call_operand.vmem [shape: f32[1,128], index: 3, kind: input, shape index: {}]
  %s4 = inlined_call_operand.vmem [shape: f32[2,1,128], index: 4, kind: output, shape index: {}]
  %s5 = sld [smem:[#allocation0]]
  $region65: #{_lambda_.20} parent=0
    _
  %s7 = ssub.s32 1, %s5
  %s8 = scalar_select 0, %s7, %s5
  loop: start=0, step=1, limit=4
  $region2: #{_lambda_.20} parent=0 // loop_pre_header
    _
  $region3: #{_lambda_.20} parent=0 // loop_header
    %s10 = sphi 0, %s14
    %p11 = scmp.ge.s32.totalorder %s10, 4
    %s17 = sphi 0, %s43
    %s18 = sphi 0, %s39
    %s19 = sphi 0, %s35
    %s20 = sphi 0, %s31
    %s21 = sphi 0, %s17
    %s22 = sphi 0, %s18
    %s23 = sphi 0, %s19
    %s24 = sphi 0, %s20
    %s25 = sphi 0, %s21
    %s26 = sphi 0, %s22
    %s27 = sphi 0, %s23
    %s28 = sphi 0, %s24
    %s50 = sphi 0, %s52
    %s53 = sphi 0, %s50
    %s54 = sphi 0, %s53
    %s70 = sphi 0, %s54
    %s78 = sphi 0, %s80
    %s81 = sphi 0, %s78
    %s82 = sphi 0, %s81
    %s98 = sphi 0, %s82
    %s104 = sphi 0, %s106
    %s107 = sphi 0, %s104
    %s108 = sphi 0, %s107
    %s124 = sphi 0, %s108
    %s130 = sphi 0, %s132
    %s133 = sphi 0, %s130
    %s134 = sphi 0, %s133
    %s150 = sphi 0, %s134
    %s158 = sphi 0, %s160
    %s161 = sphi 0, %s158
    %s162 = sphi 0, %s161
    %s178 = sphi 0, %s162
  $region4: #{_lambda_.20} parent=0 // loop_header_branch
    %13 = sbr.rel (%p11) target = $region8
  $region5: #{_lambda_.20} parent=0 // loop_body
    %s15 = ssub.s32 %s10, 1
    %s16 = ssub.s32 %s10, 2
    %s29 = sadd.s32 1, %s20
    %p30 = scmp.ge.s32.totalorder %s29, 1
    %s31 = scalar_select %p30, 0, %s29
    %s32 = sadd.s32 1, %s19
    %s33 = scalar_select %p30, %s32, %s19
    %p34 = scmp.ge.s32.totalorder %s33, 1
    %s35 = scalar_select %p34, 0, %s33
    %s36 = sadd.s32 1, %s18
    %s37 = scalar_select %p34, %s36, %s18
    %p38 = scmp.ge.s32.totalorder %s37, 1
    %s39 = scalar_select %p38, 0, %s37
    %s40 = sadd.s32 1, %s17
    %s41 = scalar_select %p38, %s40, %s17
    %p42 = scmp.ge.s32.totalorder %s41, 2
    %s43 = scalar_select %p42, 0, %s41
    %s44 = ssub.s32 %s17, %s43
    %s45 = ssub.s32 %s19, %s35
    %s46 = sor.u32 %s44, %s45
    %s47 = ssub.s32 %s20, %s31
    %s48 = sor.u32 %s46, %s47
    %p49 = scmp.eq.s32.totalorder %s48, 0
    %s51 = sadd.s32 %s50, 1
    %s52 = scalar_select %p49, %s50, %s51
    %p55 = pneg %p49
    %p56 = scmp.eq.s32.totalorder %s10, 1
    %p57 = por %p55, %p56
    %p58 = scmp.ne.s32.totalorder %s50, %s53
    %p59 = scmp.eq.s32.totalorder %s10, 0
    %p60 = por %p58, %p59
    %p61 = scmp.ne.s32.totalorder %s50, %s53
    %p62 = scmp.eq.s32.totalorder %s15, 1
    %p63 = por %p61, %p62
    %p64 = scmp.ne.s32.totalorder %s53, %s54
    %p65 = scmp.eq.s32.totalorder %s15, 0
    %p66 = por %p64, %p65
    %p67 = scmp.ne.s32.totalorder %s53, %s54
    %p68 = scmp.eq.s32.totalorder %s16, 1
    %p69 = por %p67, %p68
    %p71 = scmp.ne.s32.totalorder %s54, %s70
    %p72 = scmp.eq.s32.totalorder %s16, 0
    %p73 = por %p71, %p72
    %s74 = ssub.s32 %s20, %s31
    %s75 = ssub.s32 %s18, %s39
    %s76 = sor.u32 %s74, %s75
    %p77 = scmp.eq.s32.totalorder %s76, 0
    %s79 = sadd.s32 %s78, 1
    %s80 = scalar_select %p77, %s78, %s79
    %p83 = pneg %p77
    %p84 = scmp.eq.s32.totalorder %s10, 1
    %p85 = por %p83, %p84
    %p86 = scmp.ne.s32.totalorder %s78, %s81
    %p87 = scmp.eq.s32.totalorder %s10, 0
    %p88 = por %p86, %p87
    %p89 = scmp.ne.s32.totalorder %s78, %s81
    %p90 = scmp.eq.s32.totalorder %s15, 1
    %p91 = por %p89, %p90
    %p92 = scmp.ne.s32.totalorder %s81, %s82
    %p93 = scmp.eq.s32.totalorder %s15, 0
    %p94 = por %p92, %p93
    %p95 = scmp.ne.s32.totalorder %s81, %s82
    %p96 = scmp.eq.s32.totalorder %s16, 1
    %p97 = por %p95, %p96
    %p99 = scmp.ne.s32.totalorder %s82, %s98
    %p100 = scmp.eq.s32.totalorder %s16, 0
    %p101 = por %p99, %p100
    %s102 = ssub.s32 %s18, %s39
    %p103 = scmp.eq.s32.totalorder %s102, 0
    %s105 = sadd.s32 %s104, 1
    %s106 = scalar_select %p103, %s104, %s105
    %p109 = pneg %p103
    %p110 = scmp.eq.s32.totalorder %s10, 1
    %p111 = por %p109, %p110
    %p112 = scmp.ne.s32.totalorder %s104, %s107
    %p113 = scmp.eq.s32.totalorder %s10, 0
    %p114 = por %p112, %p113
    %p115 = scmp.ne.s32.totalorder %s104, %s107
    %p116 = scmp.eq.s32.totalorder %s15, 1
    %p117 = por %p115, %p116
    %p118 = scmp.ne.s32.totalorder %s107, %s108
    %p119 = scmp.eq.s32.totalorder %s15, 0
    %p120 = por %p118, %p119
    %p121 = scmp.ne.s32.totalorder %s107, %s108
    %p122 = scmp.eq.s32.totalorder %s16, 1
    %p123 = por %p121, %p122
    %p125 = scmp.ne.s32.totalorder %s108, %s124
    %p126 = scmp.eq.s32.totalorder %s16, 0
    %p127 = por %p125, %p126
    %s128 = ssub.s32 %s18, %s39
    %p129 = scmp.eq.s32.totalorder %s128, 0
    %s131 = sadd.s32 %s130, 1
    %s132 = scalar_select %p129, %s130, %s131
    %p135 = pneg %p129
    %p136 = scmp.eq.s32.totalorder %s10, 1
    %p137 = por %p135, %p136
    %p138 = scmp.ne.s32.totalorder %s130, %s133
    %p139 = scmp.eq.s32.totalorder %s10, 0
    %p140 = por %p138, %p139
    %p141 = scmp.ne.s32.totalorder %s130, %s133
    %p142 = scmp.eq.s32.totalorder %s15, 1
    %p143 = por %p141, %p142
    %p144 = scmp.ne.s32.totalorder %s133, %s134
    %p145 = scmp.eq.s32.totalorder %s15, 0
    %p146 = por %p144, %p145
    %p147 = scmp.ne.s32.totalorder %s133, %s134
    %p148 = scmp.eq.s32.totalorder %s16, 1
    %p149 = por %p147, %p148
    %p151 = scmp.ne.s32.totalorder %s134, %s150
    %p152 = scmp.eq.s32.totalorder %s16, 0
    %p153 = por %p151, %p152
    %s154 = ssub.s32 %s17, %s43
    %s155 = ssub.s32 %s18, %s39
    %s156 = sor.u32 %s154, %s155
    %p157 = scmp.eq.s32.totalorder %s156, 0
    %s159 = sadd.s32 %s158, 1
    %s160 = scalar_select %p157, %s158, %s159
    %p163 = pneg %p157
    %p164 = scmp.eq.s32.totalorder %s10, 1
    %p165 = por %p163, %p164
    %p166 = scmp.ne.s32.totalorder %s158, %s161
    %p167 = scmp.eq.s32.totalorder %s10, 0
    %p168 = por %p166, %p167
    %p169 = scmp.ne.s32.totalorder %s158, %s161
    %p170 = scmp.eq.s32.totalorder %s15, 1
    %p171 = por %p169, %p170
    %p172 = scmp.ne.s32.totalorder %s161, %s162
    %p173 = scmp.eq.s32.totalorder %s15, 0
    %p174 = por %p172, %p173
    %p175 = scmp.ne.s32.totalorder %s161, %s162
    %p176 = scmp.eq.s32.totalorder %s16, 1
    %p177 = por %p175, %p176
    %p179 = scmp.ne.s32.totalorder %s162, %s178
    %p180 = scmp.eq.s32.totalorder %s16, 0
    %p181 = por %p179, %p180
    %p182 = scmp.le.s32.totalorder 1, %s10
    %p183 = scmp.lt.s32.totalorder %s10, 3
    %p184 = pnand %p182, %p183
    %p185 = pneg %p184
    // Predicated region
    $region9: #{_lambda_.20} parent=5 // pred_check
      _
    $region10: #{_lambda_.20} parent=5 // pred_check_branch
      %187 = sbr.rel (%p184) target = $region12
    $region11: #{_lambda_.20} parent=5 // pred_region
      %s188 = ssub.s32 %s10, 1
      // Predicated region
      $region13: #{_lambda_.20} parent=11 // pred_check
        %p189 = pneg %p94
      $region14: #{_lambda_.20} parent=11 // pred_check_branch
        %191 = sbr.rel (%p189) target = $region16
      $region15: #{_lambda_.20} parent=11 // pred_region
        %s192 = smul.u32 16, %s24
        %p193 = scmp.lt.s32.totalorder %s192, 15
        %s194 = scalar_select %p193, %s192, 15
        %p195 = scmp.lt.s32.totalorder %s22, 0
        %s196 = scalar_select %p195, %s22, 0
        %s197 = sadd.s32 %s196, %s194
        %s198 = smul.addr %s197, 4
        %s199 = scalar_lea.vmem %s1, %s198
        %s200 = smul.u32 16, %s24
      $region16: #{_lambda_.20} parent=11 // pred_fallthru
        _
      // Predicated region
      $region17: #{_lambda_.20} parent=11 // pred_check
        %p201 = pneg %p120
      $region18: #{_lambda_.20} parent=11 // pred_check_branch
        %203 = sbr.rel (%p201) target = $region20
      $region19: #{_lambda_.20} parent=11 // pred_region
        %p204 = scmp.lt.s32.totalorder %s22, 0
        %s205 = scalar_select %p204, %s22, 0
        %s206 = scalar_lea.vmem %s2, %s205
      $region20: #{_lambda_.20} parent=11 // pred_fallthru
        _
      // Predicated region
      $region21: #{_lambda_.20} parent=11 // pred_check
        %p207 = pneg %p146
      $region22: #{_lambda_.20} parent=11 // pred_check_branch
        %209 = sbr.rel (%p207) target = $region24
      $region23: #{_lambda_.20} parent=11 // pred_region
        %p210 = scmp.lt.s32.totalorder %s22, 0
        %s211 = scalar_select %p210, %s22, 0
        %s212 = scalar_lea.vmem %s3, %s211
      $region24: #{_lambda_.20} parent=11 // pred_fallthru
        _
    $region12: #{_lambda_.20} parent=5 // pred_fallthru
      _
    %p213 = scmp.lt.s32.totalorder %s10, 2
    // Predicated region
    $region25: #{_lambda_.20} parent=5 // pred_check
      %p214 = pneg %p213
    $region26: #{_lambda_.20} parent=5 // pred_check_branch
      %216 = sbr.rel (%p214) target = $region28
    $region27: #{_lambda_.20} parent=5 // pred_region
      // Predicated region
      $region29: #{_lambda_.20} parent=27 // pred_check
        %p217 = pneg %p60
      $region30: #{_lambda_.20} parent=27 // pred_check_branch
        %219 = sbr.rel (%p217) target = $region32
      $region31: #{_lambda_.20} parent=27 // pred_region
        %s220 = smul.u32 8, %s19
        %p221 = scmp.lt.s32.totalorder %s17, 1
        %s222 = scalar_select %p221, %s17, 1
        %p223 = scmp.lt.s32.totalorder %s220, 7
        %s224 = scalar_select %p223, %s220, 7
        %p225 = scmp.lt.s32.totalorder %s20, 0
        %s226 = scalar_select %p225, %s20, 0
        %s227 = sadd.s32 %s226, %s224
        %s228 = smul.addr %s222, 8
        %s229 = sadd.s32 %s227, %s228
        %s230 = smul.addr %s229, 4
        %s231 = scalar_lea.vmem %s0, %s230
        %s232 = smul.u32 8, %s19
      $region32: #{_lambda_.20} parent=27 // pred_fallthru
        _
    $region28: #{_lambda_.20} parent=5 // pred_fallthru
      _
    %p233 = scmp.le.s32.totalorder 1, %s10
    %p234 = scmp.lt.s32.totalorder %s10, 3
    %p235 = pnand %p233, %p234
    %p236 = pneg %p235
    // Predicated region
    $region33: #{_lambda_.20} parent=5 // pred_check
      _
    $region34: #{_lambda_.20} parent=5 // pred_check_branch
      %238 = sbr.rel (%p235) target = $region36
    $region35: #{_lambda_.20} parent=5 // pred_region
      %s239 = ssub.s32 %s10, 1
      %s240 = smul.u32 8, %s23
      %p241 = scmp.lt.s32.totalorder %s21, 1
      %s242 = scalar_select %p241, %s21, 1
      %p243 = scmp.lt.s32.totalorder %s240, 7
      %s244 = scalar_select %p243, %s240, 7
      %p245 = scmp.lt.s32.totalorder %s24, 0
      %s246 = scalar_select %p245, %s24, 0
      %s247 = sadd.s32 %s246, %s244
      %s248 = smul.addr %s242, 8
      %s249 = sadd.s32 %s247, %s248
      %s250 = smul.addr %s249, 4
      %s251 = scalar_lea.vmem %s0, %s250
      %p252 = pneg %p66
      %p253 = pneg %p63
      %s254 = smul.u32 16, %s24
      %p255 = scmp.lt.s32.totalorder %s254, 15
      %s256 = scalar_select %p255, %s254, 15
      %p257 = scmp.lt.s32.totalorder %s22, 0
      %s258 = scalar_select %p257, %s22, 0
      %s259 = sadd.s32 %s258, %s256
      %s260 = smul.addr %s259, 4
      %s261 = scalar_lea.vmem %s1, %s260
      %p262 = pneg %p94
      %p263 = pneg %p91
      %p264 = scmp.lt.s32.totalorder %s22, 0
      %s265 = scalar_select %p264, %s22, 0
      %s266 = scalar_lea.vmem %s2, %s265
      %p267 = pneg %p120
      %p268 = pneg %p117
      %p269 = scmp.lt.s32.totalorder %s22, 0
      %s270 = scalar_select %p269, %s22, 0
      %s271 = scalar_lea.vmem %s3, %s270
      %p272 = pneg %p146
      %p273 = pneg %p143
      %p274 = pneg %p174
      %p275 = pneg %p171
      %p276 = scmp.lt.s32.totalorder %s21, 1
      %s277 = scalar_select %p276, %s21, 1
      %p278 = scmp.lt.s32.totalorder %s22, 0
      %s279 = scalar_select %p278, %s22, 0
      %s280 = sadd.s32 %s279, %s277
      %s281 = scalar_lea.vmem %s4, %s280
      %s282 = smul.u32 8, %s23
      %p283 = scmp.lt.s32.totalorder %s21, 1
      %s284 = scalar_select %p283, %s21, 1
      %p285 = scmp.lt.s32.totalorder %s282, 7
      %s286 = scalar_select %p285, %s282, 7
      %p287 = scmp.lt.s32.totalorder %s24, 0
      %s288 = scalar_select %p287, %s24, 0
      %s289 = sadd.s32 %s288, %s286
      %s290 = smul.addr %s284, 8
      %s291 = sadd.s32 %s289, %s290
      %s292 = smul.addr %s291, 4
      %s293 = scalar_lea.vmem %s0, %s292
      %s294 = smul.u32 8, %s23
      %s295 = smul.u32 16, %s24
      %p296 = scmp.lt.s32.totalorder %s295, 15
      %s297 = scalar_select %p296, %s295, 15
      %p298 = scmp.lt.s32.totalorder %s22, 0
      %s299 = scalar_select %p298, %s22, 0
      %s300 = sadd.s32 %s299, %s297
      %s301 = smul.addr %s300, 4
      %s302 = scalar_lea.vmem %s1, %s301
      %s303 = smul.u32 16, %s24
      %p304 = scmp.lt.s32.totalorder %s22, 0
      %s305 = scalar_select %p304, %s22, 0
      %s306 = scalar_lea.vmem %s2, %s305
      %p307 = scmp.lt.s32.totalorder %s22, 0
      %s308 = scalar_select %p307, %s22, 0
      %s309 = scalar_lea.vmem %s3, %s308
      %p310 = scmp.lt.s32.totalorder %s21, 1
      %s311 = scalar_select %p310, %s21, 1
      %p312 = scmp.lt.s32.totalorder %s22, 0
      %s313 = scalar_select %p312, %s22, 0
      %s314 = sadd.s32 %s313, %s311
      %s315 = scalar_lea.vmem %s4, %s314
      %p317 = scmp.eq.s32.totalorder %s24, 0
      // Predicated region
      $region37: #{_lambda_.20} parent=35 // pred_check
        %p318 = pneg %p317
      $region38: #{_lambda_.20} parent=35 // pred_check_branch
        %320 = sbr.rel (%p318) target = $region40
      $region39: #{_lambda_.20} parent=35 // pred_region
        %321 = vst [vmem:[#allocation2] sm:$0xff] 0.0
        %322 = vst [vmem:[#allocation2 + $0x8] sm:$0xff] 0.0
        %323 = vst [vmem:[#allocation2 + $0x10] sm:$0xff] 0.0
        %324 = vst [vmem:[#allocation2 + $0x18] sm:$0xff] 0.0
        %325 = vst [vmem:[#allocation2 + $0x20] sm:$0xff] 0.0
        %326 = vst [vmem:[#allocation2 + $0x28] sm:$0xff] 0.0
        %327 = vst [vmem:[#allocation2 + $0x30] sm:$0xff] 0.0
        %328 = vst [vmem:[#allocation2 + $0x38] sm:$0xff] 0.0
      $region40: #{_lambda_.20} parent=35 // pred_fallthru
        _
      %v329 = vld [vmem:[#allocation2] sm:$0xff]
      %v330 = vld [vmem:[#allocation2 + $0x8] sm:$0xff]
      %v331 = vld [vmem:[#allocation2 + $0x10] sm:$0xff]
      %v332 = vld [vmem:[#allocation2 + $0x18] sm:$0xff]
      %v333 = vld [vmem:[#allocation2 + $0x20] sm:$0xff]
      %v334 = vld [vmem:[#allocation2 + $0x28] sm:$0xff]
      %v335 = vld [vmem:[#allocation2 + $0x30] sm:$0xff]
      %v336 = vld [vmem:[#allocation2 + $0x38] sm:$0xff]
      %v337 = vld [vmem:[%s293] sm:$0xf]
      %v338 = vld [vmem:[%s293 + $0x4] sm:$0xf]
      %v339 = vld [vmem:[%s293 + $0x8] sm:$0xf]
      %v340 = vld [vmem:[%s293 + $0xc] sm:$0xf]
      %v341 = vld [vmem:[%s293 + $0x10] sm:$0xf]
      %v342 = vld [vmem:[%s293 + $0x14] sm:$0xf]
      %v343 = vld [vmem:[%s293 + $0x18] sm:$0xf]
      %v344 = vld [vmem:[%s293 + $0x1c] sm:$0xf]
      %v345 = vld [vmem:[%s302] sm:$0xf]
      %v346 = vld [vmem:[%s302 + $0x4] sm:$0xf]
      %v347 = vld [vmem:[%s302 + $0x8] sm:$0xf]
      %v348 = vld [vmem:[%s302 + $0xc] sm:$0xf]
      %v349 = vld [vmem:[%s302 + $0x10] sm:$0xf]
      %v350 = vld [vmem:[%s302 + $0x14] sm:$0xf]
      %v351 = vld [vmem:[%s302 + $0x18] sm:$0xf]
      %v352 = vld [vmem:[%s302 + $0x1c] sm:$0xf]
      %v353 = vld [vmem:[%s302 + $0x20] sm:$0xf]
      %v354 = vld [vmem:[%s302 + $0x24] sm:$0xf]
      %v355 = vld [vmem:[%s302 + $0x28] sm:$0xf]
      %v356 = vld [vmem:[%s302 + $0x2c] sm:$0xf]
      %v357 = vld [vmem:[%s302 + $0x30] sm:$0xf]
      %v358 = vld [vmem:[%s302 + $0x34] sm:$0xf]
      %v359 = vld [vmem:[%s302 + $0x38] sm:$0xf]
      %v360 = vld [vmem:[%s302 + $0x3c] sm:$0xf]
      %v369 = vunpack.c.l.b16 %v337
      %v370 = vunpack.c.l.b16 %v338
      %v371 = vunpack.c.l.b16 %v339
      %v372 = vunpack.c.l.b16 %v340
      %v373 = vunpack.c.l.b16 %v341
      %v374 = vunpack.c.l.b16 %v342
      %v375 = vunpack.c.l.b16 %v343
      %v376 = vunpack.c.l.b16 %v344
      %v377 = vpack.c.b16 %v370, %v369
      %v378 = vpack.c.b16 %v372, %v371
      %v379 = vpack.c.b16 %v374, %v373
      %v380 = vpack.c.b16 %v376, %v375
      %v401 = vunpack.c.l.b16 %v345
      %v402 = vunpack.c.l.b16 %v346
      %v403 = vunpack.c.l.b16 %v347
      %v404 = vunpack.c.l.b16 %v348
      %v405 = vunpack.c.l.b16 %v349
      %v406 = vunpack.c.l.b16 %v350
      %v407 = vunpack.c.l.b16 %v351
      %v408 = vunpack.c.l.b16 %v352
      %v409 = vunpack.c.l.b16 %v353
      %v410 = vunpack.c.l.b16 %v354
      %v411 = vunpack.c.l.b16 %v355
      %v412 = vunpack.c.l.b16 %v356
      %v413 = vunpack.c.l.b16 %v357
      %v414 = vunpack.c.l.b16 %v358
      %v415 = vunpack.c.l.b16 %v359
      %v416 = vunpack.c.l.b16 %v360
      %v417 = vpack.c.b16 %v402, %v401
      %v418 = vpack.c.b16 %v404, %v403
      %v419 = vpack.c.b16 %v406, %v405
      %v420 = vpack.c.b16 %v408, %v407
      %v421 = vpack.c.b16 %v410, %v409
      %v422 = vpack.c.b16 %v412, %v411
      %v423 = vpack.c.b16 %v414, %v413
      %v424 = vpack.c.b16 %v416, %v415
      %433 = vmatprep.subr.bf16.mxu0 0
      %434 = vmatpush1.bf16.msra.mxu0 %v417
      %435 = vmatprep.subr.bf16.mxu0 0
      %436 = vmatpush1.bf16.msra.mxu0 %v418
      %437 = vmatprep.subr.bf16.mxu0 0
      %438 = vmatpush1.bf16.msra.mxu0 %v419
      %439 = vmatprep.subr.bf16.mxu0 0
      %440 = vmatpush1.bf16.msra.mxu0 %v420
      %441 = vmatprep.subr.bf16.mxu0 0
      %442 = vmatpush1.bf16.msra.mxu0 %v421
      %443 = vmatprep.subr.bf16.mxu0 0
      %444 = vmatpush1.bf16.msra.mxu0 %v422
      %445 = vmatprep.subr.bf16.mxu0 0
      %446 = vmatpush1.bf16.msra.mxu0 %v423
      %447 = vmatprep.subr.bf16.mxu0 0
      %448 = vmatpush1.bf16.msra.mxu0 %v424
      %449 = vmatprep.subr.bf16.mxu0 0
      %450 = vmatpush1.bf16.msra.mxu0 0
      %451 = vmatprep.subr.bf16.mxu0 0
      %452 = vmatpush1.bf16.msra.mxu0 0
      %453 = vmatprep.subr.bf16.mxu0 0
      %454 = vmatpush1.bf16.msra.mxu0 0
      %455 = vmatprep.subr.bf16.mxu0 0
      %456 = vmatpush1.bf16.msra.mxu0 0
      %457 = vmatprep.subr.bf16.mxu0 0
      %458 = vmatpush1.bf16.msra.mxu0 0
      %459 = vmatprep.subr.bf16.mxu0 0
      %460 = vmatpush1.bf16.msra.mxu0 0
      %461 = vmatprep.subr.bf16.mxu0 0
      %462 = vmatpush1.bf16.msra.mxu0 0
      %463 = vmatprep.subr.bf16.mxu0 0
      %464 = vmatpush1.bf16.msra.mxu0 0
      %465 = vmatprep.mubr.bf16.mxu0 0
      %466 = vmatmul.mubr.bf16.gmra.mrb[0].mxu0 %v377
      %v467 = vpop.f32.mrb[0].mxu0
      %v468 = vadd.f32 0.0, %v467
      %v469 = vpop.f32.mrb[0].mxu0
      %v470 = vpop.f32.mrb[0].mxu0
      %v471 = vadd.f32 0.0, %v470
      %v472 = vpop.f32.mrb[0].mxu0
      %473 = vmatprep.mubr.bf16.mxu0 0
      %474 = vmatmul.mubr.bf16.gmra.mrb[0].mxu0 %v378
      %v475 = vpop.f32.mrb[0].mxu0
      %v476 = vadd.f32 0.0, %v475
      %v477 = vpop.f32.mrb[0].mxu0
      %v478 = vpop.f32.mrb[0].mxu0
      %v479 = vadd.f32 0.0, %v478
      %v480 = vpop.f32.mrb[0].mxu0
      %481 = vmatprep.mubr.bf16.mxu0 0
      %482 = vmatmul.mubr.bf16.gmra.mrb[0].mxu0 %v379
      %v483 = vpop.f32.mrb[0].mxu0
      %v484 = vadd.f32 0.0, %v483
      %v485 = vpop.f32.mrb[0].mxu0
      %v486 = vpop.f32.mrb[0].mxu0
      %v487 = vadd.f32 0.0, %v486
      %v488 = vpop.f32.mrb[0].mxu0
      %489 = vmatprep.mubr.bf16.mxu0 0
      %490 = vmatmul.mubr.bf16.gmra.mrb[0].mxu0 %v380
      %v491 = vpop.f32.mrb[0].mxu0
      %v492 = vadd.f32 0.0, %v491
      %v493 = vpop.f32.mrb[0].mxu0
      %v494 = vpop.f32.mrb[0].mxu0
      %v495 = vadd.f32 0.0, %v494
      %v496 = vpop.f32.mrb[0].mxu0
      %497 = vdwg.mxu0
      %v498 = vadd.f32 %v329, %v468
      %v499 = vadd.f32 %v330, %v471
      %v500 = vadd.f32 %v331, %v476
      %v501 = vadd.f32 %v332, %v479
      %v502 = vadd.f32 %v333, %v484
      %v503 = vadd.f32 %v334, %v487
      %v504 = vadd.f32 %v335, %v492
      %v505 = vadd.f32 %v336, %v495
      %506 = vst [vmem:[#allocation2] sm:$0xff] %v498
      %507 = vst [vmem:[#allocation2 + $0x8] sm:$0xff] %v499
      %508 = vst [vmem:[#allocation2 + $0x10] sm:$0xff] %v500
      %509 = vst [vmem:[#allocation2 + $0x18] sm:$0xff] %v501
      %510 = vst [vmem:[#allocation2 + $0x20] sm:$0xff] %v502
      %511 = vst [vmem:[#allocation2 + $0x28] sm:$0xff] %v503
      %512 = vst [vmem:[#allocation2 + $0x30] sm:$0xff] %v504
      %513 = vst [vmem:[#allocation2 + $0x38] sm:$0xff] %v505
      // Predicated region
      $region41: #{_lambda_.20} parent=35 // pred_check
        %p514 = pneg %p317
      $region42: #{_lambda_.20} parent=35 // pred_check_branch
        %516 = sbr.rel (%p514) target = $region44
      $region43: #{_lambda_.20} parent=35 // pred_region
        %v517 = vld [vmem:[#allocation2] sm:$0xff]
        %v518 = vld [vmem:[#allocation2 + $0x8] sm:$0xff]
        %v519 = vld [vmem:[#allocation2 + $0x10] sm:$0xff]
        %v520 = vld [vmem:[#allocation2 + $0x18] sm:$0xff]
        %v521 = vld [vmem:[#allocation2 + $0x20] sm:$0xff]
        %v522 = vld [vmem:[#allocation2 + $0x28] sm:$0xff]
        %v523 = vld [vmem:[#allocation2 + $0x30] sm:$0xff]
        %v524 = vld [vmem:[#allocation2 + $0x38] sm:$0xff]
        %v525 = vld [vmem:[%s306] sm:$0x1]
        %v527 = vlaneseq
        %v528 = vshrl.u32 %v527, 7
        %v529 = vsub.s32 0, %v528
        %v530 = vrot.slane %v525, %v529
        %v532 = vmul.f32 %v517, %v530
        %v533 = vmul.f32 %v518, %v530
        %v534 = vmul.f32 %v519, %v530
        %v535 = vmul.f32 %v520, %v530
        %v536 = vmul.f32 %v521, %v530
        %v537 = vmul.f32 %v522, %v530
        %v538 = vmul.f32 %v523, %v530
        %v539 = vmul.f32 %v524, %v530
        %v540 = vld [vmem:[%s309] sm:$0x1]
        %v542 = vlaneseq
        %v543 = vshrl.u32 %v542, 7
        %v544 = vsub.s32 0, %v543
        %v545 = vrot.slane %v540, %v544
        %v547 = vadd.f32 %v532, %v545
        %v548 = vadd.f32 %v533, %v545
        %v549 = vadd.f32 %v534, %v545
        %v550 = vadd.f32 %v535, %v545
        %v551 = vadd.f32 %v536, %v545
        %v552 = vadd.f32 %v537, %v545
        %v553 = vadd.f32 %v538, %v545
        %v554 = vadd.f32 %v539, %v545
        %v555 = vxor.u32 %v547, 2147483648
        %v556 = vxor.u32 %v548, 2147483648
        %v557 = vxor.u32 %v549, 2147483648
        %v558 = vxor.u32 %v550, 2147483648
        %v559 = vxor.u32 %v551, 2147483648
        %v560 = vxor.u32 %v552, 2147483648
        %v561 = vxor.u32 %v553, 2147483648
        %v562 = vxor.u32 %v554, 2147483648
        %v563 = vmul.f32 %v555, 1.442695
        %v564 = vpow.pop %v563
        %v565 = vmul.f32 %v556, 1.442695
        %v566 = vpow.pop %v565
        %v567 = vmul.f32 %v557, 1.442695
        %v568 = vpow.pop %v567
        %v569 = vmul.f32 %v558, 1.442695
        %v570 = vpow.pop %v569
        %v571 = vmul.f32 %v559, 1.442695
        %v572 = vpow.pop %v571
        %v573 = vmul.f32 %v560, 1.442695
        %v574 = vpow.pop %v573
        %v575 = vmul.f32 %v561, 1.442695
        %v576 = vpow.pop %v575
        %v577 = vmul.f32 %v562, 1.442695
        %v578 = vpow.pop %v577
        %v579 = vadd.f32 %v564, 1.0
        %v580 = vadd.f32 %v566, 1.0
        %v581 = vadd.f32 %v568, 1.0
        %v582 = vadd.f32 %v570, 1.0
        %v583 = vadd.f32 %v572, 1.0
        %v584 = vadd.f32 %v574, 1.0
        %v585 = vadd.f32 %v576, 1.0
        %v586 = vadd.f32 %v578, 1.0
        %v587 = vrcp.pop %v579
        %v588 = vmul.f32 1.0, %v587
        %v589 = vrcp.pop %v580
        %v590 = vmul.f32 1.0, %v589
        %v591 = vrcp.pop %v581
        %v592 = vmul.f32 1.0, %v591
        %v593 = vrcp.pop %v582
        %v594 = vmul.f32 1.0, %v593
        %v595 = vrcp.pop %v583
        %v596 = vmul.f32 1.0, %v595
        %v597 = vrcp.pop %v584
        %v598 = vmul.f32 1.0, %v597
        %v599 = vrcp.pop %v585
        %v600 = vmul.f32 1.0, %v599
        %v601 = vrcp.pop %v586
        %v602 = vmul.f32 1.0, %v601
        %v603 = vmul.f32 %v547, %v588
        %v604 = vmul.f32 %v548, %v590
        %v605 = vmul.f32 %v549, %v592
        %v606 = vmul.f32 %v550, %v594
        %v607 = vmul.f32 %v551, %v596
        %v608 = vmul.f32 %v552, %v598
        %v609 = vmul.f32 %v553, %v600
        %v610 = vmul.f32 %v554, %v602
        %v611 = vlaneseq
        %v612 = vshrl.u32 %v611, 7
        %v613 = vadd.s32 %v612, 8
        %v614 = vadd.s32 %v612, 16
        %v615 = vadd.s32 %v612, 24
        %v616 = vadd.s32 %v612, 32
        %v617 = vadd.s32 %v612, 40
        %v618 = vadd.s32 %v612, 48
        %v619 = vadd.s32 %v612, 56
        %s620 = smul.u32 %s23, 64
        %v621 = vstv %s620
        %v622 = vadd.s32 %v612, %v621
        %v623 = vadd.s32 %v613, %v621
        %v624 = vadd.s32 %v614, %v621
        %v625 = vadd.s32 %v615, %v621
        %v626 = vadd.s32 %v616, %v621
        %v627 = vadd.s32 %v617, %v621
        %v628 = vadd.s32 %v618, %v621
        %v629 = vadd.s32 %v619, %v621
        %vm630 = vcmp.lt.s32.totalorder %v622, 64
        %vm631 = vcmp.lt.s32.totalorder %v623, 64
        %vm632 = vcmp.lt.s32.totalorder %v624, 64
        %vm633 = vcmp.lt.s32.totalorder %v625, 64
        %vm634 = vcmp.lt.s32.totalorder %v626, 64
        %vm635 = vcmp.lt.s32.totalorder %v627, 64
        %vm636 = vcmp.lt.s32.totalorder %v628, 64
        %vm637 = vcmp.lt.s32.totalorder %v629, 64
        %v638 = vsel %vm630, 1, 0
        %v639 = vsel %vm631, 1, 0
        %v640 = vsel %vm632, 1, 0
        %v641 = vsel %vm633, 1, 0
        %v642 = vsel %vm634, 1, 0
        %v643 = vsel %vm635, 1, 0
        %v644 = vsel %vm636, 1, 0
        %v645 = vsel %vm637, 1, 0
        %vm646 = vcmp.eq.s32.totalorder %v638, 1
        %vm647 = vcmp.eq.s32.totalorder %v639, 1
        %vm648 = vcmp.eq.s32.totalorder %v640, 1
        %vm649 = vcmp.eq.s32.totalorder %v641, 1
        %vm650 = vcmp.eq.s32.totalorder %v642, 1
        %vm651 = vcmp.eq.s32.totalorder %v643, 1
        %vm652 = vcmp.eq.s32.totalorder %v644, 1
        %vm653 = vcmp.eq.s32.totalorder %v645, 1
        %v654 = vsel %vm646, %v603, 0.0
        %v655 = vsel %vm647, %v604, 0.0
        %v656 = vsel %vm648, %v605, 0.0
        %v657 = vsel %vm649, %v606, 0.0
        %v658 = vsel %vm650, %v607, 0.0
        %v659 = vsel %vm651, %v608, 0.0
        %v660 = vsel %vm652, %v609, 0.0
        %v661 = vsel %vm653, %v610, 0.0
        %v662 = vadd.f32 %v654, %v655
        %v663 = vadd.f32 %v662, %v656
        %v664 = vadd.f32 %v663, %v657
        %v665 = vadd.f32 %v664, %v658
        %v666 = vadd.f32 %v665, %v659
        %v667 = vadd.f32 %v666, %v660
        %v668 = vadd.f32 %v667, %v661
        %v669 = vrot.slane %v668, 4
        %v670 = vadd.f32 %v668, %v669
        %v671 = vrot.slane %v670, 2
        %v672 = vadd.f32 %v670, %v671
        %v673 = vrot.slane %v672, 1
        %v674 = vadd.f32 %v672, %v673
        %v675 = vmul.f32 %v674, 0.015625
        %p676 = scmp.eq.s32.totalorder %s23, 0
        // Predicated region
        $region45: #{_lambda_.20} parent=43 // pred_check
          %p677 = pneg %p676
        $region46: #{_lambda_.20} parent=43 // pred_check_branch
          %679 = sbr.rel (%p677) target = $region48
        $region47: #{_lambda_.20} parent=43 // pred_region
          %680 = vst [vmem:[%s315] sm:$0x1] %v675
        $region48: #{_lambda_.20} parent=43 // pred_fallthru
          _
        %p681 = scmp.gt.s32.totalorder %s23, 0
        // Predicated region
        $region49: #{_lambda_.20} parent=43 // pred_check
          %p682 = pneg %p681
        $region50: #{_lambda_.20} parent=43 // pred_check_branch
          %684 = sbr.rel (%p682) target = $region52
        $region51: #{_lambda_.20} parent=43 // pred_region
          %v685 = vld [vmem:[%s315] sm:$0x1]
          %v686 = vadd.f32 %v685, %v675
          %687 = vst [vmem:[%s315] sm:$0x1] %v686
        $region52: #{_lambda_.20} parent=43 // pred_fallthru
          _
      $region44: #{_lambda_.20} parent=35 // pred_fallthru
        _
      %p688 = scmp.lt.s32.totalorder %s21, 1
      %s689 = scalar_select %p688, %s21, 1
      %p690 = scmp.lt.s32.totalorder %s22, 0
      %s691 = scalar_select %p690, %s22, 0
      %s692 = sadd.s32 %s691, %s689
      %s693 = scalar_lea.vmem %s4, %s692
      // Predicated region
      $region53: #{_lambda_.20} parent=35 // pred_check
        %p694 = pneg %p171
      $region54: #{_lambda_.20} parent=35 // pred_check_branch
        %696 = sbr.rel (%p694) target = $region56
      $region55: #{_lambda_.20} parent=35 // pred_region
        _
      $region56: #{_lambda_.20} parent=35 // pred_fallthru
        _
    $region36: #{_lambda_.20} parent=5 // pred_fallthru
      _
    %p697 = scmp.le.s32.totalorder 2, %s10
    // Predicated region
    $region57: #{_lambda_.20} parent=5 // pred_check
      %p698 = pneg %p697
    $region58: #{_lambda_.20} parent=5 // pred_check_branch
      %700 = sbr.rel (%p698) target = $region60
    $region59: #{_lambda_.20} parent=5 // pred_region
      %s701 = ssub.s32 %s10, 2
      // Predicated region
      $region61: #{_lambda_.20} parent=59 // pred_check
        %p702 = pneg %p177
      $region62: #{_lambda_.20} parent=59 // pred_check_branch
        %704 = sbr.rel (%p702) target = $region64
      $region63: #{_lambda_.20} parent=59 // pred_region
        %p705 = scmp.lt.s32.totalorder %s25, 1
        %s706 = scalar_select %p705, %s25, 1
        %p707 = scmp.lt.s32.totalorder %s26, 0
        %s708 = scalar_select %p707, %s26, 0
        %s709 = sadd.s32 %s708, %s706
        %s710 = scalar_lea.vmem %s4, %s709
      $region64: #{_lambda_.20} parent=59 // pred_fallthru
        _
    $region60: #{_lambda_.20} parent=5 // pred_fallthru
      _
  $region6: #{_lambda_.20} parent=0 // loop_footer
    %s14 = sadd.s32 1, %s10
  $region7: #{_lambda_.20} parent=0 // loop_footer_branch
    %9 = sbr.rel target = $region3
  $region8: #{_lambda_.20} parent=0 // loop_exit
    _

// kernel: _lambda_.19
$region0: #{_lambda_.19}
  #allocation0 [shape = 'u32[]', space=smem, size = 0x4, offset = 0x4, fixed_abs, tag = 'smem constant byte address 0x4 - core index']
  #allocation1 [shape = 'u32[144,128]{1,0:T(1,128)}', space=vmem, size = 0x12000, scoped, tag = 'internal scratch']
  #allocation2 [shape = 'f32[64,128]{1,0:T(8,128)}', space=vmem, size = 0x8000, scoped, tag = 'scratch operand']
  %s0 = inlined_call_operand.vmem [shape: bf16[2,64,128], index: 0, kind: input, shape index: {}]
  %s1 = inlined_call_operand.vmem [shape: bf16[2,1,128], index: 1, kind: input, shape index: {}]
  %s2 = inlined_call_operand.vmem [shape: bf16[128,128], index: 2, kind: input, shape index: {}]
  %s3 = inlined_call_operand.vmem [shape: f32[1,128], index: 3, kind: input, shape index: {}]
  %s4 = inlined_call_operand.vmem [shape: f32[1,128], index: 4, kind: input, shape index: {}]
  %s5 = inlined_call_operand.vmem [shape: bf16[2,64,128], index: 5, kind: input, shape index: {}]
  %s6 = inlined_call_operand.vmem [shape: bf16[2,64,128], index: 6, kind: output, shape index: {}]
  %s7 = sld [smem:[#allocation0]]
  $region65: #{_lambda_.19} parent=0
    _
  %s9 = ssub.s32 1, %s7
  %s10 = scalar_select 0, %s9, %s7
  loop: start=0, step=1, limit=4
  $region2: #{_lambda_.19} parent=0 // loop_pre_header
    _
  $region3: #{_lambda_.19} parent=0 // loop_header
    %s12 = sphi 0, %s16
    %p13 = scmp.ge.s32.totalorder %s12, 4
    %s19 = sphi 0, %s45
    %s20 = sphi 0, %s41
    %s21 = sphi 0, %s37
    %s22 = sphi 0, %s33
    %s23 = sphi 0, %s19
    %s24 = sphi 0, %s20
    %s25 = sphi 0, %s21
    %s26 = sphi 0, %s22
    %s27 = sphi 0, %s23
    %s28 = sphi 0, %s24
    %s29 = sphi 0, %s25
    %s30 = sphi 0, %s26
    %s52 = sphi 0, %s54
    %s55 = sphi 0, %s52
    %s56 = sphi 0, %s55
    %s72 = sphi 0, %s56
    %s80 = sphi 0, %s82
    %s83 = sphi 0, %s80
    %s84 = sphi 0, %s83
    %s100 = sphi 0, %s84
    %s108 = sphi 0, %s110
    %s111 = sphi 0, %s108
    %s112 = sphi 0, %s111
    %s128 = sphi 0, %s112
    %s134 = sphi 0, %s136
    %s137 = sphi 0, %s134
    %s138 = sphi 0, %s137
    %s154 = sphi 0, %s138
    %s160 = sphi 0, %s162
    %s163 = sphi 0, %s160
    %s164 = sphi 0, %s163
    %s180 = sphi 0, %s164
    %s190 = sphi 0, %s192
    %s193 = sphi 0, %s190
    %s194 = sphi 0, %s193
    %s210 = sphi 0, %s194
    %s220 = sphi 0, %s222
    %s223 = sphi 0, %s220
    %s224 = sphi 0, %s223
    %s240 = sphi 0, %s224
  $region4: #{_lambda_.19} parent=0 // loop_header_branch
    %15 = sbr.rel (%p13) target = $region8
  $region5: #{_lambda_.19} parent=0 // loop_body
    %s17 = ssub.s32 %s12, 1
    %s18 = ssub.s32 %s12, 2
    %s31 = sadd.s32 1, %s22
    %p32 = scmp.ge.s32.totalorder %s31, 1
    %s33 = scalar_select %p32, 0, %s31
    %s34 = sadd.s32 1, %s21
    %s35 = scalar_select %p32, %s34, %s21
    %p36 = scmp.ge.s32.totalorder %s35, 1
    %s37 = scalar_select %p36, 0, %s35
    %s38 = sadd.s32 1, %s20
    %s39 = scalar_select %p36, %s38, %s20
    %p40 = scmp.ge.s32.totalorder %s39, 1
    %s41 = scalar_select %p40, 0, %s39
    %s42 = sadd.s32 1, %s19
    %s43 = scalar_select %p40, %s42, %s19
    %p44 = scmp.ge.s32.totalorder %s43, 2
    %s45 = scalar_select %p44, 0, %s43
    %s46 = ssub.s32 %s19, %s45
    %s47 = ssub.s32 %s20, %s41
    %s48 = sor.u32 %s46, %s47
    %s49 = ssub.s32 %s22, %s33
    %s50 = sor.u32 %s48, %s49
    %p51 = scmp.eq.s32.totalorder %s50, 0
    %s53 = sadd.s32 %s52, 1
    %s54 = scalar_select %p51, %s52, %s53
    %p57 = pneg %p51
    %p58 = scmp.eq.s32.totalorder %s12, 1
    %p59 = por %p57, %p58
    %p60 = scmp.ne.s32.totalorder %s52, %s55
    %p61 = scmp.eq.s32.totalorder %s12, 0
    %p62 = por %p60, %p61
    %p63 = scmp.ne.s32.totalorder %s52, %s55
    %p64 = scmp.eq.s32.totalorder %s17, 1
    %p65 = por %p63, %p64
    %p66 = scmp.ne.s32.totalorder %s55, %s56
    %p67 = scmp.eq.s32.totalorder %s17, 0
    %p68 = por %p66, %p67
    %p69 = scmp.ne.s32.totalorder %s55, %s56
    %p70 = scmp.eq.s32.totalorder %s18, 1
    %p71 = por %p69, %p70
    %p73 = scmp.ne.s32.totalorder %s56, %s72
    %p74 = scmp.eq.s32.totalorder %s18, 0
    %p75 = por %p73, %p74
    %s76 = ssub.s32 %s19, %s45
    %s77 = ssub.s32 %s22, %s33
    %s78 = sor.u32 %s76, %s77
    %p79 = scmp.eq.s32.totalorder %s78, 0
    %s81 = sadd.s32 %s80, 1
    %s82 = scalar_select %p79, %s80, %s81
    %p85 = pneg %p79
    %p86 = scmp.eq.s32.totalorder %s12, 1
    %p87 = por %p85, %p86
    %p88 = scmp.ne.s32.totalorder %s80, %s83
    %p89 = scmp.eq.s32.totalorder %s12, 0
    %p90 = por %p88, %p89
    %p91 = scmp.ne.s32.totalorder %s80, %s83
    %p92 = scmp.eq.s32.totalorder %s17, 1
    %p93 = por %p91, %p92
    %p94 = scmp.ne.s32.totalorder %s83, %s84
    %p95 = scmp.eq.s32.totalorder %s17, 0
    %p96 = por %p94, %p95
    %p97 = scmp.ne.s32.totalorder %s83, %s84
    %p98 = scmp.eq.s32.totalorder %s18, 1
    %p99 = por %p97, %p98
    %p101 = scmp.ne.s32.totalorder %s84, %s100
    %p102 = scmp.eq.s32.totalorder %s18, 0
    %p103 = por %p101, %p102
    %s104 = ssub.s32 %s22, %s33
    %s105 = ssub.s32 %s21, %s37
    %s106 = sor.u32 %s104, %s105
    %p107 = scmp.eq.s32.totalorder %s106, 0
    %s109 = sadd.s32 %s108, 1
    %s110 = scalar_select %p107, %s108, %s109
    %p113 = pneg %p107
    %p114 = scmp.eq.s32.totalorder %s12, 1
    %p115 = por %p113, %p114
    %p116 = scmp.ne.s32.totalorder %s108, %s111
    %p117 = scmp.eq.s32.totalorder %s12, 0
    %p118 = por %p116, %p117
    %p119 = scmp.ne.s32.totalorder %s108, %s111
    %p120 = scmp.eq.s32.totalorder %s17, 1
    %p121 = por %p119, %p120
    %p122 = scmp.ne.s32.totalorder %s111, %s112
    %p123 = scmp.eq.s32.totalorder %s17, 0
    %p124 = por %p122, %p123
    %p125 = scmp.ne.s32.totalorder %s111, %s112
    %p126 = scmp.eq.s32.totalorder %s18, 1
    %p127 = por %p125, %p126
    %p129 = scmp.ne.s32.totalorder %s112, %s128
    %p130 = scmp.eq.s32.totalorder %s18, 0
    %p131 = por %p129, %p130
    %s132 = ssub.s32 %s21, %s37
    %p133 = scmp.eq.s32.totalorder %s132, 0
    %s135 = sadd.s32 %s134, 1
    %s136 = scalar_select %p133, %s134, %s135
    %p139 = pneg %p133
    %p140 = scmp.eq.s32.totalorder %s12, 1
    %p141 = por %p139, %p140
    %p142 = scmp.ne.s32.totalorder %s134, %s137
    %p143 = scmp.eq.s32.totalorder %s12, 0
    %p144 = por %p142, %p143
    %p145 = scmp.ne.s32.totalorder %s134, %s137
    %p146 = scmp.eq.s32.totalorder %s17, 1
    %p147 = por %p145, %p146
    %p148 = scmp.ne.s32.totalorder %s137, %s138
    %p149 = scmp.eq.s32.totalorder %s17, 0
    %p150 = por %p148, %p149
    %p151 = scmp.ne.s32.totalorder %s137, %s138
    %p152 = scmp.eq.s32.totalorder %s18, 1
    %p153 = por %p151, %p152
    %p155 = scmp.ne.s32.totalorder %s138, %s154
    %p156 = scmp.eq.s32.totalorder %s18, 0
    %p157 = por %p155, %p156
    %s158 = ssub.s32 %s21, %s37
    %p159 = scmp.eq.s32.totalorder %s158, 0
    %s161 = sadd.s32 %s160, 1
    %s162 = scalar_select %p159, %s160, %s161
    %p165 = pneg %p159
    %p166 = scmp.eq.s32.totalorder %s12, 1
    %p167 = por %p165, %p166
    %p168 = scmp.ne.s32.totalorder %s160, %s163
    %p169 = scmp.eq.s32.totalorder %s12, 0
    %p170 = por %p168, %p169
    %p171 = scmp.ne.s32.totalorder %s160, %s163
    %p172 = scmp.eq.s32.totalorder %s17, 1
    %p173 = por %p171, %p172
    %p174 = scmp.ne.s32.totalorder %s163, %s164
    %p175 = scmp.eq.s32.totalorder %s17, 0
    %p176 = por %p174, %p175
    %p177 = scmp.ne.s32.totalorder %s163, %s164
    %p178 = scmp.eq.s32.totalorder %s18, 1
    %p179 = por %p177, %p178
    %p181 = scmp.ne.s32.totalorder %s164, %s180
    %p182 = scmp.eq.s32.totalorder %s18, 0
    %p183 = por %p181, %p182
    %s184 = ssub.s32 %s19, %s45
    %s185 = ssub.s32 %s20, %s41
    %s186 = sor.u32 %s184, %s185
    %s187 = ssub.s32 %s21, %s37
    %s188 = sor.u32 %s186, %s187
    %p189 = scmp.eq.s32.totalorder %s188, 0
    %s191 = sadd.s32 %s190, 1
    %s192 = scalar_select %p189, %s190, %s191
    %p195 = pneg %p189
    %p196 = scmp.eq.s32.totalorder %s12, 1
    %p197 = por %p195, %p196
    %p198 = scmp.ne.s32.totalorder %s190, %s193
    %p199 = scmp.eq.s32.totalorder %s12, 0
    %p200 = por %p198, %p199
    %p201 = scmp.ne.s32.totalorder %s190, %s193
    %p202 = scmp.eq.s32.totalorder %s17, 1
    %p203 = por %p201, %p202
    %p204 = scmp.ne.s32.totalorder %s193, %s194
    %p205 = scmp.eq.s32.totalorder %s17, 0
    %p206 = por %p204, %p205
    %p207 = scmp.ne.s32.totalorder %s193, %s194
    %p208 = scmp.eq.s32.totalorder %s18, 1
    %p209 = por %p207, %p208
    %p211 = scmp.ne.s32.totalorder %s194, %s210
    %p212 = scmp.eq.s32.totalorder %s18, 0
    %p213 = por %p211, %p212
    %s214 = ssub.s32 %s19, %s45
    %s215 = ssub.s32 %s20, %s41
    %s216 = sor.u32 %s214, %s215
    %s217 = ssub.s32 %s21, %s37
    %s218 = sor.u32 %s216, %s217
    %p219 = scmp.eq.s32.totalorder %s218, 0
    %s221 = sadd.s32 %s220, 1
    %s222 = scalar_select %p219, %s220, %s221
    %p225 = pneg %p219
    %p226 = scmp.eq.s32.totalorder %s12, 1
    %p227 = por %p225, %p226
    %p228 = scmp.ne.s32.totalorder %s220, %s223
    %p229 = scmp.eq.s32.totalorder %s12, 0
    %p230 = por %p228, %p229
    %p231 = scmp.ne.s32.totalorder %s220, %s223
    %p232 = scmp.eq.s32.totalorder %s17, 1
    %p233 = por %p231, %p232
    %p234 = scmp.ne.s32.totalorder %s223, %s224
    %p235 = scmp.eq.s32.totalorder %s17, 0
    %p236 = por %p234, %p235
    %p237 = scmp.ne.s32.totalorder %s223, %s224
    %p238 = scmp.eq.s32.totalorder %s18, 1
    %p239 = por %p237, %p238
    %p241 = scmp.ne.s32.totalorder %s224, %s240
    %p242 = scmp.eq.s32.totalorder %s18, 0
    %p243 = por %p241, %p242
    %p244 = scmp.le.s32.totalorder 1, %s12
    %p245 = scmp.lt.s32.totalorder %s12, 3
    %p246 = pnand %p244, %p245
    %p247 = pneg %p246
    // Predicated region
    $region9: #{_lambda_.19} parent=5 // pred_check
      _
    $region10: #{_lambda_.19} parent=5 // pred_check_branch
      %249 = sbr.rel (%p246) target = $region12
    $region11: #{_lambda_.19} parent=5 // pred_region
      %s250 = ssub.s32 %s12, 1
      // Predicated region
      $region13: #{_lambda_.19} parent=11 // pred_check
        %p251 = pneg %p124
      $region14: #{_lambda_.19} parent=11 // pred_check_branch
        %253 = sbr.rel (%p251) target = $region16
      $region15: #{_lambda_.19} parent=11 // pred_region
        %s254 = smul.u32 16, %s26
        %p255 = scmp.lt.s32.totalorder %s254, 15
        %s256 = scalar_select %p255, %s254, 15
        %p257 = scmp.lt.s32.totalorder %s25, 0
        %s258 = scalar_select %p257, %s25, 0
        %s259 = sadd.s32 %s258, %s256
        %s260 = smul.addr %s259, 4
        %s261 = scalar_lea.vmem %s2, %s260
        %s262 = smul.u32 16, %s26
      $region16: #{_lambda_.19} parent=11 // pred_fallthru
        _
      // Predicated region
      $region17: #{_lambda_.19} parent=11 // pred_check
        %p263 = pneg %p150
      $region18: #{_lambda_.19} parent=11 // pred_check_branch
        %265 = sbr.rel (%p263) target = $region20
      $region19: #{_lambda_.19} parent=11 // pred_region
        %p266 = scmp.lt.s32.totalorder %s25, 0
        %s267 = scalar_select %p266, %s25, 0
        %s268 = scalar_lea.vmem %s3, %s267
      $region20: #{_lambda_.19} parent=11 // pred_fallthru
        _
      // Predicated region
      $region21: #{_lambda_.19} parent=11 // pred_check
        %p269 = pneg %p176
      $region22: #{_lambda_.19} parent=11 // pred_check_branch
        %271 = sbr.rel (%p269) target = $region24
      $region23: #{_lambda_.19} parent=11 // pred_region
        %p272 = scmp.lt.s32.totalorder %s25, 0
        %s273 = scalar_select %p272, %s25, 0
        %s274 = scalar_lea.vmem %s4, %s273
      $region24: #{_lambda_.19} parent=11 // pred_fallthru
        _
    $region12: #{_lambda_.19} parent=5 // pred_fallthru
      _
    %p275 = scmp.lt.s32.totalorder %s12, 2
    // Predicated region
    $region25: #{_lambda_.19} parent=5 // pred_check
      %p276 = pneg %p275
    $region26: #{_lambda_.19} parent=5 // pred_check_branch
      %278 = sbr.rel (%p276) target = $region28
    $region27: #{_lambda_.19} parent=5 // pred_region
      // Predicated region
      $region29: #{_lambda_.19} parent=27 // pred_check
        %p279 = pneg %p62
      $region30: #{_lambda_.19} parent=27 // pred_check_branch
        %281 = sbr.rel (%p279) target = $region32
      $region31: #{_lambda_.19} parent=27 // pred_region
        %s282 = smul.u32 8, %s20
        %p283 = scmp.lt.s32.totalorder %s19, 1
        %s284 = scalar_select %p283, %s19, 1
        %p285 = scmp.lt.s32.totalorder %s282, 7
        %s286 = scalar_select %p285, %s282, 7
        %p287 = scmp.lt.s32.totalorder %s22, 0
        %s288 = scalar_select %p287, %s22, 0
        %s289 = sadd.s32 %s288, %s286
        %s290 = smul.addr %s284, 8
        %s291 = sadd.s32 %s289, %s290
        %s292 = smul.addr %s291, 4
        %s293 = scalar_lea.vmem %s0, %s292
        %s294 = smul.u32 8, %s20
      $region32: #{_lambda_.19} parent=27 // pred_fallthru
        _
      // Predicated region
      $region33: #{_lambda_.19} parent=27 // pred_check
        %p295 = pneg %p90
      $region34: #{_lambda_.19} parent=27 // pred_check_branch
        %297 = sbr.rel (%p295) target = $region36
      $region35: #{_lambda_.19} parent=27 // pred_region
        %p298 = scmp.lt.s32.totalorder %s19, 1
        %s299 = scalar_select %p298, %s19, 1
        %p300 = scmp.lt.s32.totalorder %s22, 0
        %s301 = scalar_select %p300, %s22, 0
        %s302 = sadd.s32 %s301, %s299
        %s303 = scalar_lea.vmem %s1, %s302
      $region36: #{_lambda_.19} parent=27 // pred_fallthru
        _
      // Predicated region
      $region37: #{_lambda_.19} parent=27 // pred_check
        %p304 = pneg %p200
      $region38: #{_lambda_.19} parent=27 // pred_check_branch
        %306 = sbr.rel (%p304) target = $region40
      $region39: #{_lambda_.19} parent=27 // pred_region
        %s307 = smul.u32 8, %s20
        %p308 = scmp.lt.s32.totalorder %s19, 1
        %s309 = scalar_select %p308, %s19, 1
        %p310 = scmp.lt.s32.totalorder %s307, 7
        %s311 = scalar_select %p310, %s307, 7
        %p312 = scmp.lt.s32.totalorder %s21, 0
        %s313 = scalar_select %p312, %s21, 0
        %s314 = sadd.s32 %s313, %s311
        %s315 = smul.addr %s309, 8
        %s316 = sadd.s32 %s314, %s315
        %s317 = smul.addr %s316, 4
        %s318 = scalar_lea.vmem %s5, %s317
        %s319 = smul.u32 8, %s20
      $region40: #{_lambda_.19} parent=27 // pred_fallthru
        _
    $region28: #{_lambda_.19} parent=5 // pred_fallthru
      _
    %p320 = scmp.le.s32.totalorder 1, %s12
    %p321 = scmp.lt.s32.totalorder %s12, 3
    %p322 = pnand %p320, %p321
    %p323 = pneg %p322
    // Predicated region
    $region41: #{_lambda_.19} parent=5 // pred_check
      _
    $region42: #{_lambda_.19} parent=5 // pred_check_branch
      %325 = sbr.rel (%p322) target = $region44
    $region43: #{_lambda_.19} parent=5 // pred_region
      %s326 = ssub.s32 %s12, 1
      %s327 = smul.u32 8, %s24
      %p328 = scmp.lt.s32.totalorder %s23, 1
      %s329 = scalar_select %p328, %s23, 1
      %p330 = scmp.lt.s32.totalorder %s327, 7
      %s331 = scalar_select %p330, %s327, 7
      %p332 = scmp.lt.s32.totalorder %s26, 0
      %s333 = scalar_select %p332, %s26, 0
      %s334 = sadd.s32 %s333, %s331
      %s335 = smul.addr %s329, 8
      %s336 = sadd.s32 %s334, %s335
      %s337 = smul.addr %s336, 4
      %s338 = scalar_lea.vmem %s0, %s337
      %p339 = pneg %p68
      %p340 = pneg %p65
      %p341 = scmp.lt.s32.totalorder %s23, 1
      %s342 = scalar_select %p341, %s23, 1
      %p343 = scmp.lt.s32.totalorder %s26, 0
      %s344 = scalar_select %p343, %s26, 0
      %s345 = sadd.s32 %s344, %s342
      %s346 = scalar_lea.vmem %s1, %s345
      %p347 = pneg %p96
      %p348 = pneg %p93
      %s349 = smul.u32 16, %s26
      %p350 = scmp.lt.s32.totalorder %s349, 15
      %s351 = scalar_select %p350, %s349, 15
      %p352 = scmp.lt.s32.totalorder %s25, 0
      %s353 = scalar_select %p352, %s25, 0
      %s354 = sadd.s32 %s353, %s351
      %s355 = smul.addr %s354, 4
      %s356 = scalar_lea.vmem %s2, %s355
      %p357 = pneg %p124
      %p358 = pneg %p121
      %p359 = scmp.lt.s32.totalorder %s25, 0
      %s360 = scalar_select %p359, %s25, 0
      %s361 = scalar_lea.vmem %s3, %s360
      %p362 = pneg %p150
      %p363 = pneg %p147
      %p364 = scmp.lt.s32.totalorder %s25, 0
      %s365 = scalar_select %p364, %s25, 0
      %s366 = scalar_lea.vmem %s4, %s365
      %p367 = pneg %p176
      %p368 = pneg %p173
      %s369 = smul.u32 8, %s24
      %p370 = scmp.lt.s32.totalorder %s23, 1
      %s371 = scalar_select %p370, %s23, 1
      %p372 = scmp.lt.s32.totalorder %s369, 7
      %s373 = scalar_select %p372, %s369, 7
      %p374 = scmp.lt.s32.totalorder %s25, 0
      %s375 = scalar_select %p374, %s25, 0
      %s376 = sadd.s32 %s375, %s373
      %s377 = smul.addr %s371, 8
      %s378 = sadd.s32 %s376, %s377
      %s379 = smul.addr %s378, 4
      %s380 = scalar_lea.vmem %s5, %s379
      %p381 = pneg %p206
      %p382 = pneg %p203
      %p383 = pneg %p236
      %p384 = pneg %p233
      %s385 = smul.u32 8, %s24
      %p386 = scmp.lt.s32.totalorder %s23, 1
      %s387 = scalar_select %p386, %s23, 1
      %p388 = scmp.lt.s32.totalorder %s385, 7
      %s389 = scalar_select %p388, %s385, 7
      %p390 = scmp.lt.s32.totalorder %s25, 0
      %s391 = scalar_select %p390, %s25, 0
      %s392 = sadd.s32 %s391, %s389
      %s393 = smul.addr %s387, 8
      %s394 = sadd.s32 %s392, %s393
      %s395 = smul.addr %s394, 4
      %s396 = scalar_lea.vmem %s6, %s395
      %s397 = smul.u32 8, %s24
      %p398 = scmp.lt.s32.totalorder %s23, 1
      %s399 = scalar_select %p398, %s23, 1
      %p400 = scmp.lt.s32.totalorder %s397, 7
      %s401 = scalar_select %p400, %s397, 7
      %p402 = scmp.lt.s32.totalorder %s26, 0
      %s403 = scalar_select %p402, %s26, 0
      %s404 = sadd.s32 %s403, %s401
      %s405 = smul.addr %s399, 8
      %s406 = sadd.s32 %s404, %s405
      %s407 = smul.addr %s406, 4
      %s408 = scalar_lea.vmem %s0, %s407
      %s409 = smul.u32 8, %s24
      %p410 = scmp.lt.s32.totalorder %s23, 1
      %s411 = scalar_select %p410, %s23, 1
      %p412 = scmp.lt.s32.totalorder %s26, 0
      %s413 = scalar_select %p412, %s26, 0
      %s414 = sadd.s32 %s413, %s411
      %s415 = scalar_lea.vmem %s1, %s414
      %s416 = smul.u32 16, %s26
      %p417 = scmp.lt.s32.totalorder %s416, 15
      %s418 = scalar_select %p417, %s416, 15
      %p419 = scmp.lt.s32.totalorder %s25, 0
      %s420 = scalar_select %p419, %s25, 0
      %s421 = sadd.s32 %s420, %s418
      %s422 = smul.addr %s421, 4
      %s423 = scalar_lea.vmem %s2, %s422
      %s424 = smul.u32 16, %s26
      %p425 = scmp.lt.s32.totalorder %s25, 0
      %s426 = scalar_select %p425, %s25, 0
      %s427 = scalar_lea.vmem %s3, %s426
      %p428 = scmp.lt.s32.totalorder %s25, 0
      %s429 = scalar_select %p428, %s25, 0
      %s430 = scalar_lea.vmem %s4, %s429
      %s431 = smul.u32 8, %s24
      %p432 = scmp.lt.s32.totalorder %s23, 1
      %s433 = scalar_select %p432, %s23, 1
      %p434 = scmp.lt.s32.totalorder %s431, 7
      %s435 = scalar_select %p434, %s431, 7
      %p436 = scmp.lt.s32.totalorder %s25, 0
      %s437 = scalar_select %p436, %s25, 0
      %s438 = sadd.s32 %s437, %s435
      %s439 = smul.addr %s433, 8
      %s440 = sadd.s32 %s438, %s439
      %s441 = smul.addr %s440, 4
      %s442 = scalar_lea.vmem %s5, %s441
      %s443 = smul.u32 8, %s24
      %s444 = smul.u32 8, %s24
      %p445 = scmp.lt.s32.totalorder %s23, 1
      %s446 = scalar_select %p445, %s23, 1
      %p447 = scmp.lt.s32.totalorder %s444, 7
      %s448 = scalar_select %p447, %s444, 7
      %p449 = scmp.lt.s32.totalorder %s25, 0
      %s450 = scalar_select %p449, %s25, 0
      %s451 = sadd.s32 %s450, %s448
      %s452 = smul.addr %s446, 8
      %s453 = sadd.s32 %s451, %s452
      %s454 = smul.addr %s453, 4
      %s455 = scalar_lea.vmem %s6, %s454
      %s456 = smul.u32 8, %s24
      %p458 = scmp.eq.s32.totalorder %s26, 0
      // Predicated region
      $region45: #{_lambda_.19} parent=43 // pred_check
        %p459 = pneg %p458
      $region46: #{_lambda_.19} parent=43 // pred_check_branch
        %461 = sbr.rel (%p459) target = $region48
      $region47: #{_lambda_.19} parent=43 // pred_region
        %462 = vst [vmem:[#allocation2] sm:$0xff] 0.0
        %463 = vst [vmem:[#allocation2 + $0x8] sm:$0xff] 0.0
        %464 = vst [vmem:[#allocation2 + $0x10] sm:$0xff] 0.0
        %465 = vst [vmem:[#allocation2 + $0x18] sm:$0xff] 0.0
        %466 = vst [vmem:[#allocation2 + $0x20] sm:$0xff] 0.0
        %467 = vst [vmem:[#allocation2 + $0x28] sm:$0xff] 0.0
        %468 = vst [vmem:[#allocation2 + $0x30] sm:$0xff] 0.0
        %469 = vst [vmem:[#allocation2 + $0x38] sm:$0xff] 0.0
      $region48: #{_lambda_.19} parent=43 // pred_fallthru
        _
      %v470 = vld [vmem:[%s408] sm:$0xf]
      %v471 = vld [vmem:[%s408 + $0x4] sm:$0xf]
      %v472 = vld [vmem:[%s408 + $0x8] sm:$0xf]
      %v473 = vld [vmem:[%s408 + $0xc] sm:$0xf]
      %v474 = vld [vmem:[%s408 + $0x10] sm:$0xf]
      %v475 = vld [vmem:[%s408 + $0x14] sm:$0xf]
      %v476 = vld [vmem:[%s408 + $0x18] sm:$0xf]
      %v477 = vld [vmem:[%s408 + $0x1c] sm:$0xf]
      %v478 = vld [vmem:[%s415] sm:$0x1]
      %v480 = vpack.i.b16 %v478, %v478
      %v482 = vlaneseq
      %v483 = vshrl.u32 %v482, 7
      %v484 = vsub.s32 0, %v483
      %v485 = vrot.slane %v480, %v484
      %v487 = vunpack.c.l.b16 %v485
      %v488 = vpack.c.b16 %v487, %v487
      %v490 = vmul.bf16 %v470, %v488
      %v491 = vmul.bf16 %v471, %v488
      %v492 = vmul.bf16 %v472, %v488
      %v493 = vmul.bf16 %v473, %v488
      %v494 = vmul.bf16 %v474, %v488
      %v495 = vmul.bf16 %v475, %v488
      %v496 = vmul.bf16 %v476, %v488
      %v497 = vmul.bf16 %v477, %v488
      %v498 = vld [vmem:[#allocation2] sm:$0xff]
      %v499 = vld [vmem:[#allocation2 + $0x8] sm:$0xff]
      %v500 = vld [vmem:[#allocation2 + $0x10] sm:$0xff]
      %v501 = vld [vmem:[#allocation2 + $0x18] sm:$0xff]
      %v502 = vld [vmem:[#allocation2 + $0x20] sm:$0xff]
      %v503 = vld [vmem:[#allocation2 + $0x28] sm:$0xff]
      %v504 = vld [vmem:[#allocation2 + $0x30] sm:$0xff]
      %v505 = vld [vmem:[#allocation2 + $0x38] sm:$0xff]
      %v506 = vld [vmem:[%s423] sm:$0xf]
      %v507 = vld [vmem:[%s423 + $0x4] sm:$0xf]
      %v508 = vld [vmem:[%s423 + $0x8] sm:$0xf]
      %v509 = vld [vmem:[%s423 + $0xc] sm:$0xf]
      %v510 = vld [vmem:[%s423 + $0x10] sm:$0xf]
      %v511 = vld [vmem:[%s423 + $0x14] sm:$0xf]
      %v512 = vld [vmem:[%s423 + $0x18] sm:$0xf]
      %v513 = vld [vmem:[%s423 + $0x1c] sm:$0xf]
      %v514 = vld [vmem:[%s423 + $0x20] sm:$0xf]
      %v515 = vld [vmem:[%s423 + $0x24] sm:$0xf]
      %v516 = vld [vmem:[%s423 + $0x28] sm:$0xf]
      %v517 = vld [vmem:[%s423 + $0x2c] sm:$0xf]
      %v518 = vld [vmem:[%s423 + $0x30] sm:$0xf]
      %v519 = vld [vmem:[%s423 + $0x34] sm:$0xf]
      %v520 = vld [vmem:[%s423 + $0x38] sm:$0xf]
      %v521 = vld [vmem:[%s423 + $0x3c] sm:$0xf]
      %v530 = vunpack.c.l.b16 %v490
      %v531 = vunpack.c.l.b16 %v491
      %v532 = vunpack.c.l.b16 %v492
      %v533 = vunpack.c.l.b16 %v493
      %v534 = vunpack.c.l.b16 %v494
      %v535 = vunpack.c.l.b16 %v495
      %v536 = vunpack.c.l.b16 %v496
      %v537 = vunpack.c.l.b16 %v497
      %v538 = vpack.c.b16 %v531, %v530
      %v539 = vpack.c.b16 %v533, %v532
      %v540 = vpack.c.b16 %v535, %v534
      %v541 = vpack.c.b16 %v537, %v536
      %v562 = vunpack.c.l.b16 %v506
      %v563 = vunpack.c.l.b16 %v507
      %v564 = vunpack.c.l.b16 %v508
      %v565 = vunpack.c.l.b16 %v509
      %v566 = vunpack.c.l.b16 %v510
      %v567 = vunpack.c.l.b16 %v511
      %v568 = vunpack.c.l.b16 %v512
      %v569 = vunpack.c.l.b16 %v513
      %v570 = vunpack.c.l.b16 %v514
      %v571 = vunpack.c.l.b16 %v515
      %v572 = vunpack.c.l.b16 %v516
      %v573 = vunpack.c.l.b16 %v517
      %v574 = vunpack.c.l.b16 %v518
      %v575 = vunpack.c.l.b16 %v519
      %v576 = vunpack.c.l.b16 %v520
      %v577 = vunpack.c.l.b16 %v521
      %v578 = vpack.c.b16 %v563, %v562
      %v579 = vpack.c.b16 %v565, %v564
      %v580 = vpack.c.b16 %v567, %v566
      %v581 = vpack.c.b16 %v569, %v568
      %v582 = vpack.c.b16 %v571, %v570
      %v583 = vpack.c.b16 %v573, %v572
      %v584 = vpack.c.b16 %v575, %v574
      %v585 = vpack.c.b16 %v577, %v576
      %594 = vmatprep.subr.bf16.mxu0 0
      %595 = vmatpush1.bf16.msra.mxu0 %v578
      %596 = vmatprep.subr.bf16.mxu0 0
      %597 = vmatpush1.bf16.msra.mxu0 %v579
      %598 = vmatprep.subr.bf16.mxu0 0
      %599 = vmatpush1.bf16.msra.mxu0 %v580
      %600 = vmatprep.subr.bf16.mxu0 0
      %601 = vmatpush1.bf16.msra.mxu0 %v581
      %602 = vmatprep.subr.bf16.mxu0 0
      %603 = vmatpush1.bf16.msra.mxu0 %v582
      %604 = vmatprep.subr.bf16.mxu0 0
      %605 = vmatpush1.bf16.msra.mxu0 %v583
      %606 = vmatprep.subr.bf16.mxu0 0
      %607 = vmatpush1.bf16.msra.mxu0 %v584
      %608 = vmatprep.subr.bf16.mxu0 0
      %609 = vmatpush1.bf16.msra.mxu0 %v585
      %610 = vmatprep.subr.bf16.mxu0 0
      %611 = vmatpush1.bf16.msra.mxu0 0
      %612 = vmatprep.subr.bf16.mxu0 0
      %613 = vmatpush1.bf16.msra.mxu0 0
      %614 = vmatprep.subr.bf16.mxu0 0
      %615 = vmatpush1.bf16.msra.mxu0 0
      %616 = vmatprep.subr.bf16.mxu0 0
      %617 = vmatpush1.bf16.msra.mxu0 0
      %618 = vmatprep.subr.bf16.mxu0 0
      %619 = vmatpush1.bf16.msra.mxu0 0
      %620 = vmatprep.subr.bf16.mxu0 0
      %621 = vmatpush1.bf16.msra.mxu0 0
      %622 = vmatprep.subr.bf16.mxu0 0
      %623 = vmatpush1.bf16.msra.mxu0 0
      %624 = vmatprep.subr.bf16.mxu0 0
      %625 = vmatpush1.bf16.msra.mxu0 0
      %626 = vmatprep.mubr.bf16.mxu0 0
      %627 = vmatmul.mubr.bf16.gmra.mrb[0].mxu0 %v538
      %v628 = vpop.f32.mrb[0].mxu0
      %v629 = vadd.f32 0.0, %v628
      %v630 = vpop.f32.mrb[0].mxu0
      %v631 = vpop.f32.mrb[0].mxu0
      %v632 = vadd.f32 0.0, %v631
      %v633 = vpop.f32.mrb[0].mxu0
      %634 = vmatprep.mubr.bf16.mxu0 0
      %635 = vmatmul.mubr.bf16.gmra.mrb[0].mxu0 %v539
      %v636 = vpop.f32.mrb[0].mxu0
      %v637 = vadd.f32 0.0, %v636
      %v638 = vpop.f32.mrb[0].mxu0
      %v639 = vpop.f32.mrb[0].mxu0
      %v640 = vadd.f32 0.0, %v639
      %v641 = vpop.f32.mrb[0].mxu0
      %642 = vmatprep.mubr.bf16.mxu0 0
      %643 = vmatmul.mubr.bf16.gmra.mrb[0].mxu0 %v540
      %v644 = vpop.f32.mrb[0].mxu0
      %v645 = vadd.f32 0.0, %v644
      %v646 = vpop.f32.mrb[0].mxu0
      %v647 = vpop.f32.mrb[0].mxu0
      %v648 = vadd.f32 0.0, %v647
      %v649 = vpop.f32.mrb[0].mxu0
      %650 = vmatprep.mubr.bf16.mxu0 0
      %651 = vmatmul.mubr.bf16.gmra.mrb[0].mxu0 %v541
      %v652 = vpop.f32.mrb[0].mxu0
      %v653 = vadd.f32 0.0, %v652
      %v654 = vpop.f32.mrb[0].mxu0
      %v655 = vpop.f32.mrb[0].mxu0
      %v656 = vadd.f32 0.0, %v655
      %v657 = vpop.f32.mrb[0].mxu0
      %658 = vdwg.mxu0
      %v659 = vadd.f32 %v498, %v629
      %v660 = vadd.f32 %v499, %v632
      %v661 = vadd.f32 %v500, %v637
      %v662 = vadd.f32 %v501, %v640
      %v663 = vadd.f32 %v502, %v645
      %v664 = vadd.f32 %v503, %v648
      %v665 = vadd.f32 %v504, %v653
      %v666 = vadd.f32 %v505, %v656
      %667 = vst [vmem:[#allocation2] sm:$0xff] %v659
      %668 = vst [vmem:[#allocation2 + $0x8] sm:$0xff] %v660
      %669 = vst [vmem:[#allocation2 + $0x10] sm:$0xff] %v661
      %670 = vst [vmem:[#allocation2 + $0x18] sm:$0xff] %v662
      %671 = vst [vmem:[#allocation2 + $0x20] sm:$0xff] %v663
      %672 = vst [vmem:[#allocation2 + $0x28] sm:$0xff] %v664
      %673 = vst [vmem:[#allocation2 + $0x30] sm:$0xff] %v665
      %674 = vst [vmem:[#allocation2 + $0x38] sm:$0xff] %v666
      // Predicated region
      $region49: #{_lambda_.19} parent=43 // pred_check
        %p675 = pneg %p458
      $region50: #{_lambda_.19} parent=43 // pred_check_branch
        %677 = sbr.rel (%p675) target = $region52
      $region51: #{_lambda_.19} parent=43 // pred_region
        %v678 = vld [vmem:[#allocation2] sm:$0xff]
        %v679 = vld [vmem:[#allocation2 + $0x8] sm:$0xff]
        %v680 = vld [vmem:[#allocation2 + $0x10] sm:$0xff]
        %v681 = vld [vmem:[#allocation2 + $0x18] sm:$0xff]
        %v682 = vld [vmem:[#allocation2 + $0x20] sm:$0xff]
        %v683 = vld [vmem:[#allocation2 + $0x28] sm:$0xff]
        %v684 = vld [vmem:[#allocation2 + $0x30] sm:$0xff]
        %v685 = vld [vmem:[#allocation2 + $0x38] sm:$0xff]
        %v686 = vld [vmem:[%s427] sm:$0x1]
        %v688 = vlaneseq
        %v689 = vshrl.u32 %v688, 7
        %v690 = vsub.s32 0, %v689
        %v691 = vrot.slane %v686, %v690
        %v693 = vmul.f32 %v678, %v691
        %v694 = vmul.f32 %v679, %v691
        %v695 = vmul.f32 %v680, %v691
        %v696 = vmul.f32 %v681, %v691
        %v697 = vmul.f32 %v682, %v691
        %v698 = vmul.f32 %v683, %v691
        %v699 = vmul.f32 %v684, %v691
        %v700 = vmul.f32 %v685, %v691
        %v701 = vld [vmem:[%s430] sm:$0x1]
        %v703 = vlaneseq
        %v704 = vshrl.u32 %v703, 7
        %v705 = vsub.s32 0, %v704
        %v706 = vrot.slane %v701, %v705
        %v708 = vadd.f32 %v693, %v706
        %v709 = vadd.f32 %v694, %v706
        %v710 = vadd.f32 %v695, %v706
        %v711 = vadd.f32 %v696, %v706
        %v712 = vadd.f32 %v697, %v706
        %v713 = vadd.f32 %v698, %v706
        %v714 = vadd.f32 %v699, %v706
        %v715 = vadd.f32 %v700, %v706
        %v716 = vld [vmem:[%s442] sm:$0xf]
        %v717 = vld [vmem:[%s442 + $0x4] sm:$0xf]
        %v718 = vld [vmem:[%s442 + $0x8] sm:$0xf]
        %v719 = vld [vmem:[%s442 + $0xc] sm:$0xf]
        %v720 = vld [vmem:[%s442 + $0x10] sm:$0xf]
        %v721 = vld [vmem:[%s442 + $0x14] sm:$0xf]
        %v722 = vld [vmem:[%s442 + $0x18] sm:$0xf]
        %v723 = vld [vmem:[%s442 + $0x1c] sm:$0xf]
        %v724 = vunpack.c.l.bf16 %v716
        %v725 = vunpack.c.l.bf16 %v717
        %v726 = vunpack.c.l.bf16 %v718
        %v727 = vunpack.c.l.bf16 %v719
        %v728 = vunpack.c.l.bf16 %v720
        %v729 = vunpack.c.l.bf16 %v721
        %v730 = vunpack.c.l.bf16 %v722
        %v731 = vunpack.c.l.bf16 %v723
        %v732 = vadd.f32 %v708, %v724
        %v733 = vadd.f32 %v709, %v725
        %v734 = vadd.f32 %v710, %v726
        %v735 = vadd.f32 %v711, %v727
        %v736 = vadd.f32 %v712, %v728
        %v737 = vadd.f32 %v713, %v729
        %v738 = vadd.f32 %v714, %v730
        %v739 = vadd.f32 %v715, %v731
        %v740 = vpack.c.bf16 %v733, %v732
        %v741 = vpack.c.bf16 %v735, %v734
        %v742 = vpack.c.bf16 %v737, %v736
        %v743 = vpack.c.bf16 %v739, %v738
        %v748 = vunpack.c.l.b16 %v740
        %v749 = vunpack.c.h.b16 %v740
        %v750 = vunpack.c.l.b16 %v741
        %v751 = vunpack.c.h.b16 %v741
        %v752 = vunpack.c.l.b16 %v742
        %v753 = vunpack.c.h.b16 %v742
        %v754 = vunpack.c.l.b16 %v743
        %v755 = vunpack.c.h.b16 %v743
        %v756 = vpack.c.b16 %v748, %v748
        %v757 = vpack.c.b16 %v749, %v749
        %v758 = vpack.c.b16 %v750, %v750
        %v759 = vpack.c.b16 %v751, %v751
        %v760 = vpack.c.b16 %v752, %v752
        %v761 = vpack.c.b16 %v753, %v753
        %v762 = vpack.c.b16 %v754, %v754
        %v763 = vpack.c.b16 %v755, %v755
        %772 = vst [vmem:[%s455] sm:$0xf] %v756
        %773 = vst [vmem:[%s455 + $0x4] sm:$0xf] %v757
        %774 = vst [vmem:[%s455 + $0x8] sm:$0xf] %v758
        %775 = vst [vmem:[%s455 + $0xc] sm:$0xf] %v759
        %776 = vst [vmem:[%s455 + $0x10] sm:$0xf] %v760
        %777 = vst [vmem:[%s455 + $0x14] sm:$0xf] %v761
        %778 = vst [vmem:[%s455 + $0x18] sm:$0xf] %v762
        %779 = vst [vmem:[%s455 + $0x1c] sm:$0xf] %v763
      $region52: #{_lambda_.19} parent=43 // pred_fallthru
        _
      %s780 = smul.u32 8, %s24
      %p781 = scmp.lt.s32.totalorder %s23, 1
      %s782 = scalar_select %p781, %s23, 1
      %p783 = scmp.lt.s32.totalorder %s780, 7
      %s784 = scalar_select %p783, %s780, 7
      %p785 = scmp.lt.s32.totalorder %s25, 0
      %s786 = scalar_select %p785, %s25, 0
      %s787 = sadd.s32 %s786, %s784
      %s788 = smul.addr %s782, 8
      %s789 = sadd.s32 %s787, %s788
      %s790 = smul.addr %s789, 4
      %s791 = scalar_lea.vmem %s6, %s790
      // Predicated region
      $region53: #{_lambda_.19} parent=43 // pred_check
        %p792 = pneg %p233
      $region54: #{_lambda_.19} parent=43 // pred_check_branch
        %794 = sbr.rel (%p792) target = $region56
      $region55: #{_lambda_.19} parent=43 // pred_region
        %s795 = smul.u32 8, %s24
      $region56: #{_lambda_.19} parent=43 // pred_fallthru
        _
    $region44: #{_lambda_.19} parent=5 // pred_fallthru
      _
    %p796 = scmp.le.s32.totalorder 2, %s12
    // Predicated region
    $region57: #{_lambda_.19} parent=5 // pred_check
      %p797 = pneg %p796
    $region58: #{_lambda_.19} parent=5 // pred_check_branch
      %799 = sbr.rel (%p797) target = $region60
    $region59: #{_lambda_.19} parent=5 // pred_region
      %s800 = ssub.s32 %s12, 2
      // Predicated region
      $region61: #{_lambda_.19} parent=59 // pred_check
        %p801 = pneg %p239
      $region62: #{_lambda_.19} parent=59 // pred_check_branch
        %803 = sbr.rel (%p801) target = $region64
      $region63: #{_lambda_.19} parent=59 // pred_region
        %s804 = smul.u32 8, %s28
        %p805 = scmp.lt.s32.totalorder %s27, 1
        %s806 = scalar_select %p805, %s27, 1
        %p807 = scmp.lt.s32.totalorder %s804, 7
        %s808 = scalar_select %p807, %s804, 7
        %p809 = scmp.lt.s32.totalorder %s29, 0
        %s810 = scalar_select %p809, %s29, 0
        %s811 = sadd.s32 %s810, %s808
        %s812 = smul.addr %s806, 8
        %s813 = sadd.s32 %s811, %s812
        %s814 = smul.addr %s813, 4
        %s815 = scalar_lea.vmem %s6, %s814
      $region64: #{_lambda_.19} parent=59 // pred_fallthru
        _
    $region60: #{_lambda_.19} parent=5 // pred_fallthru
      _
  $region6: #{_lambda_.19} parent=0 // loop_footer
    %s16 = sadd.s32 1, %s12
  $region7: #{_lambda_.19} parent=0 // loop_footer_branch
    %11 = sbr.rel target = $region3
  $region8: #{_lambda_.19} parent=0 // loop_exit
    _

</llo_original>
